<compile_context>
chip_gen: v7x
topology: tpu7x:2x2x1
jax: 0.10.0
libtpu: 0.0.40
codegen_flags: <defaults>
</compile_context>

<pallas_src>
import functools

import jax
import jax.numpy as jnp
from jax.experimental import pallas as pl
from jax.experimental.pallas import tpu as pltpu

LANE = 128
_VMEM_LIMIT = 32 * 1024 * 1024
_TILES_MN = (512, 256, 128)
_TILES_K = (1024, 512, 256, 128)


def _round_up(x, m):
    return (x + m - 1) // m * m


def _pick_tile(dim, candidates):
    for t in candidates:
        if dim >= t and dim % t == 0:
            return t
    return dim


def _mosaic_params(dims):
    return pltpu.CompilerParams(dimension_semantics=dims,
                                vmem_limit_bytes=_VMEM_LIMIT)


# ----------------------- 1x1 conv as tiled matmul ---------------------------

def _mm_bn_kernel(x_ref, w_ref, shift_ref, o_ref, acc_ref, *, relu):
    k = pl.program_id(2)

    @pl.when(k == 0)
    def _():
        acc_ref[...] = jnp.zeros_like(acc_ref)

    acc_ref[...] += jnp.dot(x_ref[...], w_ref[...],
                            preferred_element_type=jnp.float32)

    @pl.when(k == pl.num_programs(2) - 1)
    def _():
        y = acc_ref[...] + shift_ref[...]
        if relu:
            y = jnp.maximum(y, 0.0)
        o_ref[...] = y.astype(o_ref.dtype)


def _mm_bn_res_relu_kernel(x_ref, w_ref, shift_ref, res_ref, o_ref, acc_ref):
    k = pl.program_id(2)

    @pl.when(k == 0)
    def _():
        acc_ref[...] = jnp.zeros_like(acc_ref)

    acc_ref[...] += jnp.dot(x_ref[...], w_ref[...],
                            preferred_element_type=jnp.float32)

    @pl.when(k == pl.num_programs(2) - 1)
    def _():
        # bf16 residual stream, add in f32.
        y = acc_ref[...] + shift_ref[...] + res_ref[...].astype(jnp.float32)
        o_ref[...] = jnp.maximum(y, 0.0).astype(o_ref.dtype)


def matmul_bn(x, w, shift, *, relu, residual=None, out_dtype=jnp.float32):
    """(M,K)@(K,N) with bf16 MXU operands, f32 accum, fused shift (+res/ReLU)."""
    M, K = x.shape
    Kw, N = w.shape
    assert K == Kw and K % LANE == 0 and N % LANE == 0, (K, Kw, N)

    Mp = _round_up(M, LANE)
    x = x.astype(jnp.bfloat16)
    if Mp != M:
        x = jnp.pad(x, ((0, Mp - M), (0, 0)))
    if residual is not None:
        residual = residual.astype(jnp.bfloat16)
        if Mp != M:
            residual = jnp.pad(residual, ((0, Mp - M), (0, 0)))

    tm = _pick_tile(Mp, _TILES_MN)
    tn = _pick_tile(N, _TILES_MN)
    tk = _pick_tile(K, _TILES_K)
    # Keep >= 2 parallel blocks when possible (v7x has 2 TensorCores).
    if Mp // tm == 1 and N // tn == 1 and tm >= 2 * LANE:
        tm //= 2
    grid = (Mp // tm, N // tn, K // tk)

    in_specs = [
        pl.BlockSpec((tm, tk), lambda i, j, k: (i, k)),
        pl.BlockSpec((tk, tn), lambda i, j, k: (k, j)),
        pl.BlockSpec((1, tn), lambda i, j, k: (0, j)),
    ]
    args = [x, w.astype(jnp.bfloat16), shift.reshape(1, N).astype(jnp.float32)]
    res_bytes = 0
    if residual is None:
        kernel = functools.partial(_mm_bn_kernel, relu=relu)
    else:
        kernel = _mm_bn_res_relu_kernel
        in_specs.append(pl.BlockSpec((tm, tn), lambda i, j, k: (i, j)))
        args.append(residual)
        res_bytes = Mp * N * 2

    out = pl.pallas_call(
        kernel,
        out_shape=jax.ShapeDtypeStruct((Mp, N), out_dtype),
        grid=grid,
        in_specs=in_specs,
        out_specs=pl.BlockSpec((tm, tn), lambda i, j, k: (i, j)),
        scratch_shapes=[pltpu.VMEM((tm, tn), jnp.float32)],
        compiler_params=_mosaic_params(("parallel", "parallel", "arbitrary")),
        cost_estimate=pl.CostEstimate(
            flops=2 * Mp * N * K,
            transcendentals=0,
            bytes_accessed=Mp * K * 2 + K * N * 2 + res_bytes
            + Mp * N * jnp.dtype(out_dtype).itemsize),
    )(*args)
    return out[:M] if Mp != M else out


# --------- fused conv3 (1x1) + projection shortcut (1x1, strided) -----------

def _mm2_bn_relu_kernel(x1_ref, x2_ref, w1_ref, w2_ref, shift_ref, o_ref,
                        acc_ref):
    acc_ref[...] = jnp.dot(x1_ref[...], w1_ref[...],
                           preferred_element_type=jnp.float32)
    acc_ref[...] += jnp.dot(x2_ref[...], w2_ref[...],
                            preferred_element_type=jnp.float32)
    y = acc_ref[...] + shift_ref[...]
    o_ref[...] = jnp.maximum(y, 0.0).astype(o_ref.dtype)


def matmul2_bn_relu(x1, x2, w1, w2, shift, *, out_dtype=jnp.float32):
    """relu(x1@w1 + x2@w2 + shift): conv3 and the projection shortcut fused."""
    M, K1 = x1.shape
    M2, K2 = x2.shape
    N = w1.shape[1]
    assert M == M2 and w1.shape == (K1, N) and w2.shape == (K2, N)
    assert K1 % LANE == 0 and K2 % LANE == 0 and N % LANE == 0

    Mp = _round_up(M, LANE)
    x1 = x1.astype(jnp.bfloat16)
    x2 = x2.astype(jnp.bfloat16)
    if Mp != M:
        x1 = jnp.pad(x1, ((0, Mp - M), (0, 0)))
        x2 = jnp.pad(x2, ((0, Mp - M), (0, 0)))

    tm = _pick_tile(Mp, _TILES_MN)
    tn = _pick_tile(N, _TILES_MN)
    if Mp // tm == 1 and N // tn == 1 and tm >= 2 * LANE:
        tm //= 2
    grid = (Mp // tm, N // tn)

    out = pl.pallas_call(
        _mm2_bn_relu_kernel,
        out_shape=jax.ShapeDtypeStruct((Mp, N), out_dtype),
        grid=grid,
        in_specs=[
            pl.BlockSpec((tm, K1), lambda i, j: (i, 0)),
            pl.BlockSpec((tm, K2), lambda i, j: (i, 0)),
            pl.BlockSpec((K1, tn), lambda i, j: (0, j)),
            pl.BlockSpec((K2, tn), lambda i, j: (0, j)),
            pl.BlockSpec((1, tn), lambda i, j: (0, j)),
        ],
        out_specs=pl.BlockSpec((tm, tn), lambda i, j: (i, j)),
        scratch_shapes=[pltpu.VMEM((tm, tn), jnp.float32)],
        compiler_params=_mosaic_params(("parallel", "parallel")),
        cost_estimate=pl.CostEstimate(
            flops=2 * Mp * N * (K1 + K2),
            transcendentals=0,
            bytes_accessed=(Mp * (K1 + K2) + (K1 + K2) * N) * 2
            + Mp * N * jnp.dtype(out_dtype).itemsize),
    )(x1, x2, w1.astype(jnp.bfloat16), w2.astype(jnp.bfloat16),
      shift.reshape(1, N).astype(jnp.float32))
    return out[:M] if Mp != M else out


# --------------- fused 3x3 conv: row-blocked 9-tap accumulation -------------

def _conv3x3_kernel(*refs, nph, R, wqp, wo, plan):
    # refs = nph flattened phase refs, tap weights (9,C,C), shift, out, acc.
    x_refs = refs[:nph]
    w_ref, shift_ref, o_ref, acc_ref = refs[nph:nph + 4]
    c = o_ref.shape[-1]

    row0 = pl.multiple_of(pl.program_id(1) * (R * wqp), wqp)
    acc_ref[...] = jnp.zeros_like(acc_ref)

    for ph in range(nph):
        dh, tail, taps = plan[ph]
        # One VMEM window load per phase per step (covers all taps' rows).
        win = x_refs[ph][pl.ds(row0, (R + dh) * wqp + tail), :]
        for qw in sorted({t[1] for t in taps}):
            # One sublane shift per distinct column offset (not per tap).
            sh = win if qw == 0 else win[qw:qw + (R + dh) * wqp, :]
            for qh, qw_t, t in taps:
                if qw_t != qw:
                    continue
                lhs = sh[qh * wqp:(qh + R) * wqp, :]   # 16-aligned static slice
                acc_ref[...] += jnp.dot(lhs, w_ref[t],
                                        preferred_element_type=jnp.float32)

    y = jnp.maximum(acc_ref[...] + shift_ref[...], 0.0)
    o_ref[...] = y.reshape(R, wqp, c)[:, :wo, :].astype(o_ref.dtype)


def conv3x3_bn_relu(y, w9, shift, stride):
    """3x3 conv (padding=1, stride in {1,2}) + folded-BN shift + ReLU (NHWC)."""
    assert stride in (1, 2)
    n, h, w, c = y.shape
    assert c % LANE == 0, c
    ho = (h - 1) // stride + 1
    wo = (w - 1) // stride + 1
    d = 2 // stride
    wqp = _round_up(wo + d, 16)          # bf16 sublane-aligned phase width
    hq = ho + d + 1                      # +1 spare row: window tails in-bounds
    R = min(ho, max(1, 512 // wqp))      # output rows per grid step
    while ho % R:
        R -= 1

    y = y.astype(jnp.bfloat16)
    if stride == 1:
        # Single phase == padded activation; no rearrangement copy needed.
        p0 = jnp.pad(y, ((0, 0), (1, hq - h - 1), (1, wqp - w - 1), (0, 0)))
        phases = [p0.reshape(n, hq * wqp, c)]
    else:
        # One pass: split the padded activation into its 4 stride phases.
        yp = jnp.pad(y, ((0, 0), (1, 1), (1, 1), (0, 0)))
        phases = []
        for a in range(2):
            for b in range(2):
                p = yp[:, a::2, b::2, :]
                p = jnp.pad(p, ((0, 0), (0, hq - p.shape[1]),
                                (0, wqp - p.shape[2]), (0, 0)))
                phases.append(p.reshape(n, hq * wqp, c))
    nph = len(phases)

    per_phase = {ph: [] for ph in range(nph)}
    for kh in range(3):
        for kw in range(3):
            ph = (kh % stride) * stride + (kw % stride)
            per_phase[ph].append((kh // stride, kw // stride, kh * 3 + kw))
    plan = tuple(
        (max(t[0] for t in per_phase[ph]),
         max(t[1] for t in per_phase[ph]),
         tuple(per_phase[ph]))
        for ph in range(nph))

    kernel = functools.partial(_conv3x3_kernel, nph=nph, R=R, wqp=wqp, wo=wo,
                               plan=plan)
    phase_spec = pl.BlockSpec((None, hq * wqp, c), lambda b, i: (b, 0, 0))
    out = pl.pallas_call(
        kernel,
        out_shape=jax.ShapeDtypeStruct((n, ho, wo, c), jnp.bfloat16),
        grid=(n, ho // R),
        in_specs=[phase_spec] * nph + [
            pl.BlockSpec((9, c, c), lambda b, i: (0, 0, 0)),
            pl.BlockSpec((1, c), lambda b, i: (0, 0)),
        ],
        out_specs=pl.BlockSpec((None, R, wo, c), lambda b, i: (b, i, 0, 0)),
        scratch_shapes=[pltpu.VMEM((R * wqp, c), jnp.float32)],
        compiler_params=_mosaic_params(("parallel", "parallel")),
        cost_estimate=pl.CostEstimate(
            flops=2 * 9 * n * ho * wqp * c * c,
            transcendentals=0,
            bytes_accessed=nph * n * hq * wqp * c * 2 + 9 * c * c * 2
            + n * ho * wo * c * 2),
    )(*phases, w9.astype(jnp.bfloat16), shift.reshape(1, c).astype(jnp.float32))
    return out, ho, wo


# ------------------------------- forward pass -------------------------------

def prepare_params(p):
    """Fold BN scale into conv weights, pad channels to LANE, cast to bf16."""
    cin, cmid = p["w1"].shape
    cexp = p["w3"].shape[1]
    cin_p, cmid_p, cexp_p = (_round_up(c, LANE) for c in (cin, cmid, cexp))

    def fold_pad(w, scale, ci, ci_p, co, co_p):
        w = w * scale[None, :]
        return jnp.pad(w, ((0, ci_p - ci), (0, co_p - co))).astype(jnp.bfloat16)

    kp = {}
    kp["w1"] = fold_pad(p["w1"], p["s1"], cin, cin_p, cmid, cmid_p)
    kp["b1"] = jnp.pad(p["b1"], (0, cmid_p - cmid))
    w2 = p["w2"] * p["s2"][None, None, None, :]
    w2 = jnp.pad(w2, ((0, 0), (0, 0), (0, cmid_p - cmid), (0, cmid_p - cmid)))
    kp["w2"] = w2.reshape(9, cmid_p, cmid_p).astype(jnp.bfloat16)
    kp["b2"] = jnp.pad(p["b2"], (0, cmid_p - cmid))
    kp["w3"] = fold_pad(p["w3"], p["s3"], cmid, cmid_p, cexp, cexp_p)
    kp["b3"] = jnp.pad(p["b3"], (0, cexp_p - cexp))
    if p["wsc"] is not None:
        kp["wsc"] = fold_pad(p["wsc"], p["ssc"], cin, cin_p, cexp, cexp_p)
        kp["bsc"] = jnp.pad(p["bsc"], (0, cexp_p - cexp))
    else:
        kp["wsc"] = None
        kp["bsc"] = None
    return kp


def bottleneck_forward(x_nchw, kp, stride, cexp):
    """Pallas BottleNeck.forward.  Input/output are NCHW; cexp = out_ch * 4."""
    x = jnp.transpose(x_nchw, (0, 2, 3, 1))                       # -> NHWC
    n, h, w, cin = x.shape
    cin_p, cmid_p = kp["w1"].shape
    cexp_p = kp["w3"].shape[1]

    # Single bf16 copy of the activation with lane-padded channels.
    x = jnp.pad(x, ((0, 0), (0, 0), (0, 0), (0, cin_p - cin))).astype(jnp.bfloat16)

    # conv1 (1x1) -> BN -> ReLU.
    y = matmul_bn(x.reshape(n * h * w, cin_p), kp["w1"], kp["b1"],
                  relu=True, out_dtype=jnp.bfloat16)
    y = y.reshape(n, h, w, cmid_p)

    # conv2 (3x3, stride, pad=1) -> BN -> ReLU (row-blocked 9-tap kernel).
    y2, ho, wo = conv3x3_bn_relu(y, kp["w2"], kp["b2"], stride)
    m2 = n * ho * wo
    y2_flat = y2.reshape(m2, cmid_p)

    if kp["wsc"] is not None:
        # conv3 + projection shortcut fused: relu(y2@w3 + xs@wsc + b3 + bsc).
        xs = x[:, ::stride, ::stride, :].reshape(m2, cin_p)
        out = matmul2_bn_relu(y2_flat, xs, kp["w3"], kp["wsc"],
                              kp["b3"] + kp["bsc"], out_dtype=jnp.float32)
    else:
        # conv3 (1x1) -> BN, fused identity-shortcut add + ReLU (bf16 residual).
        res = x.reshape(m2, cin_p)          # stride == 1, cin_p == cexp_p
        out = matmul_bn(y2_flat, kp["w3"], kp["b3"], relu=True,
                        residual=res, out_dtype=jnp.float32)

    out = out.reshape(n, ho, wo, cexp_p)[..., :cexp]
    return jnp.transpose(out, (0, 3, 1, 2))                       # -> NCHW


# ------------------------- deterministic parameters -------------------------

def init_params(key, in_channels, out_channels, stride, expansion=4):
    cexp = out_channels * expansion
    ks = jax.random.split(key, 8)
    eps = 1e-5

    def bn_fold(k, c):
        gamma = jax.random.uniform(k, (c,), minval=0.5, maxval=1.5)
        beta = 0.1 * jax.random.normal(jax.random.fold_in(k, 1), (c,))
        mean = jnp.zeros((c,), jnp.float32)
        var = jnp.ones((c,), jnp.float32)
        scale = gamma / jnp.sqrt(var + eps)
        shift = beta - mean * scale
        return scale.astype(jnp.float32), shift.astype(jnp.float32)

    p = {}
    p["w1"] = 0.1 * jax.random.normal(ks[0], (in_channels, out_channels), jnp.float32)
    p["s1"], p["b1"] = bn_fold(ks[1], out_channels)
    p["w2"] = 0.1 * jax.random.normal(ks[2], (3, 3, out_channels, out_channels), jnp.float32)
    p["s2"], p["b2"] = bn_fold(ks[3], out_channels)
    p["w3"] = 0.1 * jax.random.normal(ks[4], (out_channels, cexp), jnp.float32)
    p["s3"], p["b3"] = bn_fold(ks[5], cexp)
    if stride != 1 or in_channels != cexp:
        p["wsc"] = 0.1 * jax.random.normal(ks[6], (in_channels, cexp), jnp.float32)
        p["ssc"], p["bsc"] = bn_fold(ks[7], cexp)
    else:
        p["wsc"] = p["ssc"] = p["bsc"] = None
    return p


# ---------------------------- pure-JAX reference ----------------------------

def ref_forward(x_nchw, params, stride):
    x = jnp.transpose(x_nchw, (0, 2, 3, 1))
    dn = ("NHWC", "HWIO", "NHWC")

    def conv(x, w, s, pad):
        return jax.lax.conv_general_dilated(x, w, (s, s), pad,
                                            dimension_numbers=dn)

    y = conv(x, params["w1"][None, None], 1, "VALID") * params["s1"] + params["b1"]
    y = jnp.maximum(y, 0.0)
    y = conv(y, params["w2"], stride, [(1, 1), (1, 1)]) * params["s2"] + params["b2"]
    y = jnp.maximum(y, 0.0)
    y = conv(y, params["w3"][None, None], 1, "VALID") * params["s3"] + params["b3"]
    if params["wsc"] is not None:
        sc = conv(x, params["wsc"][None, None], stride, "VALID") * params["ssc"] + params["bsc"]
    else:
        sc = x
    out = jnp.maximum(y + sc, 0.0)
    return jnp.transpose(out, (0, 3, 1, 2))


# ----------------------------------- main -----------------------------------

if __name__ == "__main__":
    in_channels, out_channels, stride = 4, 4, 2
    key = jax.random.PRNGKey(0)
    kx, kpar = jax.random.split(key)
    x = jax.random.normal(kx, (2, in_channels, 16, 16), jnp.float32)  # NCHW
    params = init_params(kpar, in_channels, out_channels, stride)
    kparams = prepare_params(params)
    cexp = out_channels * 4

    fwd = jax.jit(lambda xx, pp: bottleneck_forward(xx, pp, stride, cexp))
    out = jax.block_until_ready(fwd(x, kparams))

    ref = jax.block_until_ready(ref_forward(x, params, stride))
    assert out.shape == (2, cexp, 8, 8), out.shape
    err = float(jnp.max(jnp.abs(out - ref)))
    # bf16 MXU operands with f32 accumulation -> relaxed tolerance vs f32 ref.
    assert jnp.allclose(out, ref, atol=5e-2, rtol=5e-2), err
    print("KERNEL_OK")
</pallas_src>

<mosaic_0001>
module attributes {stable_mosaic.version = 11 : i64} {
  func.func @_mm_bn_kernel(%arg0: i32, %arg1: i32, %arg2: i32, %arg3: memref<256x128xbf16, #tpu.memory_space<vmem>>, %arg4: memref<128x128xbf16, #tpu.memory_space<vmem>>, %arg5: memref<1x128xf32, #tpu.memory_space<vmem>>, %arg6: memref<256x128xbf16, #tpu.memory_space<vmem>>, %arg7: memref<256x128xf32, #tpu.memory_space<vmem>>) attributes {dimension_semantics = [#tpu.dimension_semantics<parallel>, #tpu.dimension_semantics<parallel>, #tpu.dimension_semantics<arbitrary>], iteration_bounds = array<i64: 2, 1, 1>, scalar_prefetch = 0 : i64, scratch_operands = 1 : i64, tpu.core_type = #tpu.core_type<tc>, window_params = [{transform_indices = @transform_0, window_bounds = array<i64: 256, 128>}, {transform_indices = @transform_1, window_bounds = array<i64: 128, 128>}, {transform_indices = @transform_2, window_bounds = array<i64: 1, 128>}, {transform_indices = @transform_3, window_bounds = array<i64: 256, 128>}]} {
    %c0_i32 = arith.constant 0 : i32
    %0 = arith.cmpi eq, %arg2, %c0_i32 : i32
    %1 = arith.extui %0 : i1 to i32
    %c0_i32_0 = arith.constant 0 : i32
    %2 = arith.cmpi ne, %1, %c0_i32_0 : i32
    scf.if %2 {
      %cst_10 = arith.constant 0.000000e+00 : f32
      %12 = vector.broadcast %cst_10 : f32 to vector<256x128xf32>
      %c0_11 = arith.constant 0 : index
      %c0_12 = arith.constant 0 : index
      %13 = vector.load %arg7[%c0_11, %c0_12] : memref<256x128xf32, #tpu.memory_space<vmem>>, vector<256x128xf32>
      tpu.vector_store %arg7[%c0_11, %c0_12], %12 {strides = array<i32>} : memref<256x128xf32, #tpu.memory_space<vmem>>, vector<256x128xf32>,
    } else {
    }
    %c0 = arith.constant 0 : index
    %c0_1 = arith.constant 0 : index
    %3 = vector.load %arg7[%c0, %c0_1] : memref<256x128xf32, #tpu.memory_space<vmem>>, vector<256x128xf32>
    %c0_2 = arith.constant 0 : index
    %c0_3 = arith.constant 0 : index
    %4 = vector.load %arg3[%c0_2, %c0_3] : memref<256x128xbf16, #tpu.memory_space<vmem>>, vector<256x128xbf16>
    %c0_4 = arith.constant 0 : index
    %c0_5 = arith.constant 0 : index
    %5 = vector.load %arg4[%c0_4, %c0_5] : memref<128x128xbf16, #tpu.memory_space<vmem>>, vector<128x128xbf16>
    %cst = arith.constant dense<0.000000e+00> : vector<256x128xf32>
    %6 = tpu.matmul %4, %5, %cst {dimension_numbers = #tpu.dot_dimension_numbers<[1], [0], [0], [1], [0, 0, 1, 1], [], []>} : vector<256x128xbf16>, vector<128x128xbf16>, vector<256x128xf32> -> vector<256x128xf32>
    %7 = arith.addf %3, %6 : vector<256x128xf32>
    %c0_6 = arith.constant 0 : index
    %c0_7 = arith.constant 0 : index
    %8 = vector.load %arg7[%c0_6, %c0_7] : memref<256x128xf32, #tpu.memory_space<vmem>>, vector<256x128xf32>
    tpu.vector_store %arg7[%c0_6, %c0_7], %7 {strides = array<i32>} : memref<256x128xf32, #tpu.memory_space<vmem>>, vector<256x128xf32>,
    %c0_i32_8 = arith.constant 0 : i32
    %9 = arith.cmpi eq, %arg2, %c0_i32_8 : i32
    %10 = arith.extui %9 : i1 to i32
    %c0_i32_9 = arith.constant 0 : i32
    %11 = arith.cmpi ne, %10, %c0_i32_9 : i32
    scf.if %11 {
      %c0_10 = arith.constant 0 : index
      %c0_11 = arith.constant 0 : index
      %12 = vector.load %arg7[%c0_10, %c0_11] : memref<256x128xf32, #tpu.memory_space<vmem>>, vector<256x128xf32>
      %c0_12 = arith.constant 0 : index
      %c0_13 = arith.constant 0 : index
      %13 = vector.load %arg5[%c0_12, %c0_13] : memref<1x128xf32, #tpu.memory_space<vmem>>, vector<1x128xf32>
      %14 = vector.broadcast %13 : vector<1x128xf32> to vector<256x128xf32>
      %15 = arith.addf %12, %14 : vector<256x128xf32>
      %cst_14 = arith.constant 0.000000e+00 : f32
      %16 = vector.broadcast %cst_14 : f32 to vector<256x128xf32>
      %17 = arith.maximumf %15, %16 : vector<256x128xf32>
      %18 = arith.truncf %17 : vector<256x128xf32> to vector<256x128xbf16>
      %c0_15 = arith.constant 0 : index
      %c0_16 = arith.constant 0 : index
      %19 = vector.load %arg6[%c0_15, %c0_16] : memref<256x128xbf16, #tpu.memory_space<vmem>>, vector<256x128xbf16>
      tpu.vector_store %arg6[%c0_15, %c0_16], %18 {strides = array<i32>} : memref<256x128xbf16, #tpu.memory_space<vmem>>, vector<256x128xbf16>,
    } else {
    }
    return
  }
  func.func @transform_0(%arg0: i32, %arg1: i32, %arg2: i32) -> (i32, i32) {
    %c0_i32 = arith.constant 0 : i32
    return %arg0, %arg2 : i32, i32
  }
  func.func @transform_1(%arg0: i32, %arg1: i32, %arg2: i32) -> (i32, i32) {
    %c0_i32 = arith.constant 0 : i32
    return %arg2, %arg1 : i32, i32
  }
  func.func @transform_2(%arg0: i32, %arg1: i32, %arg2: i32) -> (i32, i32) {
    %c0_i32 = arith.constant 0 : i32
    %c0_i32_0 = arith.constant 0 : i32
    return %c0_i32, %arg1 : i32, i32
  }
  func.func @transform_3(%arg0: i32, %arg1: i32, %arg2: i32) -> (i32, i32) {
    %c0_i32 = arith.constant 0 : i32
    return %arg0, %arg1 : i32, i32
  }
}

module attributes {stable_mosaic.version = 11 : i64} {
  func.func @_conv3x3_kernel(%arg0: i32, %arg1: i32, %arg2: memref<1x160x128xbf16, #tpu.memory_space<vmem>>, %arg3: memref<1x160x128xbf16, #tpu.memory_space<vmem>>, %arg4: memref<1x160x128xbf16, #tpu.memory_space<vmem>>, %arg5: memref<1x160x128xbf16, #tpu.memory_space<vmem>>, %arg6: memref<9x128x128xbf16, #tpu.memory_space<vmem>>, %arg7: memref<1x128xf32, #tpu.memory_space<vmem>>, %arg8: memref<1x8x8x128xbf16, #tpu.memory_space<vmem>>, %arg9: memref<128x128xf32, #tpu.memory_space<vmem>>) attributes {dimension_semantics = [#tpu.dimension_semantics<parallel>, #tpu.dimension_semantics<parallel>], iteration_bounds = array<i64: 2, 1>, scalar_prefetch = 0 : i64, scratch_operands = 1 : i64, tpu.core_type = #tpu.core_type<tc>, window_params = [{transform_indices = @transform_0, window_bounds = array<i64: 1, 160, 128>}, {transform_indices = @transform_1, window_bounds = array<i64: 1, 160, 128>}, {transform_indices = @transform_2, window_bounds = array<i64: 1, 160, 128>}, {transform_indices = @transform_3, window_bounds = array<i64: 1, 160, 128>}, {pipeline_mode = #tpu.pipeline_mode<synchronous>, transform_indices = @transform_4, window_bounds = array<i64: 9, 128, 128>}, {pipeline_mode = #tpu.pipeline_mode<synchronous>, transform_indices = @transform_5, window_bounds = array<i64: 1, 128>}, {transform_indices = @transform_6, window_bounds = array<i64: 1, 8, 8, 128>}]} {
    %c128_i32 = arith.constant 128 : i32
    %0 = arith.muli %arg1, %c128_i32 : i32
    %1 = tpu.assume_multiple %0, 16 : i32
    %cst = arith.constant 0.000000e+00 : f32
    %2 = vector.broadcast %cst : f32 to vector<128x128xf32>
    %c0 = arith.constant 0 : index
    %c0_0 = arith.constant 0 : index
    %3 = vector.load %arg9[%c0, %c0_0] : memref<128x128xf32, #tpu.memory_space<vmem>>, vector<128x128xf32>
    tpu.vector_store %arg9[%c0, %c0_0], %2 {strides = array<i32>} : memref<128x128xf32, #tpu.memory_space<vmem>>, vector<128x128xf32>,
    %c0_1 = arith.constant 0 : index
    %4 = arith.index_cast %1 : i32 to index
    %c0_2 = arith.constant 0 : index
    %5 = vector.load %arg2[%c0_1, %4, %c0_2] : memref<1x160x128xbf16, #tpu.memory_space<vmem>>, vector<1x145x128xbf16>
    %6 = vector.shape_cast %5 : vector<1x145x128xbf16> to vector<145x128xbf16>
    %7 = vector.extract_strided_slice %6 {offsets = [0, 0], sizes = [128, 128], strides = [1, 1]} : vector<145x128xbf16> to vector<128x128xbf16>
    %c0_3 = arith.constant 0 : index
    %c0_4 = arith.constant 0 : index
    %8 = vector.load %arg9[%c0_3, %c0_4] : memref<128x128xf32, #tpu.memory_space<vmem>>, vector<128x128xf32>
    %c0_5 = arith.constant 0 : index
    %c0_6 = arith.constant 0 : index
    %c0_7 = arith.constant 0 : index
    %9 = vector.load %arg6[%c0_5, %c0_6, %c0_7] : memref<9x128x128xbf16, #tpu.memory_space<vmem>>, vector<1x128x128xbf16>
    %10 = vector.shape_cast %9 : vector<1x128x128xbf16> to vector<128x128xbf16>
    %cst_8 = arith.constant dense<0.000000e+00> : vector<128x128xf32>
    %11 = tpu.matmul %7, %10, %cst_8 {dimension_numbers = #tpu.dot_dimension_numbers<[1], [0], [0], [1], [0, 0, 1, 1], [], []>} : vector<128x128xbf16>, vector<128x128xbf16>, vector<128x128xf32> -> vector<128x128xf32>
    %12 = arith.addf %8, %11 : vector<128x128xf32>
    %c0_9 = arith.constant 0 : index
    %c0_10 = arith.constant 0 : index
    %13 = vector.load %arg9[%c0_9, %c0_10] : memref<128x128xf32, #tpu.memory_space<vmem>>, vector<128x128xf32>
    tpu.vector_store %arg9[%c0_9, %c0_10], %12 {strides = array<i32>} : memref<128x128xf32, #tpu.memory_space<vmem>>, vector<128x128xf32>,
    %14 = vector.extract_strided_slice %6 {offsets = [16, 0], sizes = [128, 128], strides = [1, 1]} : vector<145x128xbf16> to vector<128x128xbf16>
    %c0_11 = arith.constant 0 : index
    %c0_12 = arith.constant 0 : index
    %15 = vector.load %arg9[%c0_11, %c0_12] : memref<128x128xf32, #tpu.memory_space<vmem>>, vector<128x128xf32>
    %c6 = arith.constant 6 : index
    %c0_13 = arith.constant 0 : index
    %c0_14 = arith.constant 0 : index
    %16 = vector.load %arg6[%c6, %c0_13, %c0_14] : memref<9x128x128xbf16, #tpu.memory_space<vmem>>, vector<1x128x128xbf16>
    %17 = vector.shape_cast %16 : vector<1x128x128xbf16> to vector<128x128xbf16>
    %cst_15 = arith.constant dense<0.000000e+00> : vector<128x128xf32>
    %18 = tpu.matmul %14, %17, %cst_15 {dimension_numbers = #tpu.dot_dimension_numbers<[1], [0], [0], [1], [0, 0, 1, 1], [], []>} : vector<128x128xbf16>, vector<128x128xbf16>, vector<128x128xf32> -> vector<128x128xf32>
    %19 = arith.addf %15, %18 : vector<128x128xf32>
    %c0_16 = arith.constant 0 : index
    %c0_17 = arith.constant 0 : index
    %20 = vector.load %arg9[%c0_16, %c0_17] : memref<128x128xf32, #tpu.memory_space<vmem>>, vector<128x128xf32>
    tpu.vector_store %arg9[%c0_16, %c0_17], %19 {strides = array<i32>} : memref<128x128xf32, #tpu.memory_space<vmem>>, vector<128x128xf32>,
    %21 = vector.extract_strided_slice %6 {offsets = [1, 0], sizes = [144, 128], strides = [1, 1]} : vector<145x128xbf16> to vector<144x128xbf16>
    %22 = vector.extract_strided_slice %21 {offsets = [0, 0], sizes = [128, 128], strides = [1, 1]} : vector<144x128xbf16> to vector<128x128xbf16>
    %c0_18 = arith.constant 0 : index
    %c0_19 = arith.constant 0 : index
    %23 = vector.load %arg9[%c0_18, %c0_19] : memref<128x128xf32, #tpu.memory_space<vmem>>, vector<128x128xf32>
    %c2 = arith.constant 2 : index
    %c0_20 = arith.constant 0 : index
    %c0_21 = arith.constant 0 : index
    %24 = vector.load %arg6[%c2, %c0_20, %c0_21] : memref<9x128x128xbf16, #tpu.memory_space<vmem>>, vector<1x128x128xbf16>
    %25 = vector.shape_cast %24 : vector<1x128x128xbf16> to vector<128x128xbf16>
    %cst_22 = arith.constant dense<0.000000e+00> : vector<128x128xf32>
    %26 = tpu.matmul %22, %25, %cst_22 {dimension_numbers = #tpu.dot_dimension_numbers<[1], [0], [0], [1], [0, 0, 1, 1], [], []>} : vector<128x128xbf16>, vector<128x128xbf16>, vector<128x128xf32> -> vector<128x128xf32>
    %27 = arith.addf %23, %26 : vector<128x128xf32>
    %c0_23 = arith.constant 0 : index
    %c0_24 = arith.constant 0 : index
    %28 = vector.load %arg9[%c0_23, %c0_24] : memref<128x128xf32, #tpu.memory_space<vmem>>, vector<128x128xf32>
    tpu.vector_store %arg9[%c0_23, %c0_24], %27 {strides = array<i32>} : memref<128x128xf32, #tpu.memory_space<vmem>>, vector<128x128xf32>,
    %29 = vector.extract_strided_slice %21 {offsets = [16, 0], sizes = [128, 128], strides = [1, 1]} : vector<144x128xbf16> to vector<128x128xbf16>
    %c0_25 = arith.constant 0 : index
    %c0_26 = arith.constant 0 : index
    %30 = vector.load %arg9[%c0_25, %c0_26] : memref<128x128xf32, #tpu.memory_space<vmem>>, vector<128x128xf32>
    %c8 = arith.constant 8 : index
    %c0_27 = arith.constant 0 : index
    %c0_28 = arith.constant 0 : index
    %31 = vector.load %arg6[%c8, %c0_27, %c0_28] : memref<9x128x128xbf16, #tpu.memory_space<vmem>>, vector<1x128x128xbf16>
    %32 = vector.shape_cast %31 : vector<1x128x128xbf16> to vector<128x128xbf16>
    %cst_29 = arith.constant dense<0.000000e+00> : vector<128x128xf32>
    %33 = tpu.matmul %29, %32, %cst_29 {dimension_numbers = #tpu.dot_dimension_numbers<[1], [0], [0], [1], [0, 0, 1, 1], [], []>} : vector<128x128xbf16>, vector<128x128xbf16>, vector<128x128xf32> -> vector<128x128xf32>
    %34 = arith.addf %30, %33 : vector<128x128xf32>
    %c0_30 = arith.constant 0 : index
    %c0_31 = arith.constant 0 : index
    %35 = vector.load %arg9[%c0_30, %c0_31] : memref<128x128xf32, #tpu.memory_space<vmem>>, vector<128x128xf32>
    tpu.vector_store %arg9[%c0_30, %c0_31], %34 {strides = array<i32>} : memref<128x128xf32, #tpu.memory_space<vmem>>, vector<128x128xf32>,
    %c0_32 = arith.constant 0 : index
    %36 = arith.index_cast %1 : i32 to index
    %c0_33 = arith.constant 0 : index
    %37 = vector.load %arg3[%c0_32, %36, %c0_33] : memref<1x160x128xbf16, #tpu.memory_space<vmem>>, vector<1x144x128xbf16>
    %38 = vector.shape_cast %37 : vector<1x144x128xbf16> to vector<144x128xbf16>
    %39 = vector.extract_strided_slice %38 {offsets = [0, 0], sizes = [128, 128], strides = [1, 1]} : vector<144x128xbf16> to vector<128x128xbf16>
    %c0_34 = arith.constant 0 : index
    %c0_35 = arith.constant 0 : index
    %40 = vector.load %arg9[%c0_34, %c0_35] : memref<128x128xf32, #tpu.memory_space<vmem>>, vector<128x128xf32>
    %c1 = arith.constant 1 : index
    %c0_36 = arith.constant 0 : index
    %c0_37 = arith.constant 0 : index
    %41 = vector.load %arg6[%c1, %c0_36, %c0_37] : memref<9x128x128xbf16, #tpu.memory_space<vmem>>, vector<1x128x128xbf16>
    %42 = vector.shape_cast %41 : vector<1x128x128xbf16> to vector<128x128xbf16>
    %cst_38 = arith.constant dense<0.000000e+00> : vector<128x128xf32>
    %43 = tpu.matmul %39, %42, %cst_38 {dimension_numbers = #tpu.dot_dimension_numbers<[1], [0], [0], [1], [0, 0, 1, 1], [], []>} : vector<128x128xbf16>, vector<128x128xbf16>, vector<128x128xf32> -> vector<128x128xf32>
    %44 = arith.addf %40, %43 : vector<128x128xf32>
    %c0_39 = arith.constant 0 : index
    %c0_40 = arith.constant 0 : index
    %45 = vector.load %arg9[%c0_39, %c0_40] : memref<128x128xf32, #tpu.memory_space<vmem>>, vector<128x128xf32>
    tpu.vector_store %arg9[%c0_39, %c0_40], %44 {strides = array<i32>} : memref<128x128xf32, #tpu.memory_space<vmem>>, vector<128x128xf32>,
    %46 = vector.extract_strided_slice %38 {offsets = [16, 0], sizes = [128, 128], strides = [1, 1]} : vector<144x128xbf16> to vector<128x128xbf16>
    %c0_41 = arith.constant 0 : index
    %c0_42 = arith.constant 0 : index
    %47 = vector.load %arg9[%c0_41, %c0_42] : memref<128x128xf32, #tpu.memory_space<vmem>>, vector<128x128xf32>
    %c7 = arith.constant 7 : index
    %c0_43 = arith.constant 0 : index
    %c0_44 = arith.constant 0 : index
    %48 = vector.load %arg6[%c7, %c0_43, %c0_44] : memref<9x128x128xbf16, #tpu.memory_space<vmem>>, vector<1x128x128xbf16>
    %49 = vector.shape_cast %48 : vector<1x128x128xbf16> to vector<128x128xbf16>
    %cst_45 = arith.constant dense<0.000000e+00> : vector<128x128xf32>
    %50 = tpu.matmul %46, %49, %cst_45 {dimension_numbers = #tpu.dot_dimension_numbers<[1], [0], [0], [1], [0, 0, 1, 1], [], []>} : vector<128x128xbf16>, vector<128x128xbf16>, vector<128x128xf32> -> vector<128x128xf32>
    %51 = arith.addf %47, %50 : vector<128x128xf32>
    %c0_46 = arith.constant 0 : index
    %c0_47 = arith.constant 0 : index
    %52 = vector.load %arg9[%c0_46, %c0_47] : memref<128x128xf32, #tpu.memory_space<vmem>>, vector<128x128xf32>
    tpu.vector_store %arg9[%c0_46, %c0_47], %51 {strides = array<i32>} : memref<128x128xf32, #tpu.memory_space<vmem>>, vector<128x128xf32>,
    %c0_48 = arith.constant 0 : index
    %53 = arith.index_cast %1 : i32 to index
    %c0_49 = arith.constant 0 : index
    %54 = vector.load %arg4[%c0_48, %53, %c0_49] : memref<1x160x128xbf16, #tpu.memory_space<vmem>>, vector<1x129x128xbf16>
    %55 = vector.shape_cast %54 : vector<1x129x128xbf16> to vector<129x128xbf16>
    %56 = vector.extract_strided_slice %55 {offsets = [0, 0], sizes = [128, 128], strides = [1, 1]} : vector<129x128xbf16> to vector<128x128xbf16>
    %c0_50 = arith.constant 0 : index
    %c0_51 = arith.constant 0 : index
    %57 = vector.load %arg9[%c0_50, %c0_51] : memref<128x128xf32, #tpu.memory_space<vmem>>, vector<128x128xf32>
    %c3 = arith.constant 3 : index
    %c0_52 = arith.constant 0 : index
    %c0_53 = arith.constant 0 : index
    %58 = vector.load %arg6[%c3, %c0_52, %c0_53] : memref<9x128x128xbf16, #tpu.memory_space<vmem>>, vector<1x128x128xbf16>
    %59 = vector.shape_cast %58 : vector<1x128x128xbf16> to vector<128x128xbf16>
    %cst_54 = arith.constant dense<0.000000e+00> : vector<128x128xf32>
    %60 = tpu.matmul %56, %59, %cst_54 {dimension_numbers = #tpu.dot_dimension_numbers<[1], [0], [0], [1], [0, 0, 1, 1], [], []>} : vector<128x128xbf16>, vector<128x128xbf16>, vector<128x128xf32> -> vector<128x128xf32>
    %61 = arith.addf %57, %60 : vector<128x128xf32>
    %c0_55 = arith.constant 0 : index
    %c0_56 = arith.constant 0 : index
    %62 = vector.load %arg9[%c0_55, %c0_56] : memref<128x128xf32, #tpu.memory_space<vmem>>, vector<128x128xf32>
    tpu.vector_store %arg9[%c0_55, %c0_56], %61 {strides = array<i32>} : memref<128x128xf32, #tpu.memory_space<vmem>>, vector<128x128xf32>,
    %63 = vector.extract_strided_slice %55 {offsets = [1, 0], sizes = [128, 128], strides = [1, 1]} : vector<129x128xbf16> to vector<128x128xbf16>
    %c0_57 = arith.constant 0 : index
    %c0_58 = arith.constant 0 : index
    %64 = vector.load %arg9[%c0_57, %c0_58] : memref<128x128xf32, #tpu.memory_space<vmem>>, vector<128x128xf32>
    %c5 = arith.constant 5 : index
    %c0_59 = arith.constant 0 : index
    %c0_60 = arith.constant 0 : index
    %65 = vector.load %arg6[%c5, %c0_59, %c0_60] : memref<9x128x128xbf16, #tpu.memory_space<vmem>>, vector<1x128x128xbf16>
    %66 = vector.shape_cast %65 : vector<1x128x128xbf16> to vector<128x128xbf16>
    %cst_61 = arith.constant dense<0.000000e+00> : vector<128x128xf32>
    %67 = tpu.matmul %63, %66, %cst_61 {dimension_numbers = #tpu.dot_dimension_numbers<[1], [0], [0], [1], [0, 0, 1, 1], [], []>} : vector<128x128xbf16>, vector<128x128xbf16>, vector<128x128xf32> -> vector<128x128xf32>
    %68 = arith.addf %64, %67 : vector<128x128xf32>
    %c0_62 = arith.constant 0 : index
    %c0_63 = arith.constant 0 : index
    %69 = vector.load %arg9[%c0_62, %c0_63] : memref<128x128xf32, #tpu.memory_space<vmem>>, vector<128x128xf32>
    tpu.vector_store %arg9[%c0_62, %c0_63], %68 {strides = array<i32>} : memref<128x128xf32, #tpu.memory_space<vmem>>, vector<128x128xf32>,
    %c0_64 = arith.constant 0 : index
    %70 = arith.index_cast %1 : i32 to index
    %c0_65 = arith.constant 0 : index
    %71 = vector.load %arg5[%c0_64, %70, %c0_65] : memref<1x160x128xbf16, #tpu.memory_space<vmem>>, vector<1x128x128xbf16>
    %72 = vector.shape_cast %71 : vector<1x128x128xbf16> to vector<128x128xbf16>
    %c0_66 = arith.constant 0 : index
    %c0_67 = arith.constant 0 : index
    %73 = vector.load %arg9[%c0_66, %c0_67] : memref<128x128xf32, #tpu.memory_space<vmem>>, vector<128x128xf32>
    %c4 = arith.constant 4 : index
    %c0_68 = arith.constant 0 : index
    %c0_69 = arith.constant 0 : index
    %74 = vector.load %arg6[%c4, %c0_68, %c0_69] : memref<9x128x128xbf16, #tpu.memory_space<vmem>>, vector<1x128x128xbf16>
    %75 = vector.shape_cast %74 : vector<1x128x128xbf16> to vector<128x128xbf16>
    %cst_70 = arith.constant dense<0.000000e+00> : vector<128x128xf32>
    %76 = tpu.matmul %72, %75, %cst_70 {dimension_numbers = #tpu.dot_dimension_numbers<[1], [0], [0], [1], [0, 0, 1, 1], [], []>} : vector<128x128xbf16>, vector<128x128xbf16>, vector<128x128xf32> -> vector<128x128xf32>
    %77 = arith.addf %73, %76 : vector<128x128xf32>
    %c0_71 = arith.constant 0 : index
    %c0_72 = arith.constant 0 : index
    %78 = vector.load %arg9[%c0_71, %c0_72] : memref<128x128xf32, #tpu.memory_space<vmem>>, vector<128x128xf32>
    tpu.vector_store %arg9[%c0_71, %c0_72], %77 {strides = array<i32>} : memref<128x128xf32, #tpu.memory_space<vmem>>, vector<128x128xf32>,
    %c0_73 = arith.constant 0 : index
    %c0_74 = arith.constant 0 : index
    %79 = vector.load %arg9[%c0_73, %c0_74] : memref<128x128xf32, #tpu.memory_space<vmem>>, vector<128x128xf32>
    %c0_75 = arith.constant 0 : index
    %c0_76 = arith.constant 0 : index
    %80 = vector.load %arg7[%c0_75, %c0_76] : memref<1x128xf32, #tpu.memory_space<vmem>>, vector<1x128xf32>
    %81 = vector.broadcast %80 : vector<1x128xf32> to vector<128x128xf32>
    %82 = arith.addf %79, %81 : vector<128x128xf32>
    %cst_77 = arith.constant 0.000000e+00 : f32
    %83 = vector.broadcast %cst_77 : f32 to vector<128x128xf32>
    %84 = arith.maximumf %82, %83 : vector<128x128xf32>
    %85 = vector.shape_cast %84 : vector<128x128xf32> to vector<8x16x128xf32>
    %86 = vector.extract_strided_slice %85 {offsets = [0, 0, 0], sizes = [8, 8, 128], strides = [1, 1, 1]} : vector<8x16x128xf32> to vector<8x8x128xf32>
    %87 = arith.truncf %86 : vector<8x8x128xf32> to vector<8x8x128xbf16>
    %c0_78 = arith.constant 0 : index
    %c0_79 = arith.constant 0 : index
    %c0_80 = arith.constant 0 : index
    %c0_81 = arith.constant 0 : index
    %88 = vector.load %arg8[%c0_78, %c0_79, %c0_80, %c0_81] : memref<1x8x8x128xbf16, #tpu.memory_space<vmem>>, vector<1x8x8x128xbf16>
    %89 = vector.shape_cast %88 : vector<1x8x8x128xbf16> to vector<8x8x128xbf16>
    %90 = vector.shape_cast %87 : vector<8x8x128xbf16> to vector<1x8x8x128xbf16>
    tpu.vector_store %arg8[%c0_78, %c0_79, %c0_80, %c0_81], %90 {strides = array<i32>} : memref<1x8x8x128xbf16, #tpu.memory_space<vmem>>, vector<1x8x8x128xbf16>,
    return
  }
  func.func @transform_0(%arg0: i32, %arg1: i32) -> (i32, i32, i32) {
    %c0_i32 = arith.constant 0 : i32
    %c0_i32_0 = arith.constant 0 : i32
    %c0_i32_1 = arith.constant 0 : i32
    return %arg0, %c0_i32, %c0_i32_0 : i32, i32, i32
  }
  func.func @transform_1(%arg0: i32, %arg1: i32) -> (i32, i32, i32) {
    %c0_i32 = arith.constant 0 : i32
    %c0_i32_0 = arith.constant 0 : i32
    %c0_i32_1 = arith.constant 0 : i32
    return %arg0, %c0_i32, %c0_i32_0 : i32, i32, i32
  }
  func.func @transform_2(%arg0: i32, %arg1: i32) -> (i32, i32, i32) {
    %c0_i32 = arith.constant 0 : i32
    %c0_i32_0 = arith.constant 0 : i32
    %c0_i32_1 = arith.constant 0 : i32
    return %arg0, %c0_i32, %c0_i32_0 : i32, i32, i32
  }
  func.func @transform_3(%arg0: i32, %arg1: i32) -> (i32, i32, i32) {
    %c0_i32 = arith.constant 0 : i32
    %c0_i32_0 = arith.constant 0 : i32
    %c0_i32_1 = arith.constant 0 : i32
    return %arg0, %c0_i32, %c0_i32_0 : i32, i32, i32
  }
  func.func @transform_4(%arg0: i32, %arg1: i32) -> (i32, i32, i32) {
    %c0_i32 = arith.constant 0 : i32
    %c0_i32_0 = arith.constant 0 : i32
    %c0_i32_1 = arith.constant 0 : i32
    %c0_i32_2 = arith.constant 0 : i32
    return %c0_i32, %c0_i32_0, %c0_i32_1 : i32, i32, i32
  }
  func.func @transform_5(%arg0: i32, %arg1: i32) -> (i32, i32) {
    %c0_i32 = arith.constant 0 : i32
    %c0_i32_0 = arith.constant 0 : i32
    %c0_i32_1 = arith.constant 0 : i32
    return %c0_i32, %c0_i32_0 : i32, i32
  }
  func.func @transform_6(%arg0: i32, %arg1: i32) -> (i32, i32, i32, i32) {
    %c0_i32 = arith.constant 0 : i32
    %c0_i32_0 = arith.constant 0 : i32
    %c0_i32_1 = arith.constant 0 : i32
    return %arg0, %arg1, %c0_i32, %c0_i32_0 : i32, i32, i32, i32
  }
}

module attributes {stable_mosaic.version = 11 : i64} {
  func.func @_mm2_bn_relu_kernel(%arg0: i32, %arg1: i32, %arg2: memref<128x128xbf16, #tpu.memory_space<vmem>>, %arg3: memref<128x128xbf16, #tpu.memory_space<vmem>>, %arg4: memref<128x128xbf16, #tpu.memory_space<vmem>>, %arg5: memref<128x128xbf16, #tpu.memory_space<vmem>>, %arg6: memref<1x128xf32, #tpu.memory_space<vmem>>, %arg7: memref<128x128xf32, #tpu.memory_space<vmem>>, %arg8: memref<128x128xf32, #tpu.memory_space<vmem>>) attributes {dimension_semantics = [#tpu.dimension_semantics<parallel>, #tpu.dimension_semantics<parallel>], iteration_bounds = array<i64: 1, 1>, scalar_prefetch = 0 : i64, scratch_operands = 1 : i64, tpu.core_type = #tpu.core_type<tc>, window_params = [{transform_indices = @transform_0, window_bounds = array<i64: 128, 128>}, {transform_indices = @transform_1, window_bounds = array<i64: 128, 128>}, {transform_indices = @transform_2, window_bounds = array<i64: 128, 128>}, {transform_indices = @transform_3, window_bounds = array<i64: 128, 128>}, {transform_indices = @transform_4, window_bounds = array<i64: 1, 128>}, {transform_indices = @transform_5, window_bounds = array<i64: 128, 128>}]} {
    %c0 = arith.constant 0 : index
    %c0_0 = arith.constant 0 : index
    %0 = vector.load %arg2[%c0, %c0_0] : memref<128x128xbf16, #tpu.memory_space<vmem>>, vector<128x128xbf16>
    %c0_1 = arith.constant 0 : index
    %c0_2 = arith.constant 0 : index
    %1 = vector.load %arg4[%c0_1, %c0_2] : memref<128x128xbf16, #tpu.memory_space<vmem>>, vector<128x128xbf16>
    %cst = arith.constant dense<0.000000e+00> : vector<128x128xf32>
    %2 = tpu.matmul %0, %1, %cst {dimension_numbers = #tpu.dot_dimension_numbers<[1], [0], [0], [1], [0, 0, 1, 1], [], []>} : vector<128x128xbf16>, vector<128x128xbf16>, vector<128x128xf32> -> vector<128x128xf32>
    %c0_3 = arith.constant 0 : index
    %c0_4 = arith.constant 0 : index
    %3 = vector.load %arg8[%c0_3, %c0_4] : memref<128x128xf32, #tpu.memory_space<vmem>>, vector<128x128xf32>
    tpu.vector_store %arg8[%c0_3, %c0_4], %2 {strides = array<i32>} : memref<128x128xf32, #tpu.memory_space<vmem>>, vector<128x128xf32>,
    %c0_5 = arith.constant 0 : index
    %c0_6 = arith.constant 0 : index
    %4 = vector.load %arg8[%c0_5, %c0_6] : memref<128x128xf32, #tpu.memory_space<vmem>>, vector<128x128xf32>
    %c0_7 = arith.constant 0 : index
    %c0_8 = arith.constant 0 : index
    %5 = vector.load %arg3[%c0_7, %c0_8] : memref<128x128xbf16, #tpu.memory_space<vmem>>, vector<128x128xbf16>
    %c0_9 = arith.constant 0 : index
    %c0_10 = arith.constant 0 : index
    %6 = vector.load %arg5[%c0_9, %c0_10] : memref<128x128xbf16, #tpu.memory_space<vmem>>, vector<128x128xbf16>
    %cst_11 = arith.constant dense<0.000000e+00> : vector<128x128xf32>
    %7 = tpu.matmul %5, %6, %cst_11 {dimension_numbers = #tpu.dot_dimension_numbers<[1], [0], [0], [1], [0, 0, 1, 1], [], []>} : vector<128x128xbf16>, vector<128x128xbf16>, vector<128x128xf32> -> vector<128x128xf32>
    %8 = arith.addf %4, %7 : vector<128x128xf32>
    %c0_12 = arith.constant 0 : index
    %c0_13 = arith.constant 0 : index
    %9 = vector.load %arg8[%c0_12, %c0_13] : memref<128x128xf32, #tpu.memory_space<vmem>>, vector<128x128xf32>
    tpu.vector_store %arg8[%c0_12, %c0_13], %8 {strides = array<i32>} : memref<128x128xf32, #tpu.memory_space<vmem>>, vector<128x128xf32>,
    %c0_14 = arith.constant 0 : index
    %c0_15 = arith.constant 0 : index
    %10 = vector.load %arg8[%c0_14, %c0_15] : memref<128x128xf32, #tpu.memory_space<vmem>>, vector<128x128xf32>
    %c0_16 = arith.constant 0 : index
    %c0_17 = arith.constant 0 : index
    %11 = vector.load %arg6[%c0_16, %c0_17] : memref<1x128xf32, #tpu.memory_space<vmem>>, vector<1x128xf32>
    %12 = vector.broadcast %11 : vector<1x128xf32> to vector<128x128xf32>
    %13 = arith.addf %10, %12 : vector<128x128xf32>
    %cst_18 = arith.constant 0.000000e+00 : f32
    %14 = vector.broadcast %cst_18 : f32 to vector<128x128xf32>
    %15 = arith.maximumf %13, %14 : vector<128x128xf32>
    %c0_19 = arith.constant 0 : index
    %c0_20 = arith.constant 0 : index
    %16 = vector.load %arg7[%c0_19, %c0_20] : memref<128x128xf32, #tpu.memory_space<vmem>>, vector<128x128xf32>
    tpu.vector_store %arg7[%c0_19, %c0_20], %15 {strides = array<i32>} : memref<128x128xf32, #tpu.memory_space<vmem>>, vector<128x128xf32>,
    return
  }
  func.func @transform_0(%arg0: i32, %arg1: i32) -> (i32, i32) {
    %c0_i32 = arith.constant 0 : i32
    %c0_i32_0 = arith.constant 0 : i32
    return %arg0, %c0_i32 : i32, i32
  }
  func.func @transform_1(%arg0: i32, %arg1: i32) -> (i32, i32) {
    %c0_i32 = arith.constant 0 : i32
    %c0_i32_0 = arith.constant 0 : i32
    return %arg0, %c0_i32 : i32, i32
  }
  func.func @transform_2(%arg0: i32, %arg1: i32) -> (i32, i32) {
    %c0_i32 = arith.constant 0 : i32
    %c0_i32_0 = arith.constant 0 : i32
    return %c0_i32, %arg1 : i32, i32
  }
  func.func @transform_3(%arg0: i32, %arg1: i32) -> (i32, i32) {
    %c0_i32 = arith.constant 0 : i32
    %c0_i32_0 = arith.constant 0 : i32
    return %c0_i32, %arg1 : i32, i32
  }
  func.func @transform_4(%arg0: i32, %arg1: i32) -> (i32, i32) {
    %c0_i32 = arith.constant 0 : i32
    %c0_i32_0 = arith.constant 0 : i32
    return %c0_i32, %arg1 : i32, i32
  }
  func.func @transform_5(%arg0: i32, %arg1: i32) -> (i32, i32) {
    %c0_i32 = arith.constant 0 : i32
    return %arg0, %arg1 : i32, i32
  }
}

</mosaic_0001>

<llo_original>
// kernel: _lambda_.3
$region0: #{_lambda_.3}
  #allocation0 [shape = 'u32[]', space=smem, size = 0x4, offset = 0x4, fixed_abs, tag = 'smem constant byte address 0x4 - core index']
  #allocation1 [shape = 'u32[144,128]{1,0:T(1,128)}', space=vmem, size = 0x12000, scoped, tag = 'internal scratch']
  #allocation2 [shape = 'f32[256,128]{1,0:T(8,128)}', space=vmem, size = 0x20000, scoped, tag = 'scratch operand']
  %s0 = inlined_call_operand.vmem [shape: bf16[512,128], index: 0, kind: input, shape index: {}]
  %s1 = inlined_call_operand.vmem [shape: bf16[128,128], index: 1, kind: input, shape index: {}]
  %s2 = inlined_call_operand.vmem [shape: f32[1,128], index: 2, kind: input, shape index: {}]
  %s3 = inlined_call_operand.vmem [shape: bf16[512,128], index: 3, kind: output, shape index: {}]
  %s4 = sld [smem:[#allocation0]]
  $region53: #{_lambda_.3} parent=0
    _
  %s6 = ssub.s32 1, %s4
  %s7 = scalar_select 0, %s6, %s4
  loop: start=0, step=1, limit=4
  $region2: #{_lambda_.3} parent=0 // loop_pre_header
    _
  $region3: #{_lambda_.3} parent=0 // loop_header
    %s9 = sphi 0, %s13
    %p10 = scmp.ge.s32.totalorder %s9, 4
    %s16 = sphi 0, %s35
    %s17 = sphi 0, %s31
    %s18 = sphi 0, %s27
    %s19 = sphi 0, %s16
    %s20 = sphi 0, %s17
    %s21 = sphi 0, %s18
    %s22 = sphi 0, %s19
    %s23 = sphi 0, %s20
    %s24 = sphi 0, %s21
    %s40 = sphi 0, %s42
    %s43 = sphi 0, %s40
    %s44 = sphi 0, %s43
    %s60 = sphi 0, %s44
    %s68 = sphi 0, %s70
    %s71 = sphi 0, %s68
    %s72 = sphi 0, %s71
    %s88 = sphi 0, %s72
    %s94 = sphi 0, %s96
    %s97 = sphi 0, %s94
    %s98 = sphi 0, %s97
    %s114 = sphi 0, %s98
    %s122 = sphi 0, %s124
    %s125 = sphi 0, %s122
    %s126 = sphi 0, %s125
    %s142 = sphi 0, %s126
  $region4: #{_lambda_.3} parent=0 // loop_header_branch
    %12 = sbr.rel (%p10) target = $region8
  $region5: #{_lambda_.3} parent=0 // loop_body
    %s14 = ssub.s32 %s9, 1
    %s15 = ssub.s32 %s9, 2
    %s25 = sadd.s32 1, %s18
    %p26 = scmp.ge.s32.totalorder %s25, 1
    %s27 = scalar_select %p26, 0, %s25
    %s28 = sadd.s32 1, %s17
    %s29 = scalar_select %p26, %s28, %s17
    %p30 = scmp.ge.s32.totalorder %s29, 1
    %s31 = scalar_select %p30, 0, %s29
    %s32 = sadd.s32 1, %s16
    %s33 = scalar_select %p30, %s32, %s16
    %p34 = scmp.ge.s32.totalorder %s33, 2
    %s35 = scalar_select %p34, 0, %s33
    %s36 = ssub.s32 %s16, %s35
    %s37 = ssub.s32 %s18, %s27
    %s38 = sor.u32 %s36, %s37
    %p39 = scmp.eq.s32.totalorder %s38, 0
    %s41 = sadd.s32 %s40, 1
    %s42 = scalar_select %p39, %s40, %s41
    %p45 = pneg %p39
    %p46 = scmp.eq.s32.totalorder %s9, 1
    %p47 = por %p45, %p46
    %p48 = scmp.ne.s32.totalorder %s40, %s43
    %p49 = scmp.eq.s32.totalorder %s9, 0
    %p50 = por %p48, %p49
    %p51 = scmp.ne.s32.totalorder %s40, %s43
    %p52 = scmp.eq.s32.totalorder %s14, 1
    %p53 = por %p51, %p52
    %p54 = scmp.ne.s32.totalorder %s43, %s44
    %p55 = scmp.eq.s32.totalorder %s14, 0
    %p56 = por %p54, %p55
    %p57 = scmp.ne.s32.totalorder %s43, %s44
    %p58 = scmp.eq.s32.totalorder %s15, 1
    %p59 = por %p57, %p58
    %p61 = scmp.ne.s32.totalorder %s44, %s60
    %p62 = scmp.eq.s32.totalorder %s15, 0
    %p63 = por %p61, %p62
    %s64 = ssub.s32 %s18, %s27
    %s65 = ssub.s32 %s17, %s31
    %s66 = sor.u32 %s64, %s65
    %p67 = scmp.eq.s32.totalorder %s66, 0
    %s69 = sadd.s32 %s68, 1
    %s70 = scalar_select %p67, %s68, %s69
    %p73 = pneg %p67
    %p74 = scmp.eq.s32.totalorder %s9, 1
    %p75 = por %p73, %p74
    %p76 = scmp.ne.s32.totalorder %s68, %s71
    %p77 = scmp.eq.s32.totalorder %s9, 0
    %p78 = por %p76, %p77
    %p79 = scmp.ne.s32.totalorder %s68, %s71
    %p80 = scmp.eq.s32.totalorder %s14, 1
    %p81 = por %p79, %p80
    %p82 = scmp.ne.s32.totalorder %s71, %s72
    %p83 = scmp.eq.s32.totalorder %s14, 0
    %p84 = por %p82, %p83
    %p85 = scmp.ne.s32.totalorder %s71, %s72
    %p86 = scmp.eq.s32.totalorder %s15, 1
    %p87 = por %p85, %p86
    %p89 = scmp.ne.s32.totalorder %s72, %s88
    %p90 = scmp.eq.s32.totalorder %s15, 0
    %p91 = por %p89, %p90
    %s92 = ssub.s32 %s17, %s31
    %p93 = scmp.eq.s32.totalorder %s92, 0
    %s95 = sadd.s32 %s94, 1
    %s96 = scalar_select %p93, %s94, %s95
    %p99 = pneg %p93
    %p100 = scmp.eq.s32.totalorder %s9, 1
    %p101 = por %p99, %p100
    %p102 = scmp.ne.s32.totalorder %s94, %s97
    %p103 = scmp.eq.s32.totalorder %s9, 0
    %p104 = por %p102, %p103
    %p105 = scmp.ne.s32.totalorder %s94, %s97
    %p106 = scmp.eq.s32.totalorder %s14, 1
    %p107 = por %p105, %p106
    %p108 = scmp.ne.s32.totalorder %s97, %s98
    %p109 = scmp.eq.s32.totalorder %s14, 0
    %p110 = por %p108, %p109
    %p111 = scmp.ne.s32.totalorder %s97, %s98
    %p112 = scmp.eq.s32.totalorder %s15, 1
    %p113 = por %p111, %p112
    %p115 = scmp.ne.s32.totalorder %s98, %s114
    %p116 = scmp.eq.s32.totalorder %s15, 0
    %p117 = por %p115, %p116
    %s118 = ssub.s32 %s16, %s35
    %s119 = ssub.s32 %s17, %s31
    %s120 = sor.u32 %s118, %s119
    %p121 = scmp.eq.s32.totalorder %s120, 0
    %s123 = sadd.s32 %s122, 1
    %s124 = scalar_select %p121, %s122, %s123
    %p127 = pneg %p121
    %p128 = scmp.eq.s32.totalorder %s9, 1
    %p129 = por %p127, %p128
    %p130 = scmp.ne.s32.totalorder %s122, %s125
    %p131 = scmp.eq.s32.totalorder %s9, 0
    %p132 = por %p130, %p131
    %p133 = scmp.ne.s32.totalorder %s122, %s125
    %p134 = scmp.eq.s32.totalorder %s14, 1
    %p135 = por %p133, %p134
    %p136 = scmp.ne.s32.totalorder %s125, %s126
    %p137 = scmp.eq.s32.totalorder %s14, 0
    %p138 = por %p136, %p137
    %p139 = scmp.ne.s32.totalorder %s125, %s126
    %p140 = scmp.eq.s32.totalorder %s15, 1
    %p141 = por %p139, %p140
    %p143 = scmp.ne.s32.totalorder %s126, %s142
    %p144 = scmp.eq.s32.totalorder %s15, 0
    %p145 = por %p143, %p144
    %p146 = scmp.le.s32.totalorder 1, %s9
    %p147 = scmp.lt.s32.totalorder %s9, 3
    %p148 = pnand %p146, %p147
    %p149 = pneg %p148
    // Predicated region
    $region9: #{_lambda_.3} parent=5 // pred_check
      _
    $region10: #{_lambda_.3} parent=5 // pred_check_branch
      %151 = sbr.rel (%p148) target = $region12
    $region11: #{_lambda_.3} parent=5 // pred_region
      %s152 = ssub.s32 %s9, 1
      // Predicated region
      $region13: #{_lambda_.3} parent=11 // pred_check
        %p153 = pneg %p84
      $region14: #{_lambda_.3} parent=11 // pred_check_branch
        %155 = sbr.rel (%p153) target = $region16
      $region15: #{_lambda_.3} parent=11 // pred_region
        %s156 = smul.u32 16, %s21
        %p157 = scmp.lt.s32.totalorder %s156, 15
        %s158 = scalar_select %p157, %s156, 15
        %p159 = scmp.lt.s32.totalorder %s20, 0
        %s160 = scalar_select %p159, %s20, 0
        %s161 = sadd.s32 %s160, %s158
        %s162 = smul.addr %s161, 4
        %s163 = scalar_lea.vmem %s1, %s162
        %s164 = smul.u32 16, %s21
      $region16: #{_lambda_.3} parent=11 // pred_fallthru
        _
      // Predicated region
      $region17: #{_lambda_.3} parent=11 // pred_check
        %p165 = pneg %p110
      $region18: #{_lambda_.3} parent=11 // pred_check_branch
        %167 = sbr.rel (%p165) target = $region20
      $region19: #{_lambda_.3} parent=11 // pred_region
        %p168 = scmp.lt.s32.totalorder %s20, 0
        %s169 = scalar_select %p168, %s20, 0
        %s170 = scalar_lea.vmem %s2, %s169
      $region20: #{_lambda_.3} parent=11 // pred_fallthru
        _
    $region12: #{_lambda_.3} parent=5 // pred_fallthru
      _
    %p171 = scmp.lt.s32.totalorder %s9, 2
    // Predicated region
    $region21: #{_lambda_.3} parent=5 // pred_check
      %p172 = pneg %p171
    $region22: #{_lambda_.3} parent=5 // pred_check_branch
      %174 = sbr.rel (%p172) target = $region24
    $region23: #{_lambda_.3} parent=5 // pred_region
      // Predicated region
      $region25: #{_lambda_.3} parent=23 // pred_check
        %p175 = pneg %p50
      $region26: #{_lambda_.3} parent=23 // pred_check_branch
        %177 = sbr.rel (%p175) target = $region28
      $region27: #{_lambda_.3} parent=23 // pred_region
        %s178 = smul.u32 32, %s16
        %p179 = scmp.lt.s32.totalorder %s178, 63
        %s180 = scalar_select %p179, %s178, 63
        %p181 = scmp.lt.s32.totalorder %s18, 0
        %s182 = scalar_select %p181, %s18, 0
        %s183 = sadd.s32 %s182, %s180
        %s184 = smul.addr %s183, 4
        %s185 = scalar_lea.vmem %s0, %s184
        %s186 = smul.u32 32, %s16
      $region28: #{_lambda_.3} parent=23 // pred_fallthru
        _
    $region24: #{_lambda_.3} parent=5 // pred_fallthru
      _
    %p187 = scmp.le.s32.totalorder 1, %s9
    %p188 = scmp.lt.s32.totalorder %s9, 3
    %p189 = pnand %p187, %p188
    %p190 = pneg %p189
    // Predicated region
    $region29: #{_lambda_.3} parent=5 // pred_check
      _
    $region30: #{_lambda_.3} parent=5 // pred_check_branch
      %192 = sbr.rel (%p189) target = $region32
    $region31: #{_lambda_.3} parent=5 // pred_region
      %s193 = ssub.s32 %s9, 1
      %s194 = smul.u32 32, %s19
      %p195 = scmp.lt.s32.totalorder %s194, 63
      %s196 = scalar_select %p195, %s194, 63
      %p197 = scmp.lt.s32.totalorder %s21, 0
      %s198 = scalar_select %p197, %s21, 0
      %s199 = sadd.s32 %s198, %s196
      %s200 = smul.addr %s199, 4
      %s201 = scalar_lea.vmem %s0, %s200
      %p202 = pneg %p56
      %p203 = pneg %p53
      %s204 = smul.u32 16, %s21
      %p205 = scmp.lt.s32.totalorder %s204, 15
      %s206 = scalar_select %p205, %s204, 15
      %p207 = scmp.lt.s32.totalorder %s20, 0
      %s208 = scalar_select %p207, %s20, 0
      %s209 = sadd.s32 %s208, %s206
      %s210 = smul.addr %s209, 4
      %s211 = scalar_lea.vmem %s1, %s210
      %p212 = pneg %p84
      %p213 = pneg %p81
      %p214 = scmp.lt.s32.totalorder %s20, 0
      %s215 = scalar_select %p214, %s20, 0
      %s216 = scalar_lea.vmem %s2, %s215
      %p217 = pneg %p110
      %p218 = pneg %p107
      %p219 = pneg %p138
      %p220 = pneg %p135
      %s221 = smul.u32 32, %s19
      %p222 = scmp.lt.s32.totalorder %s221, 63
      %s223 = scalar_select %p222, %s221, 63
      %p224 = scmp.lt.s32.totalorder %s20, 0
      %s225 = scalar_select %p224, %s20, 0
      %s226 = sadd.s32 %s225, %s223
      %s227 = smul.addr %s226, 4
      %s228 = scalar_lea.vmem %s3, %s227
      %s229 = smul.u32 32, %s19
      %p230 = scmp.lt.s32.totalorder %s229, 63
      %s231 = scalar_select %p230, %s229, 63
      %p232 = scmp.lt.s32.totalorder %s21, 0
      %s233 = scalar_select %p232, %s21, 0
      %s234 = sadd.s32 %s233, %s231
      %s235 = smul.addr %s234, 4
      %s236 = scalar_lea.vmem %s0, %s235
      %s237 = smul.u32 32, %s19
      %s238 = smul.u32 16, %s21
      %p239 = scmp.lt.s32.totalorder %s238, 15
      %s240 = scalar_select %p239, %s238, 15
      %p241 = scmp.lt.s32.totalorder %s20, 0
      %s242 = scalar_select %p241, %s20, 0
      %s243 = sadd.s32 %s242, %s240
      %s244 = smul.addr %s243, 4
      %s245 = scalar_lea.vmem %s1, %s244
      %s246 = smul.u32 16, %s21
      %p247 = scmp.lt.s32.totalorder %s20, 0
      %s248 = scalar_select %p247, %s20, 0
      %s249 = scalar_lea.vmem %s2, %s248
      %s250 = smul.u32 32, %s19
      %p251 = scmp.lt.s32.totalorder %s250, 63
      %s252 = scalar_select %p251, %s250, 63
      %p253 = scmp.lt.s32.totalorder %s20, 0
      %s254 = scalar_select %p253, %s20, 0
      %s255 = sadd.s32 %s254, %s252
      %s256 = smul.addr %s255, 4
      %s257 = scalar_lea.vmem %s3, %s256
      %s258 = smul.u32 32, %s19
      %p260 = scmp.eq.s32.totalorder %s21, 0
      // Predicated region
      $region33: #{_lambda_.3} parent=31 // pred_check
        %p261 = pneg %p260
      $region34: #{_lambda_.3} parent=31 // pred_check_branch
        %263 = sbr.rel (%p261) target = $region36
      $region35: #{_lambda_.3} parent=31 // pred_region
        %264 = vst [vmem:[#allocation2] sm:$0xff] 0.0
        %265 = vst [vmem:[#allocation2 + $0x8] sm:$0xff] 0.0
        %266 = vst [vmem:[#allocation2 + $0x10] sm:$0xff] 0.0
        %267 = vst [vmem:[#allocation2 + $0x18] sm:$0xff] 0.0
        %268 = vst [vmem:[#allocation2 + $0x20] sm:$0xff] 0.0
        %269 = vst [vmem:[#allocation2 + $0x28] sm:$0xff] 0.0
        %270 = vst [vmem:[#allocation2 + $0x30] sm:$0xff] 0.0
        %271 = vst [vmem:[#allocation2 + $0x38] sm:$0xff] 0.0
        %272 = vst [vmem:[#allocation2 + $0x40] sm:$0xff] 0.0
        %273 = vst [vmem:[#allocation2 + $0x48] sm:$0xff] 0.0
        %274 = vst [vmem:[#allocation2 + $0x50] sm:$0xff] 0.0
        %275 = vst [vmem:[#allocation2 + $0x58] sm:$0xff] 0.0
        %276 = vst [vmem:[#allocation2 + $0x60] sm:$0xff] 0.0
        %277 = vst [vmem:[#allocation2 + $0x68] sm:$0xff] 0.0
        %278 = vst [vmem:[#allocation2 + $0x70] sm:$0xff] 0.0
        %279 = vst [vmem:[#allocation2 + $0x78] sm:$0xff] 0.0
        %280 = vst [vmem:[#allocation2 + $0x80] sm:$0xff] 0.0
        %281 = vst [vmem:[#allocation2 + $0x88] sm:$0xff] 0.0
        %282 = vst [vmem:[#allocation2 + $0x90] sm:$0xff] 0.0
        %283 = vst [vmem:[#allocation2 + $0x98] sm:$0xff] 0.0
        %284 = vst [vmem:[#allocation2 + $0xa0] sm:$0xff] 0.0
        %285 = vst [vmem:[#allocation2 + $0xa8] sm:$0xff] 0.0
        %286 = vst [vmem:[#allocation2 + $0xb0] sm:$0xff] 0.0
        %287 = vst [vmem:[#allocation2 + $0xb8] sm:$0xff] 0.0
        %288 = vst [vmem:[#allocation2 + $0xc0] sm:$0xff] 0.0
        %289 = vst [vmem:[#allocation2 + $0xc8] sm:$0xff] 0.0
        %290 = vst [vmem:[#allocation2 + $0xd0] sm:$0xff] 0.0
        %291 = vst [vmem:[#allocation2 + $0xd8] sm:$0xff] 0.0
        %292 = vst [vmem:[#allocation2 + $0xe0] sm:$0xff] 0.0
        %293 = vst [vmem:[#allocation2 + $0xe8] sm:$0xff] 0.0
        %294 = vst [vmem:[#allocation2 + $0xf0] sm:$0xff] 0.0
        %295 = vst [vmem:[#allocation2 + $0xf8] sm:$0xff] 0.0
      $region36: #{_lambda_.3} parent=31 // pred_fallthru
        _
      %v296 = vld [vmem:[#allocation2] sm:$0xff]
      %v297 = vld [vmem:[#allocation2 + $0x8] sm:$0xff]
      %v298 = vld [vmem:[#allocation2 + $0x10] sm:$0xff]
      %v299 = vld [vmem:[#allocation2 + $0x18] sm:$0xff]
      %v300 = vld [vmem:[#allocation2 + $0x20] sm:$0xff]
      %v301 = vld [vmem:[#allocation2 + $0x28] sm:$0xff]
      %v302 = vld [vmem:[#allocation2 + $0x30] sm:$0xff]
      %v303 = vld [vmem:[#allocation2 + $0x38] sm:$0xff]
      %v304 = vld [vmem:[#allocation2 + $0x40] sm:$0xff]
      %v305 = vld [vmem:[#allocation2 + $0x48] sm:$0xff]
      %v306 = vld [vmem:[#allocation2 + $0x50] sm:$0xff]
      %v307 = vld [vmem:[#allocation2 + $0x58] sm:$0xff]
      %v308 = vld [vmem:[#allocation2 + $0x60] sm:$0xff]
      %v309 = vld [vmem:[#allocation2 + $0x68] sm:$0xff]
      %v310 = vld [vmem:[#allocation2 + $0x70] sm:$0xff]
      %v311 = vld [vmem:[#allocation2 + $0x78] sm:$0xff]
      %v312 = vld [vmem:[#allocation2 + $0x80] sm:$0xff]
      %v313 = vld [vmem:[#allocation2 + $0x88] sm:$0xff]
      %v314 = vld [vmem:[#allocation2 + $0x90] sm:$0xff]
      %v315 = vld [vmem:[#allocation2 + $0x98] sm:$0xff]
      %v316 = vld [vmem:[#allocation2 + $0xa0] sm:$0xff]
      %v317 = vld [vmem:[#allocation2 + $0xa8] sm:$0xff]
      %v318 = vld [vmem:[#allocation2 + $0xb0] sm:$0xff]
      %v319 = vld [vmem:[#allocation2 + $0xb8] sm:$0xff]
      %v320 = vld [vmem:[#allocation2 + $0xc0] sm:$0xff]
      %v321 = vld [vmem:[#allocation2 + $0xc8] sm:$0xff]
      %v322 = vld [vmem:[#allocation2 + $0xd0] sm:$0xff]
      %v323 = vld [vmem:[#allocation2 + $0xd8] sm:$0xff]
      %v324 = vld [vmem:[#allocation2 + $0xe0] sm:$0xff]
      %v325 = vld [vmem:[#allocation2 + $0xe8] sm:$0xff]
      %v326 = vld [vmem:[#allocation2 + $0xf0] sm:$0xff]
      %v327 = vld [vmem:[#allocation2 + $0xf8] sm:$0xff]
      %v328 = vld [vmem:[%s236] sm:$0xf]
      %v329 = vld [vmem:[%s236 + $0x4] sm:$0xf]
      %v330 = vld [vmem:[%s236 + $0x8] sm:$0xf]
      %v331 = vld [vmem:[%s236 + $0xc] sm:$0xf]
      %v332 = vld [vmem:[%s236 + $0x10] sm:$0xf]
      %v333 = vld [vmem:[%s236 + $0x14] sm:$0xf]
      %v334 = vld [vmem:[%s236 + $0x18] sm:$0xf]
      %v335 = vld [vmem:[%s236 + $0x1c] sm:$0xf]
      %v336 = vld [vmem:[%s236 + $0x20] sm:$0xf]
      %v337 = vld [vmem:[%s236 + $0x24] sm:$0xf]
      %v338 = vld [vmem:[%s236 + $0x28] sm:$0xf]
      %v339 = vld [vmem:[%s236 + $0x2c] sm:$0xf]
      %v340 = vld [vmem:[%s236 + $0x30] sm:$0xf]
      %v341 = vld [vmem:[%s236 + $0x34] sm:$0xf]
      %v342 = vld [vmem:[%s236 + $0x38] sm:$0xf]
      %v343 = vld [vmem:[%s236 + $0x3c] sm:$0xf]
      %v344 = vld [vmem:[%s236 + $0x40] sm:$0xf]
      %v345 = vld [vmem:[%s236 + $0x44] sm:$0xf]
      %v346 = vld [vmem:[%s236 + $0x48] sm:$0xf]
      %v347 = vld [vmem:[%s236 + $0x4c] sm:$0xf]
      %v348 = vld [vmem:[%s236 + $0x50] sm:$0xf]
      %v349 = vld [vmem:[%s236 + $0x54] sm:$0xf]
      %v350 = vld [vmem:[%s236 + $0x58] sm:$0xf]
      %v351 = vld [vmem:[%s236 + $0x5c] sm:$0xf]
      %v352 = vld [vmem:[%s236 + $0x60] sm:$0xf]
      %v353 = vld [vmem:[%s236 + $0x64] sm:$0xf]
      %v354 = vld [vmem:[%s236 + $0x68] sm:$0xf]
      %v355 = vld [vmem:[%s236 + $0x6c] sm:$0xf]
      %v356 = vld [vmem:[%s236 + $0x70] sm:$0xf]
      %v357 = vld [vmem:[%s236 + $0x74] sm:$0xf]
      %v358 = vld [vmem:[%s236 + $0x78] sm:$0xf]
      %v359 = vld [vmem:[%s236 + $0x7c] sm:$0xf]
      %v360 = vld [vmem:[%s245] sm:$0xf]
      %v361 = vld [vmem:[%s245 + $0x4] sm:$0xf]
      %v362 = vld [vmem:[%s245 + $0x8] sm:$0xf]
      %v363 = vld [vmem:[%s245 + $0xc] sm:$0xf]
      %v364 = vld [vmem:[%s245 + $0x10] sm:$0xf]
      %v365 = vld [vmem:[%s245 + $0x14] sm:$0xf]
      %v366 = vld [vmem:[%s245 + $0x18] sm:$0xf]
      %v367 = vld [vmem:[%s245 + $0x1c] sm:$0xf]
      %v368 = vld [vmem:[%s245 + $0x20] sm:$0xf]
      %v369 = vld [vmem:[%s245 + $0x24] sm:$0xf]
      %v370 = vld [vmem:[%s245 + $0x28] sm:$0xf]
      %v371 = vld [vmem:[%s245 + $0x2c] sm:$0xf]
      %v372 = vld [vmem:[%s245 + $0x30] sm:$0xf]
      %v373 = vld [vmem:[%s245 + $0x34] sm:$0xf]
      %v374 = vld [vmem:[%s245 + $0x38] sm:$0xf]
      %v375 = vld [vmem:[%s245 + $0x3c] sm:$0xf]
      %v408 = vunpack.c.l.b16 %v328
      %v409 = vunpack.c.l.b16 %v329
      %v410 = vunpack.c.l.b16 %v330
      %v411 = vunpack.c.l.b16 %v331
      %v412 = vunpack.c.l.b16 %v332
      %v413 = vunpack.c.l.b16 %v333
      %v414 = vunpack.c.l.b16 %v334
      %v415 = vunpack.c.l.b16 %v335
      %v416 = vunpack.c.l.b16 %v336
      %v417 = vunpack.c.l.b16 %v337
      %v418 = vunpack.c.l.b16 %v338
      %v419 = vunpack.c.l.b16 %v339
      %v420 = vunpack.c.l.b16 %v340
      %v421 = vunpack.c.l.b16 %v341
      %v422 = vunpack.c.l.b16 %v342
      %v423 = vunpack.c.l.b16 %v343
      %v424 = vunpack.c.l.b16 %v344
      %v425 = vunpack.c.l.b16 %v345
      %v426 = vunpack.c.l.b16 %v346
      %v427 = vunpack.c.l.b16 %v347
      %v428 = vunpack.c.l.b16 %v348
      %v429 = vunpack.c.l.b16 %v349
      %v430 = vunpack.c.l.b16 %v350
      %v431 = vunpack.c.l.b16 %v351
      %v432 = vunpack.c.l.b16 %v352
      %v433 = vunpack.c.l.b16 %v353
      %v434 = vunpack.c.l.b16 %v354
      %v435 = vunpack.c.l.b16 %v355
      %v436 = vunpack.c.l.b16 %v356
      %v437 = vunpack.c.l.b16 %v357
      %v438 = vunpack.c.l.b16 %v358
      %v439 = vunpack.c.l.b16 %v359
      %v440 = vpack.c.b16 %v409, %v408
      %v441 = vpack.c.b16 %v411, %v410
      %v442 = vpack.c.b16 %v413, %v412
      %v443 = vpack.c.b16 %v415, %v414
      %v444 = vpack.c.b16 %v417, %v416
      %v445 = vpack.c.b16 %v419, %v418
      %v446 = vpack.c.b16 %v421, %v420
      %v447 = vpack.c.b16 %v423, %v422
      %v448 = vpack.c.b16 %v425, %v424
      %v449 = vpack.c.b16 %v427, %v426
      %v450 = vpack.c.b16 %v429, %v428
      %v451 = vpack.c.b16 %v431, %v430
      %v452 = vpack.c.b16 %v433, %v432
      %v453 = vpack.c.b16 %v435, %v434
      %v454 = vpack.c.b16 %v437, %v436
      %v455 = vpack.c.b16 %v439, %v438
      %v488 = vunpack.c.l.b16 %v360
      %v489 = vunpack.c.l.b16 %v361
      %v490 = vunpack.c.l.b16 %v362
      %v491 = vunpack.c.l.b16 %v363
      %v492 = vunpack.c.l.b16 %v364
      %v493 = vunpack.c.l.b16 %v365
      %v494 = vunpack.c.l.b16 %v366
      %v495 = vunpack.c.l.b16 %v367
      %v496 = vunpack.c.l.b16 %v368
      %v497 = vunpack.c.l.b16 %v369
      %v498 = vunpack.c.l.b16 %v370
      %v499 = vunpack.c.l.b16 %v371
      %v500 = vunpack.c.l.b16 %v372
      %v501 = vunpack.c.l.b16 %v373
      %v502 = vunpack.c.l.b16 %v374
      %v503 = vunpack.c.l.b16 %v375
      %v504 = vpack.c.b16 %v489, %v488
      %v505 = vpack.c.b16 %v491, %v490
      %v506 = vpack.c.b16 %v493, %v492
      %v507 = vpack.c.b16 %v495, %v494
      %v508 = vpack.c.b16 %v497, %v496
      %v509 = vpack.c.b16 %v499, %v498
      %v510 = vpack.c.b16 %v501, %v500
      %v511 = vpack.c.b16 %v503, %v502
      %520 = vmatprep.subr.bf16.mxu0 0
      %521 = vmatpush1.bf16.msra.mxu0 %v504
      %522 = vmatprep.subr.bf16.mxu0 0
      %523 = vmatpush1.bf16.msra.mxu0 %v505
      %524 = vmatprep.subr.bf16.mxu0 0
      %525 = vmatpush1.bf16.msra.mxu0 %v506
      %526 = vmatprep.subr.bf16.mxu0 0
      %527 = vmatpush1.bf16.msra.mxu0 %v507
      %528 = vmatprep.subr.bf16.mxu0 0
      %529 = vmatpush1.bf16.msra.mxu0 %v508
      %530 = vmatprep.subr.bf16.mxu0 0
      %531 = vmatpush1.bf16.msra.mxu0 %v509
      %532 = vmatprep.subr.bf16.mxu0 0
      %533 = vmatpush1.bf16.msra.mxu0 %v510
      %534 = vmatprep.subr.bf16.mxu0 0
      %535 = vmatpush1.bf16.msra.mxu0 %v511
      %536 = vmatprep.subr.bf16.mxu0 0
      %537 = vmatpush1.bf16.msra.mxu0 0
      %538 = vmatprep.subr.bf16.mxu0 0
      %539 = vmatpush1.bf16.msra.mxu0 0
      %540 = vmatprep.subr.bf16.mxu0 0
      %541 = vmatpush1.bf16.msra.mxu0 0
      %542 = vmatprep.subr.bf16.mxu0 0
      %543 = vmatpush1.bf16.msra.mxu0 0
      %544 = vmatprep.subr.bf16.mxu0 0
      %545 = vmatpush1.bf16.msra.mxu0 0
      %546 = vmatprep.subr.bf16.mxu0 0
      %547 = vmatpush1.bf16.msra.mxu0 0
      %548 = vmatprep.subr.bf16.mxu0 0
      %549 = vmatpush1.bf16.msra.mxu0 0
      %550 = vmatprep.subr.bf16.mxu0 0
      %551 = vmatpush1.bf16.msra.mxu0 0
      %552 = vmatprep.mubr.bf16.mxu0 0
      %553 = vmatmul.mubr.bf16.gmra.mrb[0].mxu0 %v440
      %v554 = vpop.f32.mrb[0].mxu0
      %v555 = vadd.f32 0.0, %v554
      %v556 = vpop.f32.mrb[0].mxu0
      %v557 = vpop.f32.mrb[0].mxu0
      %v558 = vadd.f32 0.0, %v557
      %v559 = vpop.f32.mrb[0].mxu0
      %560 = vmatprep.mubr.bf16.mxu0 0
      %561 = vmatmul.mubr.bf16.gmra.mrb[0].mxu0 %v441
      %v562 = vpop.f32.mrb[0].mxu0
      %v563 = vadd.f32 0.0, %v562
      %v564 = vpop.f32.mrb[0].mxu0
      %v565 = vpop.f32.mrb[0].mxu0
      %v566 = vadd.f32 0.0, %v565
      %v567 = vpop.f32.mrb[0].mxu0
      %568 = vmatprep.mubr.bf16.mxu0 0
      %569 = vmatmul.mubr.bf16.gmra.mrb[0].mxu0 %v442
      %v570 = vpop.f32.mrb[0].mxu0
      %v571 = vadd.f32 0.0, %v570
      %v572 = vpop.f32.mrb[0].mxu0
      %v573 = vpop.f32.mrb[0].mxu0
      %v574 = vadd.f32 0.0, %v573
      %v575 = vpop.f32.mrb[0].mxu0
      %576 = vmatprep.mubr.bf16.mxu0 0
      %577 = vmatmul.mubr.bf16.gmra.mrb[0].mxu0 %v443
      %v578 = vpop.f32.mrb[0].mxu0
      %v579 = vadd.f32 0.0, %v578
      %v580 = vpop.f32.mrb[0].mxu0
      %v581 = vpop.f32.mrb[0].mxu0
      %v582 = vadd.f32 0.0, %v581
      %v583 = vpop.f32.mrb[0].mxu0
      %584 = vmatprep.mubr.bf16.mxu0 0
      %585 = vmatmul.mubr.bf16.gmra.mrb[0].mxu0 %v444
      %v586 = vpop.f32.mrb[0].mxu0
      %v587 = vadd.f32 0.0, %v586
      %v588 = vpop.f32.mrb[0].mxu0
      %v589 = vpop.f32.mrb[0].mxu0
      %v590 = vadd.f32 0.0, %v589
      %v591 = vpop.f32.mrb[0].mxu0
      %592 = vmatprep.mubr.bf16.mxu0 0
      %593 = vmatmul.mubr.bf16.gmra.mrb[0].mxu0 %v445
      %v594 = vpop.f32.mrb[0].mxu0
      %v595 = vadd.f32 0.0, %v594
      %v596 = vpop.f32.mrb[0].mxu0
      %v597 = vpop.f32.mrb[0].mxu0
      %v598 = vadd.f32 0.0, %v597
      %v599 = vpop.f32.mrb[0].mxu0
      %600 = vmatprep.mubr.bf16.mxu0 0
      %601 = vmatmul.mubr.bf16.gmra.mrb[0].mxu0 %v446
      %v602 = vpop.f32.mrb[0].mxu0
      %v603 = vadd.f32 0.0, %v602
      %v604 = vpop.f32.mrb[0].mxu0
      %v605 = vpop.f32.mrb[0].mxu0
      %v606 = vadd.f32 0.0, %v605
      %v607 = vpop.f32.mrb[0].mxu0
      %608 = vmatprep.mubr.bf16.mxu0 0
      %609 = vmatmul.mubr.bf16.gmra.mrb[0].mxu0 %v447
      %v610 = vpop.f32.mrb[0].mxu0
      %v611 = vadd.f32 0.0, %v610
      %v612 = vpop.f32.mrb[0].mxu0
      %v613 = vpop.f32.mrb[0].mxu0
      %v614 = vadd.f32 0.0, %v613
      %v615 = vpop.f32.mrb[0].mxu0
      %616 = vmatprep.mubr.bf16.mxu0 0
      %617 = vmatmul.mubr.bf16.gmra.mrb[0].mxu0 %v448
      %v618 = vpop.f32.mrb[0].mxu0
      %v619 = vadd.f32 0.0, %v618
      %v620 = vpop.f32.mrb[0].mxu0
      %v621 = vpop.f32.mrb[0].mxu0
      %v622 = vadd.f32 0.0, %v621
      %v623 = vpop.f32.mrb[0].mxu0
      %624 = vmatprep.mubr.bf16.mxu0 0
      %625 = vmatmul.mubr.bf16.gmra.mrb[0].mxu0 %v449
      %v626 = vpop.f32.mrb[0].mxu0
      %v627 = vadd.f32 0.0, %v626
      %v628 = vpop.f32.mrb[0].mxu0
      %v629 = vpop.f32.mrb[0].mxu0
      %v630 = vadd.f32 0.0, %v629
      %v631 = vpop.f32.mrb[0].mxu0
      %632 = vmatprep.mubr.bf16.mxu0 0
      %633 = vmatmul.mubr.bf16.gmra.mrb[0].mxu0 %v450
      %v634 = vpop.f32.mrb[0].mxu0
      %v635 = vadd.f32 0.0, %v634
      %v636 = vpop.f32.mrb[0].mxu0
      %v637 = vpop.f32.mrb[0].mxu0
      %v638 = vadd.f32 0.0, %v637
      %v639 = vpop.f32.mrb[0].mxu0
      %640 = vmatprep.mubr.bf16.mxu0 0
      %641 = vmatmul.mubr.bf16.gmra.mrb[0].mxu0 %v451
      %v642 = vpop.f32.mrb[0].mxu0
      %v643 = vadd.f32 0.0, %v642
      %v644 = vpop.f32.mrb[0].mxu0
      %v645 = vpop.f32.mrb[0].mxu0
      %v646 = vadd.f32 0.0, %v645
      %v647 = vpop.f32.mrb[0].mxu0
      %648 = vmatprep.mubr.bf16.mxu0 0
      %649 = vmatmul.mubr.bf16.gmra.mrb[0].mxu0 %v452
      %v650 = vpop.f32.mrb[0].mxu0
      %v651 = vadd.f32 0.0, %v650
      %v652 = vpop.f32.mrb[0].mxu0
      %v653 = vpop.f32.mrb[0].mxu0
      %v654 = vadd.f32 0.0, %v653
      %v655 = vpop.f32.mrb[0].mxu0
      %656 = vmatprep.mubr.bf16.mxu0 0
      %657 = vmatmul.mubr.bf16.gmra.mrb[0].mxu0 %v453
      %v658 = vpop.f32.mrb[0].mxu0
      %v659 = vadd.f32 0.0, %v658
      %v660 = vpop.f32.mrb[0].mxu0
      %v661 = vpop.f32.mrb[0].mxu0
      %v662 = vadd.f32 0.0, %v661
      %v663 = vpop.f32.mrb[0].mxu0
      %664 = vmatprep.mubr.bf16.mxu0 0
      %665 = vmatmul.mubr.bf16.gmra.mrb[0].mxu0 %v454
      %v666 = vpop.f32.mrb[0].mxu0
      %v667 = vadd.f32 0.0, %v666
      %v668 = vpop.f32.mrb[0].mxu0
      %v669 = vpop.f32.mrb[0].mxu0
      %v670 = vadd.f32 0.0, %v669
      %v671 = vpop.f32.mrb[0].mxu0
      %672 = vmatprep.mubr.bf16.mxu0 0
      %673 = vmatmul.mubr.bf16.gmra.mrb[0].mxu0 %v455
      %v674 = vpop.f32.mrb[0].mxu0
      %v675 = vadd.f32 0.0, %v674
      %v676 = vpop.f32.mrb[0].mxu0
      %v677 = vpop.f32.mrb[0].mxu0
      %v678 = vadd.f32 0.0, %v677
      %v679 = vpop.f32.mrb[0].mxu0
      %680 = vdwg.mxu0
      %v681 = vadd.f32 %v296, %v555
      %v682 = vadd.f32 %v297, %v558
      %v683 = vadd.f32 %v298, %v563
      %v684 = vadd.f32 %v299, %v566
      %v685 = vadd.f32 %v300, %v571
      %v686 = vadd.f32 %v301, %v574
      %v687 = vadd.f32 %v302, %v579
      %v688 = vadd.f32 %v303, %v582
      %v689 = vadd.f32 %v304, %v587
      %v690 = vadd.f32 %v305, %v590
      %v691 = vadd.f32 %v306, %v595
      %v692 = vadd.f32 %v307, %v598
      %v693 = vadd.f32 %v308, %v603
      %v694 = vadd.f32 %v309, %v606
      %v695 = vadd.f32 %v310, %v611
      %v696 = vadd.f32 %v311, %v614
      %v697 = vadd.f32 %v312, %v619
      %v698 = vadd.f32 %v313, %v622
      %v699 = vadd.f32 %v314, %v627
      %v700 = vadd.f32 %v315, %v630
      %v701 = vadd.f32 %v316, %v635
      %v702 = vadd.f32 %v317, %v638
      %v703 = vadd.f32 %v318, %v643
      %v704 = vadd.f32 %v319, %v646
      %v705 = vadd.f32 %v320, %v651
      %v706 = vadd.f32 %v321, %v654
      %v707 = vadd.f32 %v322, %v659
      %v708 = vadd.f32 %v323, %v662
      %v709 = vadd.f32 %v324, %v667
      %v710 = vadd.f32 %v325, %v670
      %v711 = vadd.f32 %v326, %v675
      %v712 = vadd.f32 %v327, %v678
      %713 = vst [vmem:[#allocation2] sm:$0xff] %v681
      %714 = vst [vmem:[#allocation2 + $0x8] sm:$0xff] %v682
      %715 = vst [vmem:[#allocation2 + $0x10] sm:$0xff] %v683
      %716 = vst [vmem:[#allocation2 + $0x18] sm:$0xff] %v684
      %717 = vst [vmem:[#allocation2 + $0x20] sm:$0xff] %v685
      %718 = vst [vmem:[#allocation2 + $0x28] sm:$0xff] %v686
      %719 = vst [vmem:[#allocation2 + $0x30] sm:$0xff] %v687
      %720 = vst [vmem:[#allocation2 + $0x38] sm:$0xff] %v688
      %721 = vst [vmem:[#allocation2 + $0x40] sm:$0xff] %v689
      %722 = vst [vmem:[#allocation2 + $0x48] sm:$0xff] %v690
      %723 = vst [vmem:[#allocation2 + $0x50] sm:$0xff] %v691
      %724 = vst [vmem:[#allocation2 + $0x58] sm:$0xff] %v692
      %725 = vst [vmem:[#allocation2 + $0x60] sm:$0xff] %v693
      %726 = vst [vmem:[#allocation2 + $0x68] sm:$0xff] %v694
      %727 = vst [vmem:[#allocation2 + $0x70] sm:$0xff] %v695
      %728 = vst [vmem:[#allocation2 + $0x78] sm:$0xff] %v696
      %729 = vst [vmem:[#allocation2 + $0x80] sm:$0xff] %v697
      %730 = vst [vmem:[#allocation2 + $0x88] sm:$0xff] %v698
      %731 = vst [vmem:[#allocation2 + $0x90] sm:$0xff] %v699
      %732 = vst [vmem:[#allocation2 + $0x98] sm:$0xff] %v700
      %733 = vst [vmem:[#allocation2 + $0xa0] sm:$0xff] %v701
      %734 = vst [vmem:[#allocation2 + $0xa8] sm:$0xff] %v702
      %735 = vst [vmem:[#allocation2 + $0xb0] sm:$0xff] %v703
      %736 = vst [vmem:[#allocation2 + $0xb8] sm:$0xff] %v704
      %737 = vst [vmem:[#allocation2 + $0xc0] sm:$0xff] %v705
      %738 = vst [vmem:[#allocation2 + $0xc8] sm:$0xff] %v706
      %739 = vst [vmem:[#allocation2 + $0xd0] sm:$0xff] %v707
      %740 = vst [vmem:[#allocation2 + $0xd8] sm:$0xff] %v708
      %741 = vst [vmem:[#allocation2 + $0xe0] sm:$0xff] %v709
      %742 = vst [vmem:[#allocation2 + $0xe8] sm:$0xff] %v710
      %743 = vst [vmem:[#allocation2 + $0xf0] sm:$0xff] %v711
      %744 = vst [vmem:[#allocation2 + $0xf8] sm:$0xff] %v712
      // Predicated region
      $region37: #{_lambda_.3} parent=31 // pred_check
        %p745 = pneg %p260
      $region38: #{_lambda_.3} parent=31 // pred_check_branch
        %747 = sbr.rel (%p745) target = $region40
      $region39: #{_lambda_.3} parent=31 // pred_region
        %v748 = vld [vmem:[#allocation2] sm:$0xff]
        %v749 = vld [vmem:[#allocation2 + $0x8] sm:$0xff]
        %v750 = vld [vmem:[#allocation2 + $0x10] sm:$0xff]
        %v751 = vld [vmem:[#allocation2 + $0x18] sm:$0xff]
        %v752 = vld [vmem:[#allocation2 + $0x20] sm:$0xff]
        %v753 = vld [vmem:[#allocation2 + $0x28] sm:$0xff]
        %v754 = vld [vmem:[#allocation2 + $0x30] sm:$0xff]
        %v755 = vld [vmem:[#allocation2 + $0x38] sm:$0xff]
        %v756 = vld [vmem:[#allocation2 + $0x40] sm:$0xff]
        %v757 = vld [vmem:[#allocation2 + $0x48] sm:$0xff]
        %v758 = vld [vmem:[#allocation2 + $0x50] sm:$0xff]
        %v759 = vld [vmem:[#allocation2 + $0x58] sm:$0xff]
        %v760 = vld [vmem:[#allocation2 + $0x60] sm:$0xff]
        %v761 = vld [vmem:[#allocation2 + $0x68] sm:$0xff]
        %v762 = vld [vmem:[#allocation2 + $0x70] sm:$0xff]
        %v763 = vld [vmem:[#allocation2 + $0x78] sm:$0xff]
        %v764 = vld [vmem:[#allocation2 + $0x80] sm:$0xff]
        %v765 = vld [vmem:[#allocation2 + $0x88] sm:$0xff]
        %v766 = vld [vmem:[#allocation2 + $0x90] sm:$0xff]
        %v767 = vld [vmem:[#allocation2 + $0x98] sm:$0xff]
        %v768 = vld [vmem:[#allocation2 + $0xa0] sm:$0xff]
        %v769 = vld [vmem:[#allocation2 + $0xa8] sm:$0xff]
        %v770 = vld [vmem:[#allocation2 + $0xb0] sm:$0xff]
        %v771 = vld [vmem:[#allocation2 + $0xb8] sm:$0xff]
        %v772 = vld [vmem:[#allocation2 + $0xc0] sm:$0xff]
        %v773 = vld [vmem:[#allocation2 + $0xc8] sm:$0xff]
        %v774 = vld [vmem:[#allocation2 + $0xd0] sm:$0xff]
        %v775 = vld [vmem:[#allocation2 + $0xd8] sm:$0xff]
        %v776 = vld [vmem:[#allocation2 + $0xe0] sm:$0xff]
        %v777 = vld [vmem:[#allocation2 + $0xe8] sm:$0xff]
        %v778 = vld [vmem:[#allocation2 + $0xf0] sm:$0xff]
        %v779 = vld [vmem:[#allocation2 + $0xf8] sm:$0xff]
        %v780 = vld [vmem:[%s249] sm:$0x1]
        %v782 = vlaneseq
        %v783 = vshrl.u32 %v782, 7
        %v784 = vsub.s32 0, %v783
        %v785 = vrot.slane %v780, %v784
        %v787 = vadd.f32 %v748, %v785
        %v788 = vadd.f32 %v749, %v785
        %v789 = vadd.f32 %v750, %v785
        %v790 = vadd.f32 %v751, %v785
        %v791 = vadd.f32 %v752, %v785
        %v792 = vadd.f32 %v753, %v785
        %v793 = vadd.f32 %v754, %v785
        %v794 = vadd.f32 %v755, %v785
        %v795 = vadd.f32 %v756, %v785
        %v796 = vadd.f32 %v757, %v785
        %v797 = vadd.f32 %v758, %v785
        %v798 = vadd.f32 %v759, %v785
        %v799 = vadd.f32 %v760, %v785
        %v800 = vadd.f32 %v761, %v785
        %v801 = vadd.f32 %v762, %v785
        %v802 = vadd.f32 %v763, %v785
        %v803 = vadd.f32 %v764, %v785
        %v804 = vadd.f32 %v765, %v785
        %v805 = vadd.f32 %v766, %v785
        %v806 = vadd.f32 %v767, %v785
        %v807 = vadd.f32 %v768, %v785
        %v808 = vadd.f32 %v769, %v785
        %v809 = vadd.f32 %v770, %v785
        %v810 = vadd.f32 %v771, %v785
        %v811 = vadd.f32 %v772, %v785
        %v812 = vadd.f32 %v773, %v785
        %v813 = vadd.f32 %v774, %v785
        %v814 = vadd.f32 %v775, %v785
        %v815 = vadd.f32 %v776, %v785
        %v816 = vadd.f32 %v777, %v785
        %v817 = vadd.f32 %v778, %v785
        %v818 = vadd.f32 %v779, %v785
        %v819 = vmax.f32 %v787, 0.0
        %v820 = vmax.f32 %v788, 0.0
        %v821 = vmax.f32 %v789, 0.0
        %v822 = vmax.f32 %v790, 0.0
        %v823 = vmax.f32 %v791, 0.0
        %v824 = vmax.f32 %v792, 0.0
        %v825 = vmax.f32 %v793, 0.0
        %v826 = vmax.f32 %v794, 0.0
        %v827 = vmax.f32 %v795, 0.0
        %v828 = vmax.f32 %v796, 0.0
        %v829 = vmax.f32 %v797, 0.0
        %v830 = vmax.f32 %v798, 0.0
        %v831 = vmax.f32 %v799, 0.0
        %v832 = vmax.f32 %v800, 0.0
        %v833 = vmax.f32 %v801, 0.0
        %v834 = vmax.f32 %v802, 0.0
        %v835 = vmax.f32 %v803, 0.0
        %v836 = vmax.f32 %v804, 0.0
        %v837 = vmax.f32 %v805, 0.0
        %v838 = vmax.f32 %v806, 0.0
        %v839 = vmax.f32 %v807, 0.0
        %v840 = vmax.f32 %v808, 0.0
        %v841 = vmax.f32 %v809, 0.0
        %v842 = vmax.f32 %v810, 0.0
        %v843 = vmax.f32 %v811, 0.0
        %v844 = vmax.f32 %v812, 0.0
        %v845 = vmax.f32 %v813, 0.0
        %v846 = vmax.f32 %v814, 0.0
        %v847 = vmax.f32 %v815, 0.0
        %v848 = vmax.f32 %v816, 0.0
        %v849 = vmax.f32 %v817, 0.0
        %v850 = vmax.f32 %v818, 0.0
        %v851 = vpack.c.bf16 %v820, %v819
        %v852 = vpack.c.bf16 %v822, %v821
        %v853 = vpack.c.bf16 %v824, %v823
        %v854 = vpack.c.bf16 %v826, %v825
        %v855 = vpack.c.bf16 %v828, %v827
        %v856 = vpack.c.bf16 %v830, %v829
        %v857 = vpack.c.bf16 %v832, %v831
        %v858 = vpack.c.bf16 %v834, %v833
        %v859 = vpack.c.bf16 %v836, %v835
        %v860 = vpack.c.bf16 %v838, %v837
        %v861 = vpack.c.bf16 %v840, %v839
        %v862 = vpack.c.bf16 %v842, %v841
        %v863 = vpack.c.bf16 %v844, %v843
        %v864 = vpack.c.bf16 %v846, %v845
        %v865 = vpack.c.bf16 %v848, %v847
        %v866 = vpack.c.bf16 %v850, %v849
        %v883 = vunpack.c.l.b16 %v851
        %v884 = vunpack.c.h.b16 %v851
        %v885 = vunpack.c.l.b16 %v852
        %v886 = vunpack.c.h.b16 %v852
        %v887 = vunpack.c.l.b16 %v853
        %v888 = vunpack.c.h.b16 %v853
        %v889 = vunpack.c.l.b16 %v854
        %v890 = vunpack.c.h.b16 %v854
        %v891 = vunpack.c.l.b16 %v855
        %v892 = vunpack.c.h.b16 %v855
        %v893 = vunpack.c.l.b16 %v856
        %v894 = vunpack.c.h.b16 %v856
        %v895 = vunpack.c.l.b16 %v857
        %v896 = vunpack.c.h.b16 %v857
        %v897 = vunpack.c.l.b16 %v858
        %v898 = vunpack.c.h.b16 %v858
        %v899 = vunpack.c.l.b16 %v859
        %v900 = vunpack.c.h.b16 %v859
        %v901 = vunpack.c.l.b16 %v860
        %v902 = vunpack.c.h.b16 %v860
        %v903 = vunpack.c.l.b16 %v861
        %v904 = vunpack.c.h.b16 %v861
        %v905 = vunpack.c.l.b16 %v862
        %v906 = vunpack.c.h.b16 %v862
        %v907 = vunpack.c.l.b16 %v863
        %v908 = vunpack.c.h.b16 %v863
        %v909 = vunpack.c.l.b16 %v864
        %v910 = vunpack.c.h.b16 %v864
        %v911 = vunpack.c.l.b16 %v865
        %v912 = vunpack.c.h.b16 %v865
        %v913 = vunpack.c.l.b16 %v866
        %v914 = vunpack.c.h.b16 %v866
        %v915 = vpack.c.b16 %v883, %v883
        %v916 = vpack.c.b16 %v884, %v884
        %v917 = vpack.c.b16 %v885, %v885
        %v918 = vpack.c.b16 %v886, %v886
        %v919 = vpack.c.b16 %v887, %v887
        %v920 = vpack.c.b16 %v888, %v888
        %v921 = vpack.c.b16 %v889, %v889
        %v922 = vpack.c.b16 %v890, %v890
        %v923 = vpack.c.b16 %v891, %v891
        %v924 = vpack.c.b16 %v892, %v892
        %v925 = vpack.c.b16 %v893, %v893
        %v926 = vpack.c.b16 %v894, %v894
        %v927 = vpack.c.b16 %v895, %v895
        %v928 = vpack.c.b16 %v896, %v896
        %v929 = vpack.c.b16 %v897, %v897
        %v930 = vpack.c.b16 %v898, %v898
        %v931 = vpack.c.b16 %v899, %v899
        %v932 = vpack.c.b16 %v900, %v900
        %v933 = vpack.c.b16 %v901, %v901
        %v934 = vpack.c.b16 %v902, %v902
        %v935 = vpack.c.b16 %v903, %v903
        %v936 = vpack.c.b16 %v904, %v904
        %v937 = vpack.c.b16 %v905, %v905
        %v938 = vpack.c.b16 %v906, %v906
        %v939 = vpack.c.b16 %v907, %v907
        %v940 = vpack.c.b16 %v908, %v908
        %v941 = vpack.c.b16 %v909, %v909
        %v942 = vpack.c.b16 %v910, %v910
        %v943 = vpack.c.b16 %v911, %v911
        %v944 = vpack.c.b16 %v912, %v912
        %v945 = vpack.c.b16 %v913, %v913
        %v946 = vpack.c.b16 %v914, %v914
        %979 = vst [vmem:[%s257] sm:$0xf] %v915
        %980 = vst [vmem:[%s257 + $0x4] sm:$0xf] %v916
        %981 = vst [vmem:[%s257 + $0x8] sm:$0xf] %v917
        %982 = vst [vmem:[%s257 + $0xc] sm:$0xf] %v918
        %983 = vst [vmem:[%s257 + $0x10] sm:$0xf] %v919
        %984 = vst [vmem:[%s257 + $0x14] sm:$0xf] %v920
        %985 = vst [vmem:[%s257 + $0x18] sm:$0xf] %v921
        %986 = vst [vmem:[%s257 + $0x1c] sm:$0xf] %v922
        %987 = vst [vmem:[%s257 + $0x20] sm:$0xf] %v923
        %988 = vst [vmem:[%s257 + $0x24] sm:$0xf] %v924
        %989 = vst [vmem:[%s257 + $0x28] sm:$0xf] %v925
        %990 = vst [vmem:[%s257 + $0x2c] sm:$0xf] %v926
        %991 = vst [vmem:[%s257 + $0x30] sm:$0xf] %v927
        %992 = vst [vmem:[%s257 + $0x34] sm:$0xf] %v928
        %993 = vst [vmem:[%s257 + $0x38] sm:$0xf] %v929
        %994 = vst [vmem:[%s257 + $0x3c] sm:$0xf] %v930
        %995 = vst [vmem:[%s257 + $0x40] sm:$0xf] %v931
        %996 = vst [vmem:[%s257 + $0x44] sm:$0xf] %v932
        %997 = vst [vmem:[%s257 + $0x48] sm:$0xf] %v933
        %998 = vst [vmem:[%s257 + $0x4c] sm:$0xf] %v934
        %999 = vst [vmem:[%s257 + $0x50] sm:$0xf] %v935
        %1000 = vst [vmem:[%s257 + $0x54] sm:$0xf] %v936
        %1001 = vst [vmem:[%s257 + $0x58] sm:$0xf] %v937
        %1002 = vst [vmem:[%s257 + $0x5c] sm:$0xf] %v938
        %1003 = vst [vmem:[%s257 + $0x60] sm:$0xf] %v939
        %1004 = vst [vmem:[%s257 + $0x64] sm:$0xf] %v940
        %1005 = vst [vmem:[%s257 + $0x68] sm:$0xf] %v941
        %1006 = vst [vmem:[%s257 + $0x6c] sm:$0xf] %v942
        %1007 = vst [vmem:[%s257 + $0x70] sm:$0xf] %v943
        %1008 = vst [vmem:[%s257 + $0x74] sm:$0xf] %v944
        %1009 = vst [vmem:[%s257 + $0x78] sm:$0xf] %v945
        %1010 = vst [vmem:[%s257 + $0x7c] sm:$0xf] %v946
      $region40: #{_lambda_.3} parent=31 // pred_fallthru
        _
      %s1011 = smul.u32 32, %s19
      %p1012 = scmp.lt.s32.totalorder %s1011, 63
      %s1013 = scalar_select %p1012, %s1011, 63
      %p1014 = scmp.lt.s32.totalorder %s20, 0
      %s1015 = scalar_select %p1014, %s20, 0
      %s1016 = sadd.s32 %s1015, %s1013
      %s1017 = smul.addr %s1016, 4
      %s1018 = scalar_lea.vmem %s3, %s1017
      // Predicated region
      $region41: #{_lambda_.3} parent=31 // pred_check
        %p1019 = pneg %p135
      $region42: #{_lambda_.3} parent=31 // pred_check_branch
        %1021 = sbr.rel (%p1019) target = $region44
      $region43: #{_lambda_.3} parent=31 // pred_region
        %s1022 = smul.u32 32, %s19
      $region44: #{_lambda_.3} parent=31 // pred_fallthru
        _
    $region32: #{_lambda_.3} parent=5 // pred_fallthru
      _
    %p1023 = scmp.le.s32.totalorder 2, %s9
    // Predicated region
    $region45: #{_lambda_.3} parent=5 // pred_check
      %p1024 = pneg %p1023
    $region46: #{_lambda_.3} parent=5 // pred_check_branch
      %1026 = sbr.rel (%p1024) target = $region48
    $region47: #{_lambda_.3} parent=5 // pred_region
      %s1027 = ssub.s32 %s9, 2
      // Predicated region
      $region49: #{_lambda_.3} parent=47 // pred_check
        %p1028 = pneg %p141
      $region50: #{_lambda_.3} parent=47 // pred_check_branch
        %1030 = sbr.rel (%p1028) target = $region52
      $region51: #{_lambda_.3} parent=47 // pred_region
        %s1031 = smul.u32 32, %s22
        %p1032 = scmp.lt.s32.totalorder %s1031, 63
        %s1033 = scalar_select %p1032, %s1031, 63
        %p1034 = scmp.lt.s32.totalorder %s23, 0
        %s1035 = scalar_select %p1034, %s23, 0
        %s1036 = sadd.s32 %s1035, %s1033
        %s1037 = smul.addr %s1036, 4
        %s1038 = scalar_lea.vmem %s3, %s1037
      $region52: #{_lambda_.3} parent=47 // pred_fallthru
        _
    $region48: #{_lambda_.3} parent=5 // pred_fallthru
      _
  $region6: #{_lambda_.3} parent=0 // loop_footer
    %s13 = sadd.s32 1, %s9
  $region7: #{_lambda_.3} parent=0 // loop_footer_branch
    %8 = sbr.rel target = $region3
  $region8: #{_lambda_.3} parent=0 // loop_exit
    _

// kernel: _lambda_.4
$region0: #{_lambda_.4}
  #allocation0 [shape = 'u32[]', space=smem, size = 0x4, offset = 0x4, fixed_abs, tag = 'smem constant byte address 0x4 - core index']
  #allocation1 [shape = 'u32[144,128]{1,0:T(1,128)}', space=vmem, size = 0x12000, scoped, tag = 'internal scratch']
  #allocation2 [shape = 'f32[128,128]{1,0:T(8,128)}', space=vmem, size = 0x10000, scoped, tag = 'scratch operand']
  %s0 = inlined_call_operand.vmem [shape: bf16[2,160,128], index: 0, kind: input, shape index: {}]
  %s1 = inlined_call_operand.vmem [shape: bf16[2,160,128], index: 1, kind: input, shape index: {}]
  %s2 = inlined_call_operand.vmem [shape: bf16[2,160,128], index: 2, kind: input, shape index: {}]
  %s3 = inlined_call_operand.vmem [shape: bf16[2,160,128], index: 3, kind: input, shape index: {}]
  %s4 = inlined_call_operand.vmem [shape: bf16[9,128,128], index: 4, kind: input, shape index: {}]
  %s5 = inlined_call_operand.vmem [shape: f32[1,128], index: 5, kind: input, shape index: {}]
  %s6 = inlined_call_operand.vmem [shape: bf16[2,8,8,128], index: 6, kind: output, shape index: {}]
  %s7 = sld [smem:[#allocation0]]
  $region57: #{_lambda_.4} parent=0
    _
  %s9 = ssub.s32 1, %s7
  %s10 = scalar_select 0, %s9, %s7
  loop: start=0, step=1, limit=4
  $region2: #{_lambda_.4} parent=0 // loop_pre_header
    _
  $region3: #{_lambda_.4} parent=0 // loop_header
    %s12 = sphi 0, %s16
    %p13 = scmp.ge.s32.totalorder %s12, 4
    %s19 = sphi 0, %s31
    %s20 = sphi 0, %s27
    %s21 = sphi 0, %s19
    %s22 = sphi 0, %s20
    %s23 = sphi 0, %s21
    %s24 = sphi 0, %s22
    %s34 = sphi 0, %s36
    %s37 = sphi 0, %s34
    %s38 = sphi 0, %s37
    %s54 = sphi 0, %s38
    %s60 = sphi 0, %s62
    %s63 = sphi 0, %s60
    %s64 = sphi 0, %s63
    %s80 = sphi 0, %s64
    %s86 = sphi 0, %s88
    %s89 = sphi 0, %s86
    %s90 = sphi 0, %s89
    %s106 = sphi 0, %s90
    %s112 = sphi 0, %s114
    %s115 = sphi 0, %s112
    %s116 = sphi 0, %s115
    %s132 = sphi 0, %s116
    %s136 = sphi 0, %s136
    %s138 = sphi 0, %s136
    %s139 = sphi 0, %s138
    %s153 = sphi 0, %s139
    %s157 = sphi 0, %s157
    %s159 = sphi 0, %s157
    %s160 = sphi 0, %s159
    %s174 = sphi 0, %s160
    %s182 = sphi 0, %s184
    %s185 = sphi 0, %s182
    %s186 = sphi 0, %s185
    %s202 = sphi 0, %s186
  $region4: #{_lambda_.4} parent=0 // loop_header_branch
    %15 = sbr.rel (%p13) target = $region8
  $region5: #{_lambda_.4} parent=0 // loop_body
    %s17 = ssub.s32 %s12, 1
    %s18 = ssub.s32 %s12, 2
    %s25 = sadd.s32 1, %s20
    %p26 = scmp.ge.s32.totalorder %s25, 1
    %s27 = scalar_select %p26, 0, %s25
    %s28 = sadd.s32 1, %s19
    %s29 = scalar_select %p26, %s28, %s19
    %p30 = scmp.ge.s32.totalorder %s29, 2
    %s31 = scalar_select %p30, 0, %s29
    %s32 = ssub.s32 %s19, %s31
    %p33 = scmp.eq.s32.totalorder %s32, 0
    %s35 = sadd.s32 %s34, 1
    %s36 = scalar_select %p33, %s34, %s35
    %p39 = pneg %p33
    %p40 = scmp.eq.s32.totalorder %s12, 1
    %p41 = por %p39, %p40
    %p42 = scmp.ne.s32.totalorder %s34, %s37
    %p43 = scmp.eq.s32.totalorder %s12, 0
    %p44 = por %p42, %p43
    %p45 = scmp.ne.s32.totalorder %s34, %s37
    %p46 = scmp.eq.s32.totalorder %s17, 1
    %p47 = por %p45, %p46
    %p48 = scmp.ne.s32.totalorder %s37, %s38
    %p49 = scmp.eq.s32.totalorder %s17, 0
    %p50 = por %p48, %p49
    %p51 = scmp.ne.s32.totalorder %s37, %s38
    %p52 = scmp.eq.s32.totalorder %s18, 1
    %p53 = por %p51, %p52
    %p55 = scmp.ne.s32.totalorder %s38, %s54
    %p56 = scmp.eq.s32.totalorder %s18, 0
    %p57 = por %p55, %p56
    %s58 = ssub.s32 %s19, %s31
    %p59 = scmp.eq.s32.totalorder %s58, 0
    %s61 = sadd.s32 %s60, 1
    %s62 = scalar_select %p59, %s60, %s61
    %p65 = pneg %p59
    %p66 = scmp.eq.s32.totalorder %s12, 1
    %p67 = por %p65, %p66
    %p68 = scmp.ne.s32.totalorder %s60, %s63
    %p69 = scmp.eq.s32.totalorder %s12, 0
    %p70 = por %p68, %p69
    %p71 = scmp.ne.s32.totalorder %s60, %s63
    %p72 = scmp.eq.s32.totalorder %s17, 1
    %p73 = por %p71, %p72
    %p74 = scmp.ne.s32.totalorder %s63, %s64
    %p75 = scmp.eq.s32.totalorder %s17, 0
    %p76 = por %p74, %p75
    %p77 = scmp.ne.s32.totalorder %s63, %s64
    %p78 = scmp.eq.s32.totalorder %s18, 1
    %p79 = por %p77, %p78
    %p81 = scmp.ne.s32.totalorder %s64, %s80
    %p82 = scmp.eq.s32.totalorder %s18, 0
    %p83 = por %p81, %p82
    %s84 = ssub.s32 %s19, %s31
    %p85 = scmp.eq.s32.totalorder %s84, 0
    %s87 = sadd.s32 %s86, 1
    %s88 = scalar_select %p85, %s86, %s87
    %p91 = pneg %p85
    %p92 = scmp.eq.s32.totalorder %s12, 1
    %p93 = por %p91, %p92
    %p94 = scmp.ne.s32.totalorder %s86, %s89
    %p95 = scmp.eq.s32.totalorder %s12, 0
    %p96 = por %p94, %p95
    %p97 = scmp.ne.s32.totalorder %s86, %s89
    %p98 = scmp.eq.s32.totalorder %s17, 1
    %p99 = por %p97, %p98
    %p100 = scmp.ne.s32.totalorder %s89, %s90
    %p101 = scmp.eq.s32.totalorder %s17, 0
    %p102 = por %p100, %p101
    %p103 = scmp.ne.s32.totalorder %s89, %s90
    %p104 = scmp.eq.s32.totalorder %s18, 1
    %p105 = por %p103, %p104
    %p107 = scmp.ne.s32.totalorder %s90, %s106
    %p108 = scmp.eq.s32.totalorder %s18, 0
    %p109 = por %p107, %p108
    %s110 = ssub.s32 %s19, %s31
    %p111 = scmp.eq.s32.totalorder %s110, 0
    %s113 = sadd.s32 %s112, 1
    %s114 = scalar_select %p111, %s112, %s113
    %p117 = pneg %p111
    %p118 = scmp.eq.s32.totalorder %s12, 1
    %p119 = por %p117, %p118
    %p120 = scmp.ne.s32.totalorder %s112, %s115
    %p121 = scmp.eq.s32.totalorder %s12, 0
    %p122 = por %p120, %p121
    %p123 = scmp.ne.s32.totalorder %s112, %s115
    %p124 = scmp.eq.s32.totalorder %s17, 1
    %p125 = por %p123, %p124
    %p126 = scmp.ne.s32.totalorder %s115, %s116
    %p127 = scmp.eq.s32.totalorder %s17, 0
    %p128 = por %p126, %p127
    %p129 = scmp.ne.s32.totalorder %s115, %s116
    %p130 = scmp.eq.s32.totalorder %s18, 1
    %p131 = por %p129, %p130
    %p133 = scmp.ne.s32.totalorder %s116, %s132
    %p134 = scmp.eq.s32.totalorder %s18, 0
    %p135 = por %p133, %p134
    %s137 = sadd.s32 %s136, 1
    %p140 = scmp.eq.s32.totalorder %s12, 1
    %p141 = scmp.ne.s32.totalorder %s136, %s138
    %p142 = scmp.eq.s32.totalorder %s12, 0
    %p143 = por %p141, %p142
    %p144 = scmp.ne.s32.totalorder %s136, %s138
    %p145 = scmp.eq.s32.totalorder %s17, 1
    %p146 = por %p144, %p145
    %p147 = scmp.ne.s32.totalorder %s138, %s139
    %p148 = scmp.eq.s32.totalorder %s17, 0
    %p149 = por %p147, %p148
    %p150 = scmp.ne.s32.totalorder %s138, %s139
    %p151 = scmp.eq.s32.totalorder %s18, 1
    %p152 = por %p150, %p151
    %p154 = scmp.ne.s32.totalorder %s139, %s153
    %p155 = scmp.eq.s32.totalorder %s18, 0
    %p156 = por %p154, %p155
    %s158 = sadd.s32 %s157, 1
    %p161 = scmp.eq.s32.totalorder %s12, 1
    %p162 = scmp.ne.s32.totalorder %s157, %s159
    %p163 = scmp.eq.s32.totalorder %s12, 0
    %p164 = por %p162, %p163
    %p165 = scmp.ne.s32.totalorder %s157, %s159
    %p166 = scmp.eq.s32.totalorder %s17, 1
    %p167 = por %p165, %p166
    %p168 = scmp.ne.s32.totalorder %s159, %s160
    %p169 = scmp.eq.s32.totalorder %s17, 0
    %p170 = por %p168, %p169
    %p171 = scmp.ne.s32.totalorder %s159, %s160
    %p172 = scmp.eq.s32.totalorder %s18, 1
    %p173 = por %p171, %p172
    %p175 = scmp.ne.s32.totalorder %s160, %s174
    %p176 = scmp.eq.s32.totalorder %s18, 0
    %p177 = por %p175, %p176
    %s178 = ssub.s32 %s19, %s31
    %s179 = ssub.s32 %s20, %s27
    %s180 = sor.u32 %s178, %s179
    %p181 = scmp.eq.s32.totalorder %s180, 0
    %s183 = sadd.s32 %s182, 1
    %s184 = scalar_select %p181, %s182, %s183
    %p187 = pneg %p181
    %p188 = scmp.eq.s32.totalorder %s12, 1
    %p189 = por %p187, %p188
    %p190 = scmp.ne.s32.totalorder %s182, %s185
    %p191 = scmp.eq.s32.totalorder %s12, 0
    %p192 = por %p190, %p191
    %p193 = scmp.ne.s32.totalorder %s182, %s185
    %p194 = scmp.eq.s32.totalorder %s17, 1
    %p195 = por %p193, %p194
    %p196 = scmp.ne.s32.totalorder %s185, %s186
    %p197 = scmp.eq.s32.totalorder %s17, 0
    %p198 = por %p196, %p197
    %p199 = scmp.ne.s32.totalorder %s185, %s186
    %p200 = scmp.eq.s32.totalorder %s18, 1
    %p201 = por %p199, %p200
    %p203 = scmp.ne.s32.totalorder %s186, %s202
    %p204 = scmp.eq.s32.totalorder %s18, 0
    %p205 = por %p203, %p204
    %p206 = scmp.le.s32.totalorder 1, %s12
    %p207 = scmp.lt.s32.totalorder %s12, 3
    %p208 = pnand %p206, %p207
    %p209 = pneg %p208
    // Predicated region
    $region9: #{_lambda_.4} parent=5 // pred_check
      _
    $region10: #{_lambda_.4} parent=5 // pred_check_branch
      %211 = sbr.rel (%p208) target = $region12
    $region11: #{_lambda_.4} parent=5 // pred_region
      %s212 = ssub.s32 %s12, 1
      // Predicated region
      $region13: #{_lambda_.4} parent=11 // pred_check
        %p213 = pneg %p149
      $region14: #{_lambda_.4} parent=11 // pred_check_branch
        %215 = sbr.rel (%p213) target = $region16
      $region15: #{_lambda_.4} parent=11 // pred_region
        _
      $region16: #{_lambda_.4} parent=11 // pred_fallthru
        _
      // Predicated region
      $region17: #{_lambda_.4} parent=11 // pred_check
        %p216 = pneg %p170
      $region18: #{_lambda_.4} parent=11 // pred_check_branch
        %218 = sbr.rel (%p216) target = $region20
      $region19: #{_lambda_.4} parent=11 // pred_region
        _
      $region20: #{_lambda_.4} parent=11 // pred_fallthru
        _
    $region12: #{_lambda_.4} parent=5 // pred_fallthru
      _
    %p219 = scmp.lt.s32.totalorder %s12, 2
    // Predicated region
    $region21: #{_lambda_.4} parent=5 // pred_check
      %p220 = pneg %p219
    $region22: #{_lambda_.4} parent=5 // pred_check_branch
      %222 = sbr.rel (%p220) target = $region24
    $region23: #{_lambda_.4} parent=5 // pred_region
      // Predicated region
      $region25: #{_lambda_.4} parent=23 // pred_check
        %p223 = pneg %p44
      $region26: #{_lambda_.4} parent=23 // pred_check_branch
        %225 = sbr.rel (%p223) target = $region28
      $region27: #{_lambda_.4} parent=23 // pred_region
        %p226 = scmp.lt.s32.totalorder %s19, 1
        %s227 = scalar_select %p226, %s19, 1
        %s228 = smul.addr %s227, 20
        %s229 = smul.addr %s228, 4
        %s230 = scalar_lea.vmem %s0, %s229
      $region28: #{_lambda_.4} parent=23 // pred_fallthru
        _
      // Predicated region
      $region29: #{_lambda_.4} parent=23 // pred_check
        %p231 = pneg %p70
      $region30: #{_lambda_.4} parent=23 // pred_check_branch
        %233 = sbr.rel (%p231) target = $region32
      $region31: #{_lambda_.4} parent=23 // pred_region
        %p234 = scmp.lt.s32.totalorder %s19, 1
        %s235 = scalar_select %p234, %s19, 1
        %s236 = smul.addr %s235, 20
        %s237 = smul.addr %s236, 4
        %s238 = scalar_lea.vmem %s1, %s237
      $region32: #{_lambda_.4} parent=23 // pred_fallthru
        _
      // Predicated region
      $region33: #{_lambda_.4} parent=23 // pred_check
        %p239 = pneg %p96
      $region34: #{_lambda_.4} parent=23 // pred_check_branch
        %241 = sbr.rel (%p239) target = $region36
      $region35: #{_lambda_.4} parent=23 // pred_region
        %p242 = scmp.lt.s32.totalorder %s19, 1
        %s243 = scalar_select %p242, %s19, 1
        %s244 = smul.addr %s243, 20
        %s245 = smul.addr %s244, 4
        %s246 = scalar_lea.vmem %s2, %s245
      $region36: #{_lambda_.4} parent=23 // pred_fallthru
        _
      // Predicated region
      $region37: #{_lambda_.4} parent=23 // pred_check
        %p247 = pneg %p122
      $region38: #{_lambda_.4} parent=23 // pred_check_branch
        %249 = sbr.rel (%p247) target = $region40
      $region39: #{_lambda_.4} parent=23 // pred_region
        %p250 = scmp.lt.s32.totalorder %s19, 1
        %s251 = scalar_select %p250, %s19, 1
        %s252 = smul.addr %s251, 20
        %s253 = smul.addr %s252, 4
        %s254 = scalar_lea.vmem %s3, %s253
      $region40: #{_lambda_.4} parent=23 // pred_fallthru
        _
    $region24: #{_lambda_.4} parent=5 // pred_fallthru
      _
    %p255 = scmp.le.s32.totalorder 1, %s12
    %p256 = scmp.lt.s32.totalorder %s12, 3
    %p257 = pnand %p255, %p256
    %p258 = pneg %p257
    // Predicated region
    $region41: #{_lambda_.4} parent=5 // pred_check
      _
    $region42: #{_lambda_.4} parent=5 // pred_check_branch
      %260 = sbr.rel (%p257) target = $region44
    $region43: #{_lambda_.4} parent=5 // pred_region
      %s261 = ssub.s32 %s12, 1
      %p262 = scmp.lt.s32.totalorder %s21, 1
      %s263 = scalar_select %p262, %s21, 1
      %s264 = smul.addr %s263, 20
      %s265 = smul.addr %s264, 4
      %s266 = scalar_lea.vmem %s0, %s265
      %p267 = pneg %p50
      %p268 = pneg %p47
      %p269 = scmp.lt.s32.totalorder %s21, 1
      %s270 = scalar_select %p269, %s21, 1
      %s271 = smul.addr %s270, 20
      %s272 = smul.addr %s271, 4
      %s273 = scalar_lea.vmem %s1, %s272
      %p274 = pneg %p76
      %p275 = pneg %p73
      %p276 = scmp.lt.s32.totalorder %s21, 1
      %s277 = scalar_select %p276, %s21, 1
      %s278 = smul.addr %s277, 20
      %s279 = smul.addr %s278, 4
      %s280 = scalar_lea.vmem %s2, %s279
      %p281 = pneg %p102
      %p282 = pneg %p99
      %p283 = scmp.lt.s32.totalorder %s21, 1
      %s284 = scalar_select %p283, %s21, 1
      %s285 = smul.addr %s284, 20
      %s286 = smul.addr %s285, 4
      %s287 = scalar_lea.vmem %s3, %s286
      %p288 = pneg %p128
      %p289 = pneg %p125
      %p290 = pneg %p149
      %p291 = pneg %p146
      %p292 = pneg %p170
      %p293 = pneg %p167
      %p294 = pneg %p198
      %p295 = pneg %p195
      %s296 = smul.u32 8, %s22
      %p297 = scmp.lt.s32.totalorder %s21, 1
      %s298 = scalar_select %p297, %s21, 1
      %p299 = scmp.lt.s32.totalorder %s296, 7
      %s300 = scalar_select %p299, %s296, 7
      %s301 = smul.addr %s298, 8
      %s302 = sadd.s32 %s300, %s301
      %s303 = smul.addr %s302, 4
      %s304 = scalar_lea.vmem %s6, %s303
      %p305 = scmp.lt.s32.totalorder %s21, 1
      %s306 = scalar_select %p305, %s21, 1
      %s307 = smul.addr %s306, 20
      %s308 = smul.addr %s307, 4
      %s309 = scalar_lea.vmem %s0, %s308
      %p310 = scmp.lt.s32.totalorder %s21, 1
      %s311 = scalar_select %p310, %s21, 1
      %s312 = smul.addr %s311, 20
      %s313 = smul.addr %s312, 4
      %s314 = scalar_lea.vmem %s1, %s313
      %p315 = scmp.lt.s32.totalorder %s21, 1
      %s316 = scalar_select %p315, %s21, 1
      %s317 = smul.addr %s316, 20
      %s318 = smul.addr %s317, 4
      %s319 = scalar_lea.vmem %s2, %s318
      %p320 = scmp.lt.s32.totalorder %s21, 1
      %s321 = scalar_select %p320, %s21, 1
      %s322 = smul.addr %s321, 20
      %s323 = smul.addr %s322, 4
      %s324 = scalar_lea.vmem %s3, %s323
      %s325 = smul.u32 8, %s22
      %p326 = scmp.lt.s32.totalorder %s21, 1
      %s327 = scalar_select %p326, %s21, 1
      %p328 = scmp.lt.s32.totalorder %s325, 7
      %s329 = scalar_select %p328, %s325, 7
      %s330 = smul.addr %s327, 8
      %s331 = sadd.s32 %s329, %s330
      %s332 = smul.addr %s331, 4
      %s333 = scalar_lea.vmem %s6, %s332
      %s334 = smul.u32 8, %s22
      %s336 = smul.u32 %s22, 128
      %337 = vst [vmem:[#allocation2] sm:$0xff] 0.0
      %338 = vst [vmem:[#allocation2 + $0x8] sm:$0xff] 0.0
      %339 = vst [vmem:[#allocation2 + $0x10] sm:$0xff] 0.0
      %340 = vst [vmem:[#allocation2 + $0x18] sm:$0xff] 0.0
      %341 = vst [vmem:[#allocation2 + $0x20] sm:$0xff] 0.0
      %342 = vst [vmem:[#allocation2 + $0x28] sm:$0xff] 0.0
      %343 = vst [vmem:[#allocation2 + $0x30] sm:$0xff] 0.0
      %344 = vst [vmem:[#allocation2 + $0x38] sm:$0xff] 0.0
      %345 = vst [vmem:[#allocation2 + $0x40] sm:$0xff] 0.0
      %346 = vst [vmem:[#allocation2 + $0x48] sm:$0xff] 0.0
      %347 = vst [vmem:[#allocation2 + $0x50] sm:$0xff] 0.0
      %348 = vst [vmem:[#allocation2 + $0x58] sm:$0xff] 0.0
      %349 = vst [vmem:[#allocation2 + $0x60] sm:$0xff] 0.0
      %350 = vst [vmem:[#allocation2 + $0x68] sm:$0xff] 0.0
      %351 = vst [vmem:[#allocation2 + $0x70] sm:$0xff] 0.0
      %352 = vst [vmem:[#allocation2 + $0x78] sm:$0xff] 0.0
      %s353 = sshra.s32 %s336, 3
      %s354 = sand.u32 %s336, 7
      %s355 = smul.addr %s353, 4
      %s356 = scalar_lea.vmem %s309, %s355
      %v357 = vld [vmem:[%s356] sm:$0xf]
      %v358 = vld [vmem:[%s356 + $0x4] sm:$0xf]
      %v359 = vld [vmem:[%s356 + $0x8] sm:$0xf]
      %v360 = vld [vmem:[%s356 + $0xc] sm:$0xf]
      %v361 = vld [vmem:[%s356 + $0x10] sm:$0xf]
      %v362 = vld [vmem:[%s356 + $0x14] sm:$0xf]
      %v363 = vld [vmem:[%s356 + $0x18] sm:$0xf]
      %v364 = vld [vmem:[%s356 + $0x1c] sm:$0xf]
      %v365 = vld [vmem:[%s356 + $0x20] sm:$0xf]
      %v366 = vld [vmem:[%s356 + $0x24] sm:$0xf]
      %v367 = vld [vmem:[%s356 + $0x28] sm:$0xf]
      %v368 = vld [vmem:[%s356 + $0x2c] sm:$0xf]
      %v369 = vld [vmem:[%s356 + $0x30] sm:$0xf]
      %v370 = vld [vmem:[%s356 + $0x34] sm:$0xf]
      %v371 = vld [vmem:[%s356 + $0x38] sm:$0xf]
      %v372 = vld [vmem:[%s356 + $0x3c] sm:$0xf]
      %v373 = vld [vmem:[%s356 + $0x40] sm:$0xf]
      %v374 = vld [vmem:[%s356 + $0x44] sm:$0xf]
      %v375 = vld [vmem:[%s356 + $0x48] sm:$0x1]
      %v376 = vld [vmem:[#allocation2] sm:$0xff]
      %v377 = vld [vmem:[#allocation2 + $0x8] sm:$0xff]
      %v378 = vld [vmem:[#allocation2 + $0x10] sm:$0xff]
      %v379 = vld [vmem:[#allocation2 + $0x18] sm:$0xff]
      %v380 = vld [vmem:[#allocation2 + $0x20] sm:$0xff]
      %v381 = vld [vmem:[#allocation2 + $0x28] sm:$0xff]
      %v382 = vld [vmem:[#allocation2 + $0x30] sm:$0xff]
      %v383 = vld [vmem:[#allocation2 + $0x38] sm:$0xff]
      %v384 = vld [vmem:[#allocation2 + $0x40] sm:$0xff]
      %v385 = vld [vmem:[#allocation2 + $0x48] sm:$0xff]
      %v386 = vld [vmem:[#allocation2 + $0x50] sm:$0xff]
      %v387 = vld [vmem:[#allocation2 + $0x58] sm:$0xff]
      %v388 = vld [vmem:[#allocation2 + $0x60] sm:$0xff]
      %v389 = vld [vmem:[#allocation2 + $0x68] sm:$0xff]
      %v390 = vld [vmem:[#allocation2 + $0x70] sm:$0xff]
      %v391 = vld [vmem:[#allocation2 + $0x78] sm:$0xff]
      %v392 = vld [vmem:[%s4] sm:$0xf]
      %v393 = vld [vmem:[%s4 + $0x4] sm:$0xf]
      %v394 = vld [vmem:[%s4 + $0x8] sm:$0xf]
      %v395 = vld [vmem:[%s4 + $0xc] sm:$0xf]
      %v396 = vld [vmem:[%s4 + $0x10] sm:$0xf]
      %v397 = vld [vmem:[%s4 + $0x14] sm:$0xf]
      %v398 = vld [vmem:[%s4 + $0x18] sm:$0xf]
      %v399 = vld [vmem:[%s4 + $0x1c] sm:$0xf]
      %v400 = vld [vmem:[%s4 + $0x20] sm:$0xf]
      %v401 = vld [vmem:[%s4 + $0x24] sm:$0xf]
      %v402 = vld [vmem:[%s4 + $0x28] sm:$0xf]
      %v403 = vld [vmem:[%s4 + $0x2c] sm:$0xf]
      %v404 = vld [vmem:[%s4 + $0x30] sm:$0xf]
      %v405 = vld [vmem:[%s4 + $0x34] sm:$0xf]
      %v406 = vld [vmem:[%s4 + $0x38] sm:$0xf]
      %v407 = vld [vmem:[%s4 + $0x3c] sm:$0xf]
      %v424 = vunpack.c.l.b16 %v357
      %v425 = vunpack.c.l.b16 %v358
      %v426 = vunpack.c.l.b16 %v359
      %v427 = vunpack.c.l.b16 %v360
      %v428 = vunpack.c.l.b16 %v361
      %v429 = vunpack.c.l.b16 %v362
      %v430 = vunpack.c.l.b16 %v363
      %v431 = vunpack.c.l.b16 %v364
      %v432 = vunpack.c.l.b16 %v365
      %v433 = vunpack.c.l.b16 %v366
      %v434 = vunpack.c.l.b16 %v367
      %v435 = vunpack.c.l.b16 %v368
      %v436 = vunpack.c.l.b16 %v369
      %v437 = vunpack.c.l.b16 %v370
      %v438 = vunpack.c.l.b16 %v371
      %v439 = vunpack.c.l.b16 %v372
      %v440 = vpack.c.b16 %v425, %v424
      %v441 = vpack.c.b16 %v427, %v426
      %v442 = vpack.c.b16 %v429, %v428
      %v443 = vpack.c.b16 %v431, %v430
      %v444 = vpack.c.b16 %v433, %v432
      %v445 = vpack.c.b16 %v435, %v434
      %v446 = vpack.c.b16 %v437, %v436
      %v447 = vpack.c.b16 %v439, %v438
      %v472 = vunpack.c.l.b16 %v392
      %v473 = vunpack.c.l.b16 %v393
      %v474 = vunpack.c.l.b16 %v394
      %v475 = vunpack.c.l.b16 %v395
      %v476 = vunpack.c.l.b16 %v396
      %v477 = vunpack.c.l.b16 %v397
      %v478 = vunpack.c.l.b16 %v398
      %v479 = vunpack.c.l.b16 %v399
      %v480 = vunpack.c.l.b16 %v400
      %v481 = vunpack.c.l.b16 %v401
      %v482 = vunpack.c.l.b16 %v402
      %v483 = vunpack.c.l.b16 %v403
      %v484 = vunpack.c.l.b16 %v404
      %v485 = vunpack.c.l.b16 %v405
      %v486 = vunpack.c.l.b16 %v406
      %v487 = vunpack.c.l.b16 %v407
      %v488 = vpack.c.b16 %v473, %v472
      %v489 = vpack.c.b16 %v475, %v474
      %v490 = vpack.c.b16 %v477, %v476
      %v491 = vpack.c.b16 %v479, %v478
      %v492 = vpack.c.b16 %v481, %v480
      %v493 = vpack.c.b16 %v483, %v482
      %v494 = vpack.c.b16 %v485, %v484
      %v495 = vpack.c.b16 %v487, %v486
      %504 = vmatprep.subr.bf16.mxu0 0
      %505 = vmatpush1.bf16.msra.mxu0 %v488
      %506 = vmatprep.subr.bf16.mxu0 0
      %507 = vmatpush1.bf16.msra.mxu0 %v489
      %508 = vmatprep.subr.bf16.mxu0 0
      %509 = vmatpush1.bf16.msra.mxu0 %v490
      %510 = vmatprep.subr.bf16.mxu0 0
      %511 = vmatpush1.bf16.msra.mxu0 %v491
      %512 = vmatprep.subr.bf16.mxu0 0
      %513 = vmatpush1.bf16.msra.mxu0 %v492
      %514 = vmatprep.subr.bf16.mxu0 0
      %515 = vmatpush1.bf16.msra.mxu0 %v493
      %516 = vmatprep.subr.bf16.mxu0 0
      %517 = vmatpush1.bf16.msra.mxu0 %v494
      %518 = vmatprep.subr.bf16.mxu0 0
      %519 = vmatpush1.bf16.msra.mxu0 %v495
      %520 = vmatprep.subr.bf16.mxu0 0
      %521 = vmatpush1.bf16.msra.mxu0 0
      %522 = vmatprep.subr.bf16.mxu0 0
      %523 = vmatpush1.bf16.msra.mxu0 0
      %524 = vmatprep.subr.bf16.mxu0 0
      %525 = vmatpush1.bf16.msra.mxu0 0
      %526 = vmatprep.subr.bf16.mxu0 0
      %527 = vmatpush1.bf16.msra.mxu0 0
      %528 = vmatprep.subr.bf16.mxu0 0
      %529 = vmatpush1.bf16.msra.mxu0 0
      %530 = vmatprep.subr.bf16.mxu0 0
      %531 = vmatpush1.bf16.msra.mxu0 0
      %532 = vmatprep.subr.bf16.mxu0 0
      %533 = vmatpush1.bf16.msra.mxu0 0
      %534 = vmatprep.subr.bf16.mxu0 0
      %535 = vmatpush1.bf16.msra.mxu0 0
      %536 = vmatprep.mubr.bf16.mxu0 0
      %537 = vmatmul.mubr.bf16.gmra.mrb[0].mxu0 %v440
      %v538 = vpop.f32.mrb[0].mxu0
      %v539 = vadd.f32 0.0, %v538
      %v540 = vpop.f32.mrb[0].mxu0
      %v541 = vpop.f32.mrb[0].mxu0
      %v542 = vadd.f32 0.0, %v541
      %v543 = vpop.f32.mrb[0].mxu0
      %544 = vmatprep.mubr.bf16.mxu0 0
      %545 = vmatmul.mubr.bf16.gmra.mrb[0].mxu0 %v441
      %v546 = vpop.f32.mrb[0].mxu0
      %v547 = vadd.f32 0.0, %v546
      %v548 = vpop.f32.mrb[0].mxu0
      %v549 = vpop.f32.mrb[0].mxu0
      %v550 = vadd.f32 0.0, %v549
      %v551 = vpop.f32.mrb[0].mxu0
      %552 = vmatprep.mubr.bf16.mxu0 0
      %553 = vmatmul.mubr.bf16.gmra.mrb[0].mxu0 %v442
      %v554 = vpop.f32.mrb[0].mxu0
      %v555 = vadd.f32 0.0, %v554
      %v556 = vpop.f32.mrb[0].mxu0
      %v557 = vpop.f32.mrb[0].mxu0
      %v558 = vadd.f32 0.0, %v557
      %v559 = vpop.f32.mrb[0].mxu0
      %560 = vmatprep.mubr.bf16.mxu0 0
      %561 = vmatmul.mubr.bf16.gmra.mrb[0].mxu0 %v443
      %v562 = vpop.f32.mrb[0].mxu0
      %v563 = vadd.f32 0.0, %v562
      %v564 = vpop.f32.mrb[0].mxu0
      %v565 = vpop.f32.mrb[0].mxu0
      %v566 = vadd.f32 0.0, %v565
      %v567 = vpop.f32.mrb[0].mxu0
      %568 = vmatprep.mubr.bf16.mxu0 0
      %569 = vmatmul.mubr.bf16.gmra.mrb[0].mxu0 %v444
      %v570 = vpop.f32.mrb[0].mxu0
      %v571 = vadd.f32 0.0, %v570
      %v572 = vpop.f32.mrb[0].mxu0
      %v573 = vpop.f32.mrb[0].mxu0
      %v574 = vadd.f32 0.0, %v573
      %v575 = vpop.f32.mrb[0].mxu0
      %576 = vmatprep.mubr.bf16.mxu0 0
      %577 = vmatmul.mubr.bf16.gmra.mrb[0].mxu0 %v445
      %v578 = vpop.f32.mrb[0].mxu0
      %v579 = vadd.f32 0.0, %v578
      %v580 = vpop.f32.mrb[0].mxu0
      %v581 = vpop.f32.mrb[0].mxu0
      %v582 = vadd.f32 0.0, %v581
      %v583 = vpop.f32.mrb[0].mxu0
      %584 = vmatprep.mubr.bf16.mxu0 0
      %585 = vmatmul.mubr.bf16.gmra.mrb[0].mxu0 %v446
      %v586 = vpop.f32.mrb[0].mxu0
      %v587 = vadd.f32 0.0, %v586
      %v588 = vpop.f32.mrb[0].mxu0
      %v589 = vpop.f32.mrb[0].mxu0
      %v590 = vadd.f32 0.0, %v589
      %v591 = vpop.f32.mrb[0].mxu0
      %592 = vmatprep.mubr.bf16.mxu0 0
      %593 = vmatmul.mubr.bf16.gmra.mrb[0].mxu0 %v447
      %v594 = vpop.f32.mrb[0].mxu0
      %v595 = vadd.f32 0.0, %v594
      %v596 = vpop.f32.mrb[0].mxu0
      %v597 = vpop.f32.mrb[0].mxu0
      %v598 = vadd.f32 0.0, %v597
      %v599 = vpop.f32.mrb[0].mxu0
      %600 = vdwg.mxu0
      %v601 = vadd.f32 %v376, %v539
      %v602 = vadd.f32 %v377, %v542
      %v603 = vadd.f32 %v378, %v547
      %v604 = vadd.f32 %v379, %v550
      %v605 = vadd.f32 %v380, %v555
      %v606 = vadd.f32 %v381, %v558
      %v607 = vadd.f32 %v382, %v563
      %v608 = vadd.f32 %v383, %v566
      %v609 = vadd.f32 %v384, %v571
      %v610 = vadd.f32 %v385, %v574
      %v611 = vadd.f32 %v386, %v579
      %v612 = vadd.f32 %v387, %v582
      %v613 = vadd.f32 %v388, %v587
      %v614 = vadd.f32 %v389, %v590
      %v615 = vadd.f32 %v390, %v595
      %v616 = vadd.f32 %v391, %v598
      %617 = vst [vmem:[#allocation2] sm:$0xff] %v601
      %618 = vst [vmem:[#allocation2 + $0x8] sm:$0xff] %v602
      %619 = vst [vmem:[#allocation2 + $0x10] sm:$0xff] %v603
      %620 = vst [vmem:[#allocation2 + $0x18] sm:$0xff] %v604
      %621 = vst [vmem:[#allocation2 + $0x20] sm:$0xff] %v605
      %622 = vst [vmem:[#allocation2 + $0x28] sm:$0xff] %v606
      %623 = vst [vmem:[#allocation2 + $0x30] sm:$0xff] %v607
      %624 = vst [vmem:[#allocation2 + $0x38] sm:$0xff] %v608
      %625 = vst [vmem:[#allocation2 + $0x40] sm:$0xff] %v609
      %626 = vst [vmem:[#allocation2 + $0x48] sm:$0xff] %v610
      %627 = vst [vmem:[#allocation2 + $0x50] sm:$0xff] %v611
      %628 = vst [vmem:[#allocation2 + $0x58] sm:$0xff] %v612
      %629 = vst [vmem:[#allocation2 + $0x60] sm:$0xff] %v613
      %630 = vst [vmem:[#allocation2 + $0x68] sm:$0xff] %v614
      %631 = vst [vmem:[#allocation2 + $0x70] sm:$0xff] %v615
      %632 = vst [vmem:[#allocation2 + $0x78] sm:$0xff] %v616
      %v633 = vld [vmem:[#allocation2] sm:$0xff]
      %v634 = vld [vmem:[#allocation2 + $0x8] sm:$0xff]
      %v635 = vld [vmem:[#allocation2 + $0x10] sm:$0xff]
      %v636 = vld [vmem:[#allocation2 + $0x18] sm:$0xff]
      %v637 = vld [vmem:[#allocation2 + $0x20] sm:$0xff]
      %v638 = vld [vmem:[#allocation2 + $0x28] sm:$0xff]
      %v639 = vld [vmem:[#allocation2 + $0x30] sm:$0xff]
      %v640 = vld [vmem:[#allocation2 + $0x38] sm:$0xff]
      %v641 = vld [vmem:[#allocation2 + $0x40] sm:$0xff]
      %v642 = vld [vmem:[#allocation2 + $0x48] sm:$0xff]
      %v643 = vld [vmem:[#allocation2 + $0x50] sm:$0xff]
      %v644 = vld [vmem:[#allocation2 + $0x58] sm:$0xff]
      %v645 = vld [vmem:[#allocation2 + $0x60] sm:$0xff]
      %v646 = vld [vmem:[#allocation2 + $0x68] sm:$0xff]
      %v647 = vld [vmem:[#allocation2 + $0x70] sm:$0xff]
      %v648 = vld [vmem:[#allocation2 + $0x78] sm:$0xff]
      %s649 = scalar_lea.vmem %s4, 384
      %v650 = vld [vmem:[%s649] sm:$0xf]
      %v651 = vld [vmem:[%s649 + $0x4] sm:$0xf]
      %v652 = vld [vmem:[%s649 + $0x8] sm:$0xf]
      %v653 = vld [vmem:[%s649 + $0xc] sm:$0xf]
      %v654 = vld [vmem:[%s649 + $0x10] sm:$0xf]
      %v655 = vld [vmem:[%s649 + $0x14] sm:$0xf]
      %v656 = vld [vmem:[%s649 + $0x18] sm:$0xf]
      %v657 = vld [vmem:[%s649 + $0x1c] sm:$0xf]
      %v658 = vld [vmem:[%s649 + $0x20] sm:$0xf]
      %v659 = vld [vmem:[%s649 + $0x24] sm:$0xf]
      %v660 = vld [vmem:[%s649 + $0x28] sm:$0xf]
      %v661 = vld [vmem:[%s649 + $0x2c] sm:$0xf]
      %v662 = vld [vmem:[%s649 + $0x30] sm:$0xf]
      %v663 = vld [vmem:[%s649 + $0x34] sm:$0xf]
      %v664 = vld [vmem:[%s649 + $0x38] sm:$0xf]
      %v665 = vld [vmem:[%s649 + $0x3c] sm:$0xf]
      %v668 = vunpack.c.l.b16 %v373
      %v669 = vunpack.c.l.b16 %v374
      %v670 = vpack.c.b16 %v669, %v668
      %v688 = vunpack.c.l.b16 %v650
      %v689 = vunpack.c.l.b16 %v651
      %v690 = vunpack.c.l.b16 %v652
      %v691 = vunpack.c.l.b16 %v653
      %v692 = vunpack.c.l.b16 %v654
      %v693 = vunpack.c.l.b16 %v655
      %v694 = vunpack.c.l.b16 %v656
      %v695 = vunpack.c.l.b16 %v657
      %v696 = vunpack.c.l.b16 %v658
      %v697 = vunpack.c.l.b16 %v659
      %v698 = vunpack.c.l.b16 %v660
      %v699 = vunpack.c.l.b16 %v661
      %v700 = vunpack.c.l.b16 %v662
      %v701 = vunpack.c.l.b16 %v663
      %v702 = vunpack.c.l.b16 %v664
      %v703 = vunpack.c.l.b16 %v665
      %v704 = vpack.c.b16 %v689, %v688
      %v705 = vpack.c.b16 %v691, %v690
      %v706 = vpack.c.b16 %v693, %v692
      %v707 = vpack.c.b16 %v695, %v694
      %v708 = vpack.c.b16 %v697, %v696
      %v709 = vpack.c.b16 %v699, %v698
      %v710 = vpack.c.b16 %v701, %v700
      %v711 = vpack.c.b16 %v703, %v702
      %720 = vmatprep.subr.bf16.mxu0 0
      %721 = vmatpush1.bf16.msra.mxu0 %v704
      %722 = vmatprep.subr.bf16.mxu0 0
      %723 = vmatpush1.bf16.msra.mxu0 %v705
      %724 = vmatprep.subr.bf16.mxu0 0
      %725 = vmatpush1.bf16.msra.mxu0 %v706
      %726 = vmatprep.subr.bf16.mxu0 0
      %727 = vmatpush1.bf16.msra.mxu0 %v707
      %728 = vmatprep.subr.bf16.mxu0 0
      %729 = vmatpush1.bf16.msra.mxu0 %v708
      %730 = vmatprep.subr.bf16.mxu0 0
      %731 = vmatpush1.bf16.msra.mxu0 %v709
      %732 = vmatprep.subr.bf16.mxu0 0
      %733 = vmatpush1.bf16.msra.mxu0 %v710
      %734 = vmatprep.subr.bf16.mxu0 0
      %735 = vmatpush1.bf16.msra.mxu0 %v711
      %736 = vmatprep.subr.bf16.mxu0 0
      %737 = vmatpush1.bf16.msra.mxu0 0
      %738 = vmatprep.subr.bf16.mxu0 0
      %739 = vmatpush1.bf16.msra.mxu0 0
      %740 = vmatprep.subr.bf16.mxu0 0
      %741 = vmatpush1.bf16.msra.mxu0 0
      %742 = vmatprep.subr.bf16.mxu0 0
      %743 = vmatpush1.bf16.msra.mxu0 0
      %744 = vmatprep.subr.bf16.mxu0 0
      %745 = vmatpush1.bf16.msra.mxu0 0
      %746 = vmatprep.subr.bf16.mxu0 0
      %747 = vmatpush1.bf16.msra.mxu0 0
      %748 = vmatprep.subr.bf16.mxu0 0
      %749 = vmatpush1.bf16.msra.mxu0 0
      %750 = vmatprep.subr.bf16.mxu0 0
      %751 = vmatpush1.bf16.msra.mxu0 0
      %752 = vmatprep.mubr.bf16.mxu0 0
      %753 = vmatmul.mubr.bf16.gmra.mrb[0].mxu0 %v441
      %v754 = vpop.f32.mrb[0].mxu0
      %v755 = vadd.f32 0.0, %v754
      %v756 = vpop.f32.mrb[0].mxu0
      %v757 = vpop.f32.mrb[0].mxu0
      %v758 = vadd.f32 0.0, %v757
      %v759 = vpop.f32.mrb[0].mxu0
      %760 = vmatprep.mubr.bf16.mxu0 0
      %761 = vmatmul.mubr.bf16.gmra.mrb[0].mxu0 %v442
      %v762 = vpop.f32.mrb[0].mxu0
      %v763 = vadd.f32 0.0, %v762
      %v764 = vpop.f32.mrb[0].mxu0
      %v765 = vpop.f32.mrb[0].mxu0
      %v766 = vadd.f32 0.0, %v765
      %v767 = vpop.f32.mrb[0].mxu0
      %768 = vmatprep.mubr.bf16.mxu0 0
      %769 = vmatmul.mubr.bf16.gmra.mrb[0].mxu0 %v443
      %v770 = vpop.f32.mrb[0].mxu0
      %v771 = vadd.f32 0.0, %v770
      %v772 = vpop.f32.mrb[0].mxu0
      %v773 = vpop.f32.mrb[0].mxu0
      %v774 = vadd.f32 0.0, %v773
      %v775 = vpop.f32.mrb[0].mxu0
      %776 = vmatprep.mubr.bf16.mxu0 0
      %777 = vmatmul.mubr.bf16.gmra.mrb[0].mxu0 %v444
      %v778 = vpop.f32.mrb[0].mxu0
      %v779 = vadd.f32 0.0, %v778
      %v780 = vpop.f32.mrb[0].mxu0
      %v781 = vpop.f32.mrb[0].mxu0
      %v782 = vadd.f32 0.0, %v781
      %v783 = vpop.f32.mrb[0].mxu0
      %784 = vmatprep.mubr.bf16.mxu0 0
      %785 = vmatmul.mubr.bf16.gmra.mrb[0].mxu0 %v445
      %v786 = vpop.f32.mrb[0].mxu0
      %v787 = vadd.f32 0.0, %v786
      %v788 = vpop.f32.mrb[0].mxu0
      %v789 = vpop.f32.mrb[0].mxu0
      %v790 = vadd.f32 0.0, %v789
      %v791 = vpop.f32.mrb[0].mxu0
      %792 = vmatprep.mubr.bf16.mxu0 0
      %793 = vmatmul.mubr.bf16.gmra.mrb[0].mxu0 %v446
      %v794 = vpop.f32.mrb[0].mxu0
      %v795 = vadd.f32 0.0, %v794
      %v796 = vpop.f32.mrb[0].mxu0
      %v797 = vpop.f32.mrb[0].mxu0
      %v798 = vadd.f32 0.0, %v797
      %v799 = vpop.f32.mrb[0].mxu0
      %800 = vmatprep.mubr.bf16.mxu0 0
      %801 = vmatmul.mubr.bf16.gmra.mrb[0].mxu0 %v447
      %v802 = vpop.f32.mrb[0].mxu0
      %v803 = vadd.f32 0.0, %v802
      %v804 = vpop.f32.mrb[0].mxu0
      %v805 = vpop.f32.mrb[0].mxu0
      %v806 = vadd.f32 0.0, %v805
      %v807 = vpop.f32.mrb[0].mxu0
      %808 = vmatprep.mubr.bf16.mxu0 0
      %809 = vmatmul.mubr.bf16.gmra.mrb[0].mxu0 %v670
      %v810 = vpop.f32.mrb[0].mxu0
      %v811 = vadd.f32 0.0, %v810
      %v812 = vpop.f32.mrb[0].mxu0
      %v813 = vpop.f32.mrb[0].mxu0
      %v814 = vadd.f32 0.0, %v813
      %v815 = vpop.f32.mrb[0].mxu0
      %816 = vdwg.mxu0
      %v817 = vadd.f32 %v633, %v755
      %v818 = vadd.f32 %v634, %v758
      %v819 = vadd.f32 %v635, %v763
      %v820 = vadd.f32 %v636, %v766
      %v821 = vadd.f32 %v637, %v771
      %v822 = vadd.f32 %v638, %v774
      %v823 = vadd.f32 %v639, %v779
      %v824 = vadd.f32 %v640, %v782
      %v825 = vadd.f32 %v641, %v787
      %v826 = vadd.f32 %v642, %v790
      %v827 = vadd.f32 %v643, %v795
      %v828 = vadd.f32 %v644, %v798
      %v829 = vadd.f32 %v645, %v803
      %v830 = vadd.f32 %v646, %v806
      %v831 = vadd.f32 %v647, %v811
      %v832 = vadd.f32 %v648, %v814
      %833 = vst [vmem:[#allocation2] sm:$0xff] %v817
      %834 = vst [vmem:[#allocation2 + $0x8] sm:$0xff] %v818
      %835 = vst [vmem:[#allocation2 + $0x10] sm:$0xff] %v819
      %836 = vst [vmem:[#allocation2 + $0x18] sm:$0xff] %v820
      %837 = vst [vmem:[#allocation2 + $0x20] sm:$0xff] %v821
      %838 = vst [vmem:[#allocation2 + $0x28] sm:$0xff] %v822
      %839 = vst [vmem:[#allocation2 + $0x30] sm:$0xff] %v823
      %840 = vst [vmem:[#allocation2 + $0x38] sm:$0xff] %v824
      %841 = vst [vmem:[#allocation2 + $0x40] sm:$0xff] %v825
      %842 = vst [vmem:[#allocation2 + $0x48] sm:$0xff] %v826
      %843 = vst [vmem:[#allocation2 + $0x50] sm:$0xff] %v827
      %844 = vst [vmem:[#allocation2 + $0x58] sm:$0xff] %v828
      %845 = vst [vmem:[#allocation2 + $0x60] sm:$0xff] %v829
      %846 = vst [vmem:[#allocation2 + $0x68] sm:$0xff] %v830
      %847 = vst [vmem:[#allocation2 + $0x70] sm:$0xff] %v831
      %848 = vst [vmem:[#allocation2 + $0x78] sm:$0xff] %v832
      %v849 = vld [vmem:[#allocation2] sm:$0xff]
      %v850 = vld [vmem:[#allocation2 + $0x8] sm:$0xff]
      %v851 = vld [vmem:[#allocation2 + $0x10] sm:$0xff]
      %v852 = vld [vmem:[#allocation2 + $0x18] sm:$0xff]
      %v853 = vld [vmem:[#allocation2 + $0x20] sm:$0xff]
      %v854 = vld [vmem:[#allocation2 + $0x28] sm:$0xff]
      %v855 = vld [vmem:[#allocation2 + $0x30] sm:$0xff]
      %v856 = vld [vmem:[#allocation2 + $0x38] sm:$0xff]
      %v857 = vld [vmem:[#allocation2 + $0x40] sm:$0xff]
      %v858 = vld [vmem:[#allocation2 + $0x48] sm:$0xff]
      %v859 = vld [vmem:[#allocation2 + $0x50] sm:$0xff]
      %v860 = vld [vmem:[#allocation2 + $0x58] sm:$0xff]
      %v861 = vld [vmem:[#allocation2 + $0x60] sm:$0xff]
      %v862 = vld [vmem:[#allocation2 + $0x68] sm:$0xff]
      %v863 = vld [vmem:[#allocation2 + $0x70] sm:$0xff]
      %v864 = vld [vmem:[#allocation2 + $0x78] sm:$0xff]
      %s865 = scalar_lea.vmem %s4, 128
      %v866 = vld [vmem:[%s865] sm:$0xf]
      %v867 = vld [vmem:[%s865 + $0x4] sm:$0xf]
      %v868 = vld [vmem:[%s865 + $0x8] sm:$0xf]
      %v869 = vld [vmem:[%s865 + $0xc] sm:$0xf]
      %v870 = vld [vmem:[%s865 + $0x10] sm:$0xf]
      %v871 = vld [vmem:[%s865 + $0x14] sm:$0xf]
      %v872 = vld [vmem:[%s865 + $0x18] sm:$0xf]
      %v873 = vld [vmem:[%s865 + $0x1c] sm:$0xf]
      %v874 = vld [vmem:[%s865 + $0x20] sm:$0xf]
      %v875 = vld [vmem:[%s865 + $0x24] sm:$0xf]
      %v876 = vld [vmem:[%s865 + $0x28] sm:$0xf]
      %v877 = vld [vmem:[%s865 + $0x2c] sm:$0xf]
      %v878 = vld [vmem:[%s865 + $0x30] sm:$0xf]
      %v879 = vld [vmem:[%s865 + $0x34] sm:$0xf]
      %v880 = vld [vmem:[%s865 + $0x38] sm:$0xf]
      %v881 = vld [vmem:[%s865 + $0x3c] sm:$0xf]
      %v882 = vpack.c.b16 %v668, %v668
      %vm883 = vsmask.f32 7424
      %v885 = vshrl.u32 %v440, 16
      %v887 = vshll.u32 %v440, 16
      %v889 = vrot.slane %v887, 1
      %v890 = vor.u32 %v885, %v889
      %v892 = vshll.u32 %v441, 16
      %v894 = vrot.slane %v892, 1
      %v895 = vsel %vm883, %v890, %v894
      %v896 = vshrl.u32 %v441, 16
      %v898 = vor.u32 %v896, %v894
      %v900 = vshll.u32 %v442, 16
      %v902 = vrot.slane %v900, 1
      %v903 = vsel %vm883, %v898, %v902
      %v904 = vshrl.u32 %v442, 16
      %v906 = vor.u32 %v904, %v902
      %v908 = vshll.u32 %v443, 16
      %v910 = vrot.slane %v908, 1
      %v911 = vsel %vm883, %v906, %v910
      %v912 = vshrl.u32 %v443, 16
      %v914 = vor.u32 %v912, %v910
      %v916 = vshll.u32 %v444, 16
      %v918 = vrot.slane %v916, 1
      %v919 = vsel %vm883, %v914, %v918
      %v920 = vshrl.u32 %v444, 16
      %v922 = vor.u32 %v920, %v918
      %v924 = vshll.u32 %v445, 16
      %v926 = vrot.slane %v924, 1
      %v927 = vsel %vm883, %v922, %v926
      %v928 = vshrl.u32 %v445, 16
      %v930 = vor.u32 %v928, %v926
      %v932 = vshll.u32 %v446, 16
      %v934 = vrot.slane %v932, 1
      %v935 = vsel %vm883, %v930, %v934
      %v936 = vshrl.u32 %v446, 16
      %v938 = vor.u32 %v936, %v934
      %v940 = vshll.u32 %v447, 16
      %v942 = vrot.slane %v940, 1
      %v943 = vsel %vm883, %v938, %v942
      %v944 = vshrl.u32 %v447, 16
      %v946 = vor.u32 %v944, %v942
      %v948 = vshll.u32 %v882, 16
      %v950 = vrot.slane %v948, 1
      %v951 = vsel %vm883, %v946, %v950
      %v976 = vunpack.c.l.b16 %v866
      %v977 = vunpack.c.l.b16 %v867
      %v978 = vunpack.c.l.b16 %v868
      %v979 = vunpack.c.l.b16 %v869
      %v980 = vunpack.c.l.b16 %v870
      %v981 = vunpack.c.l.b16 %v871
      %v982 = vunpack.c.l.b16 %v872
      %v983 = vunpack.c.l.b16 %v873
      %v984 = vunpack.c.l.b16 %v874
      %v985 = vunpack.c.l.b16 %v875
      %v986 = vunpack.c.l.b16 %v876
      %v987 = vunpack.c.l.b16 %v877
      %v988 = vunpack.c.l.b16 %v878
      %v989 = vunpack.c.l.b16 %v879
      %v990 = vunpack.c.l.b16 %v880
      %v991 = vunpack.c.l.b16 %v881
      %v992 = vpack.c.b16 %v977, %v976
      %v993 = vpack.c.b16 %v979, %v978
      %v994 = vpack.c.b16 %v981, %v980
      %v995 = vpack.c.b16 %v983, %v982
      %v996 = vpack.c.b16 %v985, %v984
      %v997 = vpack.c.b16 %v987, %v986
      %v998 = vpack.c.b16 %v989, %v988
      %v999 = vpack.c.b16 %v991, %v990
      %1008 = vmatprep.subr.bf16.mxu0 0
      %1009 = vmatpush1.bf16.msra.mxu0 %v992
      %1010 = vmatprep.subr.bf16.mxu0 0
      %1011 = vmatpush1.bf16.msra.mxu0 %v993
      %1012 = vmatprep.subr.bf16.mxu0 0
      %1013 = vmatpush1.bf16.msra.mxu0 %v994
      %1014 = vmatprep.subr.bf16.mxu0 0
      %1015 = vmatpush1.bf16.msra.mxu0 %v995
      %1016 = vmatprep.subr.bf16.mxu0 0
      %1017 = vmatpush1.bf16.msra.mxu0 %v996
      %1018 = vmatprep.subr.bf16.mxu0 0
      %1019 = vmatpush1.bf16.msra.mxu0 %v997
      %1020 = vmatprep.subr.bf16.mxu0 0
      %1021 = vmatpush1.bf16.msra.mxu0 %v998
      %1022 = vmatprep.subr.bf16.mxu0 0
      %1023 = vmatpush1.bf16.msra.mxu0 %v999
      %1024 = vmatprep.subr.bf16.mxu0 0
      %1025 = vmatpush1.bf16.msra.mxu0 0
      %1026 = vmatprep.subr.bf16.mxu0 0
      %1027 = vmatpush1.bf16.msra.mxu0 0
      %1028 = vmatprep.subr.bf16.mxu0 0
      %1029 = vmatpush1.bf16.msra.mxu0 0
      %1030 = vmatprep.subr.bf16.mxu0 0
      %1031 = vmatpush1.bf16.msra.mxu0 0
      %1032 = vmatprep.subr.bf16.mxu0 0
      %1033 = vmatpush1.bf16.msra.mxu0 0
      %1034 = vmatprep.subr.bf16.mxu0 0
      %1035 = vmatpush1.bf16.msra.mxu0 0
      %1036 = vmatprep.subr.bf16.mxu0 0
      %1037 = vmatpush1.bf16.msra.mxu0 0
      %1038 = vmatprep.subr.bf16.mxu0 0
      %1039 = vmatpush1.bf16.msra.mxu0 0
      %1040 = vmatprep.mubr.bf16.mxu0 0
      %1041 = vmatmul.mubr.bf16.gmra.mrb[0].mxu0 %v895
      %v1042 = vpop.f32.mrb[0].mxu0
      %v1043 = vadd.f32 0.0, %v1042
      %v1044 = vpop.f32.mrb[0].mxu0
      %v1045 = vpop.f32.mrb[0].mxu0
      %v1046 = vadd.f32 0.0, %v1045
      %v1047 = vpop.f32.mrb[0].mxu0
      %1048 = vmatprep.mubr.bf16.mxu0 0
      %1049 = vmatmul.mubr.bf16.gmra.mrb[0].mxu0 %v903
      %v1050 = vpop.f32.mrb[0].mxu0
      %v1051 = vadd.f32 0.0, %v1050
      %v1052 = vpop.f32.mrb[0].mxu0
      %v1053 = vpop.f32.mrb[0].mxu0
      %v1054 = vadd.f32 0.0, %v1053
      %v1055 = vpop.f32.mrb[0].mxu0
      %1056 = vmatprep.mubr.bf16.mxu0 0
      %1057 = vmatmul.mubr.bf16.gmra.mrb[0].mxu0 %v911
      %v1058 = vpop.f32.mrb[0].mxu0
      %v1059 = vadd.f32 0.0, %v1058
      %v1060 = vpop.f32.mrb[0].mxu0
      %v1061 = vpop.f32.mrb[0].mxu0
      %v1062 = vadd.f32 0.0, %v1061
      %v1063 = vpop.f32.mrb[0].mxu0
      %1064 = vmatprep.mubr.bf16.mxu0 0
      %1065 = vmatmul.mubr.bf16.gmra.mrb[0].mxu0 %v919
      %v1066 = vpop.f32.mrb[0].mxu0
      %v1067 = vadd.f32 0.0, %v1066
      %v1068 = vpop.f32.mrb[0].mxu0
      %v1069 = vpop.f32.mrb[0].mxu0
      %v1070 = vadd.f32 0.0, %v1069
      %v1071 = vpop.f32.mrb[0].mxu0
      %1072 = vmatprep.mubr.bf16.mxu0 0
      %1073 = vmatmul.mubr.bf16.gmra.mrb[0].mxu0 %v927
      %v1074 = vpop.f32.mrb[0].mxu0
      %v1075 = vadd.f32 0.0, %v1074
      %v1076 = vpop.f32.mrb[0].mxu0
      %v1077 = vpop.f32.mrb[0].mxu0
      %v1078 = vadd.f32 0.0, %v1077
      %v1079 = vpop.f32.mrb[0].mxu0
      %1080 = vmatprep.mubr.bf16.mxu0 0
      %1081 = vmatmul.mubr.bf16.gmra.mrb[0].mxu0 %v935
      %v1082 = vpop.f32.mrb[0].mxu0
      %v1083 = vadd.f32 0.0, %v1082
      %v1084 = vpop.f32.mrb[0].mxu0
      %v1085 = vpop.f32.mrb[0].mxu0
      %v1086 = vadd.f32 0.0, %v1085
      %v1087 = vpop.f32.mrb[0].mxu0
      %1088 = vmatprep.mubr.bf16.mxu0 0
      %1089 = vmatmul.mubr.bf16.gmra.mrb[0].mxu0 %v943
      %v1090 = vpop.f32.mrb[0].mxu0
      %v1091 = vadd.f32 0.0, %v1090
      %v1092 = vpop.f32.mrb[0].mxu0
      %v1093 = vpop.f32.mrb[0].mxu0
      %v1094 = vadd.f32 0.0, %v1093
      %v1095 = vpop.f32.mrb[0].mxu0
      %1096 = vmatprep.mubr.bf16.mxu0 0
      %1097 = vmatmul.mubr.bf16.gmra.mrb[0].mxu0 %v951
      %v1098 = vpop.f32.mrb[0].mxu0
      %v1099 = vadd.f32 0.0, %v1098
      %v1100 = vpop.f32.mrb[0].mxu0
      %v1101 = vpop.f32.mrb[0].mxu0
      %v1102 = vadd.f32 0.0, %v1101
      %v1103 = vpop.f32.mrb[0].mxu0
      %1104 = vdwg.mxu0
      %v1105 = vadd.f32 %v849, %v1043
      %v1106 = vadd.f32 %v850, %v1046
      %v1107 = vadd.f32 %v851, %v1051
      %v1108 = vadd.f32 %v852, %v1054
      %v1109 = vadd.f32 %v853, %v1059
      %v1110 = vadd.f32 %v854, %v1062
      %v1111 = vadd.f32 %v855, %v1067
      %v1112 = vadd.f32 %v856, %v1070
      %v1113 = vadd.f32 %v857, %v1075
      %v1114 = vadd.f32 %v858, %v1078
      %v1115 = vadd.f32 %v859, %v1083
      %v1116 = vadd.f32 %v860, %v1086
      %v1117 = vadd.f32 %v861, %v1091
      %v1118 = vadd.f32 %v862, %v1094
      %v1119 = vadd.f32 %v863, %v1099
      %v1120 = vadd.f32 %v864, %v1102
      %1121 = vst [vmem:[#allocation2] sm:$0xff] %v1105
      %1122 = vst [vmem:[#allocation2 + $0x8] sm:$0xff] %v1106
      %1123 = vst [vmem:[#allocation2 + $0x10] sm:$0xff] %v1107
      %1124 = vst [vmem:[#allocation2 + $0x18] sm:$0xff] %v1108
      %1125 = vst [vmem:[#allocation2 + $0x20] sm:$0xff] %v1109
      %1126 = vst [vmem:[#allocation2 + $0x28] sm:$0xff] %v1110
      %1127 = vst [vmem:[#allocation2 + $0x30] sm:$0xff] %v1111
      %1128 = vst [vmem:[#allocation2 + $0x38] sm:$0xff] %v1112
      %1129 = vst [vmem:[#allocation2 + $0x40] sm:$0xff] %v1113
      %1130 = vst [vmem:[#allocation2 + $0x48] sm:$0xff] %v1114
      %1131 = vst [vmem:[#allocation2 + $0x50] sm:$0xff] %v1115
      %1132 = vst [vmem:[#allocation2 + $0x58] sm:$0xff] %v1116
      %1133 = vst [vmem:[#allocation2 + $0x60] sm:$0xff] %v1117
      %1134 = vst [vmem:[#allocation2 + $0x68] sm:$0xff] %v1118
      %1135 = vst [vmem:[#allocation2 + $0x70] sm:$0xff] %v1119
      %1136 = vst [vmem:[#allocation2 + $0x78] sm:$0xff] %v1120
      %v1137 = vld [vmem:[#allocation2] sm:$0xff]
      %v1138 = vld [vmem:[#allocation2 + $0x8] sm:$0xff]
      %v1139 = vld [vmem:[#allocation2 + $0x10] sm:$0xff]
      %v1140 = vld [vmem:[#allocation2 + $0x18] sm:$0xff]
      %v1141 = vld [vmem:[#allocation2 + $0x20] sm:$0xff]
      %v1142 = vld [vmem:[#allocation2 + $0x28] sm:$0xff]
      %v1143 = vld [vmem:[#allocation2 + $0x30] sm:$0xff]
      %v1144 = vld [vmem:[#allocation2 + $0x38] sm:$0xff]
      %v1145 = vld [vmem:[#allocation2 + $0x40] sm:$0xff]
      %v1146 = vld [vmem:[#allocation2 + $0x48] sm:$0xff]
      %v1147 = vld [vmem:[#allocation2 + $0x50] sm:$0xff]
      %v1148 = vld [vmem:[#allocation2 + $0x58] sm:$0xff]
      %v1149 = vld [vmem:[#allocation2 + $0x60] sm:$0xff]
      %v1150 = vld [vmem:[#allocation2 + $0x68] sm:$0xff]
      %v1151 = vld [vmem:[#allocation2 + $0x70] sm:$0xff]
      %v1152 = vld [vmem:[#allocation2 + $0x78] sm:$0xff]
      %s1153 = scalar_lea.vmem %s4, 512
      %v1154 = vld [vmem:[%s1153] sm:$0xf]
      %v1155 = vld [vmem:[%s1153 + $0x4] sm:$0xf]
      %v1156 = vld [vmem:[%s1153 + $0x8] sm:$0xf]
      %v1157 = vld [vmem:[%s1153 + $0xc] sm:$0xf]
      %v1158 = vld [vmem:[%s1153 + $0x10] sm:$0xf]
      %v1159 = vld [vmem:[%s1153 + $0x14] sm:$0xf]
      %v1160 = vld [vmem:[%s1153 + $0x18] sm:$0xf]
      %v1161 = vld [vmem:[%s1153 + $0x1c] sm:$0xf]
      %v1162 = vld [vmem:[%s1153 + $0x20] sm:$0xf]
      %v1163 = vld [vmem:[%s1153 + $0x24] sm:$0xf]
      %v1164 = vld [vmem:[%s1153 + $0x28] sm:$0xf]
      %v1165 = vld [vmem:[%s1153 + $0x2c] sm:$0xf]
      %v1166 = vld [vmem:[%s1153 + $0x30] sm:$0xf]
      %v1167 = vld [vmem:[%s1153 + $0x34] sm:$0xf]
      %v1168 = vld [vmem:[%s1153 + $0x38] sm:$0xf]
      %v1169 = vld [vmem:[%s1153 + $0x3c] sm:$0xf]
      %v1171 = vunpack.c.l.b16 %v375
      %v1172 = vpack.c.b16 %v1171, %v1171
      %v1174 = vshll.u32 %v670, 16
      %v1176 = vrot.slane %v1174, 1
      %v1177 = vsel %vm883, %v946, %v1176
      %v1178 = vshrl.u32 %v670, 16
      %v1180 = vor.u32 %v1178, %v1176
      %v1182 = vshll.u32 %v1172, 16
      %v1184 = vrot.slane %v1182, 1
      %v1185 = vsel %vm883, %v1180, %v1184
      %v1204 = vunpack.c.l.b16 %v1154
      %v1205 = vunpack.c.l.b16 %v1155
      %v1206 = vunpack.c.l.b16 %v1156
      %v1207 = vunpack.c.l.b16 %v1157
      %v1208 = vunpack.c.l.b16 %v1158
      %v1209 = vunpack.c.l.b16 %v1159
      %v1210 = vunpack.c.l.b16 %v1160
      %v1211 = vunpack.c.l.b16 %v1161
      %v1212 = vunpack.c.l.b16 %v1162
      %v1213 = vunpack.c.l.b16 %v1163
      %v1214 = vunpack.c.l.b16 %v1164
      %v1215 = vunpack.c.l.b16 %v1165
      %v1216 = vunpack.c.l.b16 %v1166
      %v1217 = vunpack.c.l.b16 %v1167
      %v1218 = vunpack.c.l.b16 %v1168
      %v1219 = vunpack.c.l.b16 %v1169
      %v1220 = vpack.c.b16 %v1205, %v1204
      %v1221 = vpack.c.b16 %v1207, %v1206
      %v1222 = vpack.c.b16 %v1209, %v1208
      %v1223 = vpack.c.b16 %v1211, %v1210
      %v1224 = vpack.c.b16 %v1213, %v1212
      %v1225 = vpack.c.b16 %v1215, %v1214
      %v1226 = vpack.c.b16 %v1217, %v1216
      %v1227 = vpack.c.b16 %v1219, %v1218
      %1236 = vmatprep.subr.bf16.mxu0 0
      %1237 = vmatpush1.bf16.msra.mxu0 %v1220
      %1238 = vmatprep.subr.bf16.mxu0 0
      %1239 = vmatpush1.bf16.msra.mxu0 %v1221
      %1240 = vmatprep.subr.bf16.mxu0 0
      %1241 = vmatpush1.bf16.msra.mxu0 %v1222
      %1242 = vmatprep.subr.bf16.mxu0 0
      %1243 = vmatpush1.bf16.msra.mxu0 %v1223
      %1244 = vmatprep.subr.bf16.mxu0 0
      %1245 = vmatpush1.bf16.msra.mxu0 %v1224
      %1246 = vmatprep.subr.bf16.mxu0 0
      %1247 = vmatpush1.bf16.msra.mxu0 %v1225
      %1248 = vmatprep.subr.bf16.mxu0 0
      %1249 = vmatpush1.bf16.msra.mxu0 %v1226
      %1250 = vmatprep.subr.bf16.mxu0 0
      %1251 = vmatpush1.bf16.msra.mxu0 %v1227
      %1252 = vmatprep.subr.bf16.mxu0 0
      %1253 = vmatpush1.bf16.msra.mxu0 0
      %1254 = vmatprep.subr.bf16.mxu0 0
      %1255 = vmatpush1.bf16.msra.mxu0 0
      %1256 = vmatprep.subr.bf16.mxu0 0
      %1257 = vmatpush1.bf16.msra.mxu0 0
      %1258 = vmatprep.subr.bf16.mxu0 0
      %1259 = vmatpush1.bf16.msra.mxu0 0
      %1260 = vmatprep.subr.bf16.mxu0 0
      %1261 = vmatpush1.bf16.msra.mxu0 0
      %1262 = vmatprep.subr.bf16.mxu0 0
      %1263 = vmatpush1.bf16.msra.mxu0 0
      %1264 = vmatprep.subr.bf16.mxu0 0
      %1265 = vmatpush1.bf16.msra.mxu0 0
      %1266 = vmatprep.subr.bf16.mxu0 0
      %1267 = vmatpush1.bf16.msra.mxu0 0
      %1268 = vmatprep.mubr.bf16.mxu0 0
      %1269 = vmatmul.mubr.bf16.gmra.mrb[0].mxu0 %v903
      %v1270 = vpop.f32.mrb[0].mxu0
      %v1271 = vadd.f32 0.0, %v1270
      %v1272 = vpop.f32.mrb[0].mxu0
      %v1273 = vpop.f32.mrb[0].mxu0
      %v1274 = vadd.f32 0.0, %v1273
      %v1275 = vpop.f32.mrb[0].mxu0
      %1276 = vmatprep.mubr.bf16.mxu0 0
      %1277 = vmatmul.mubr.bf16.gmra.mrb[0].mxu0 %v911
      %v1278 = vpop.f32.mrb[0].mxu0
      %v1279 = vadd.f32 0.0, %v1278
      %v1280 = vpop.f32.mrb[0].mxu0
      %v1281 = vpop.f32.mrb[0].mxu0
      %v1282 = vadd.f32 0.0, %v1281
      %v1283 = vpop.f32.mrb[0].mxu0
      %1284 = vmatprep.mubr.bf16.mxu0 0
      %1285 = vmatmul.mubr.bf16.gmra.mrb[0].mxu0 %v919
      %v1286 = vpop.f32.mrb[0].mxu0
      %v1287 = vadd.f32 0.0, %v1286
      %v1288 = vpop.f32.mrb[0].mxu0
      %v1289 = vpop.f32.mrb[0].mxu0
      %v1290 = vadd.f32 0.0, %v1289
      %v1291 = vpop.f32.mrb[0].mxu0
      %1292 = vmatprep.mubr.bf16.mxu0 0
      %1293 = vmatmul.mubr.bf16.gmra.mrb[0].mxu0 %v927
      %v1294 = vpop.f32.mrb[0].mxu0
      %v1295 = vadd.f32 0.0, %v1294
      %v1296 = vpop.f32.mrb[0].mxu0
      %v1297 = vpop.f32.mrb[0].mxu0
      %v1298 = vadd.f32 0.0, %v1297
      %v1299 = vpop.f32.mrb[0].mxu0
      %1300 = vmatprep.mubr.bf16.mxu0 0
      %1301 = vmatmul.mubr.bf16.gmra.mrb[0].mxu0 %v935
      %v1302 = vpop.f32.mrb[0].mxu0
      %v1303 = vadd.f32 0.0, %v1302
      %v1304 = vpop.f32.mrb[0].mxu0
      %v1305 = vpop.f32.mrb[0].mxu0
      %v1306 = vadd.f32 0.0, %v1305
      %v1307 = vpop.f32.mrb[0].mxu0
      %1308 = vmatprep.mubr.bf16.mxu0 0
      %1309 = vmatmul.mubr.bf16.gmra.mrb[0].mxu0 %v943
      %v1310 = vpop.f32.mrb[0].mxu0
      %v1311 = vadd.f32 0.0, %v1310
      %v1312 = vpop.f32.mrb[0].mxu0
      %v1313 = vpop.f32.mrb[0].mxu0
      %v1314 = vadd.f32 0.0, %v1313
      %v1315 = vpop.f32.mrb[0].mxu0
      %1316 = vmatprep.mubr.bf16.mxu0 0
      %1317 = vmatmul.mubr.bf16.gmra.mrb[0].mxu0 %v1177
      %v1318 = vpop.f32.mrb[0].mxu0
      %v1319 = vadd.f32 0.0, %v1318
      %v1320 = vpop.f32.mrb[0].mxu0
      %v1321 = vpop.f32.mrb[0].mxu0
      %v1322 = vadd.f32 0.0, %v1321
      %v1323 = vpop.f32.mrb[0].mxu0
      %1324 = vmatprep.mubr.bf16.mxu0 0
      %1325 = vmatmul.mubr.bf16.gmra.mrb[0].mxu0 %v1185
      %v1326 = vpop.f32.mrb[0].mxu0
      %v1327 = vadd.f32 0.0, %v1326
      %v1328 = vpop.f32.mrb[0].mxu0
      %v1329 = vpop.f32.mrb[0].mxu0
      %v1330 = vadd.f32 0.0, %v1329
      %v1331 = vpop.f32.mrb[0].mxu0
      %1332 = vdwg.mxu0
      %v1333 = vadd.f32 %v1137, %v1271
      %v1334 = vadd.f32 %v1138, %v1274
      %v1335 = vadd.f32 %v1139, %v1279
      %v1336 = vadd.f32 %v1140, %v1282
      %v1337 = vadd.f32 %v1141, %v1287
      %v1338 = vadd.f32 %v1142, %v1290
      %v1339 = vadd.f32 %v1143, %v1295
      %v1340 = vadd.f32 %v1144, %v1298
      %v1341 = vadd.f32 %v1145, %v1303
      %v1342 = vadd.f32 %v1146, %v1306
      %v1343 = vadd.f32 %v1147, %v1311
      %v1344 = vadd.f32 %v1148, %v1314
      %v1345 = vadd.f32 %v1149, %v1319
      %v1346 = vadd.f32 %v1150, %v1322
      %v1347 = vadd.f32 %v1151, %v1327
      %v1348 = vadd.f32 %v1152, %v1330
      %1349 = vst [vmem:[#allocation2] sm:$0xff] %v1333
      %1350 = vst [vmem:[#allocation2 + $0x8] sm:$0xff] %v1334
      %1351 = vst [vmem:[#allocation2 + $0x10] sm:$0xff] %v1335
      %1352 = vst [vmem:[#allocation2 + $0x18] sm:$0xff] %v1336
      %1353 = vst [vmem:[#allocation2 + $0x20] sm:$0xff] %v1337
      %1354 = vst [vmem:[#allocation2 + $0x28] sm:$0xff] %v1338
      %1355 = vst [vmem:[#allocation2 + $0x30] sm:$0xff] %v1339
      %1356 = vst [vmem:[#allocation2 + $0x38] sm:$0xff] %v1340
      %1357 = vst [vmem:[#allocation2 + $0x40] sm:$0xff] %v1341
      %1358 = vst [vmem:[#allocation2 + $0x48] sm:$0xff] %v1342
      %1359 = vst [vmem:[#allocation2 + $0x50] sm:$0xff] %v1343
      %1360 = vst [vmem:[#allocation2 + $0x58] sm:$0xff] %v1344
      %1361 = vst [vmem:[#allocation2 + $0x60] sm:$0xff] %v1345
      %1362 = vst [vmem:[#allocation2 + $0x68] sm:$0xff] %v1346
      %1363 = vst [vmem:[#allocation2 + $0x70] sm:$0xff] %v1347
      %1364 = vst [vmem:[#allocation2 + $0x78] sm:$0xff] %v1348
      %s1365 = smul.addr %s353, 4
      %s1366 = scalar_lea.vmem %s314, %s1365
      %v1367 = vld [vmem:[%s1366] sm:$0xf]
      %v1368 = vld [vmem:[%s1366 + $0x4] sm:$0xf]
      %v1369 = vld [vmem:[%s1366 + $0x8] sm:$0xf]
      %v1370 = vld [vmem:[%s1366 + $0xc] sm:$0xf]
      %v1371 = vld [vmem:[%s1366 + $0x10] sm:$0xf]
      %v1372 = vld [vmem:[%s1366 + $0x14] sm:$0xf]
      %v1373 = vld [vmem:[%s1366 + $0x18] sm:$0xf]
      %v1374 = vld [vmem:[%s1366 + $0x1c] sm:$0xf]
      %v1375 = vld [vmem:[%s1366 + $0x20] sm:$0xf]
      %v1376 = vld [vmem:[%s1366 + $0x24] sm:$0xf]
      %v1377 = vld [vmem:[%s1366 + $0x28] sm:$0xf]
      %v1378 = vld [vmem:[%s1366 + $0x2c] sm:$0xf]
      %v1379 = vld [vmem:[%s1366 + $0x30] sm:$0xf]
      %v1380 = vld [vmem:[%s1366 + $0x34] sm:$0xf]
      %v1381 = vld [vmem:[%s1366 + $0x38] sm:$0xf]
      %v1382 = vld [vmem:[%s1366 + $0x3c] sm:$0xf]
      %v1383 = vld [vmem:[%s1366 + $0x40] sm:$0xf]
      %v1384 = vld [vmem:[%s1366 + $0x44] sm:$0xf]
      %v1385 = vld [vmem:[#allocation2] sm:$0xff]
      %v1386 = vld [vmem:[#allocation2 + $0x8] sm:$0xff]
      %v1387 = vld [vmem:[#allocation2 + $0x10] sm:$0xff]
      %v1388 = vld [vmem:[#allocation2 + $0x18] sm:$0xff]
      %v1389 = vld [vmem:[#allocation2 + $0x20] sm:$0xff]
      %v1390 = vld [vmem:[#allocation2 + $0x28] sm:$0xff]
      %v1391 = vld [vmem:[#allocation2 + $0x30] sm:$0xff]
      %v1392 = vld [vmem:[#allocation2 + $0x38] sm:$0xff]
      %v1393 = vld [vmem:[#allocation2 + $0x40] sm:$0xff]
      %v1394 = vld [vmem:[#allocation2 + $0x48] sm:$0xff]
      %v1395 = vld [vmem:[#allocation2 + $0x50] sm:$0xff]
      %v1396 = vld [vmem:[#allocation2 + $0x58] sm:$0xff]
      %v1397 = vld [vmem:[#allocation2 + $0x60] sm:$0xff]
      %v1398 = vld [vmem:[#allocation2 + $0x68] sm:$0xff]
      %v1399 = vld [vmem:[#allocation2 + $0x70] sm:$0xff]
      %v1400 = vld [vmem:[#allocation2 + $0x78] sm:$0xff]
      %s1401 = scalar_lea.vmem %s4, 64
      %v1402 = vld [vmem:[%s1401] sm:$0xf]
      %v1403 = vld [vmem:[%s1401 + $0x4] sm:$0xf]
      %v1404 = vld [vmem:[%s1401 + $0x8] sm:$0xf]
      %v1405 = vld [vmem:[%s1401 + $0xc] sm:$0xf]
      %v1406 = vld [vmem:[%s1401 + $0x10] sm:$0xf]
      %v1407 = vld [vmem:[%s1401 + $0x14] sm:$0xf]
      %v1408 = vld [vmem:[%s1401 + $0x18] sm:$0xf]
      %v1409 = vld [vmem:[%s1401 + $0x1c] sm:$0xf]
      %v1410 = vld [vmem:[%s1401 + $0x20] sm:$0xf]
      %v1411 = vld [vmem:[%s1401 + $0x24] sm:$0xf]
      %v1412 = vld [vmem:[%s1401 + $0x28] sm:$0xf]
      %v1413 = vld [vmem:[%s1401 + $0x2c] sm:$0xf]
      %v1414 = vld [vmem:[%s1401 + $0x30] sm:$0xf]
      %v1415 = vld [vmem:[%s1401 + $0x34] sm:$0xf]
      %v1416 = vld [vmem:[%s1401 + $0x38] sm:$0xf]
      %v1417 = vld [vmem:[%s1401 + $0x3c] sm:$0xf]
      %v1434 = vunpack.c.l.b16 %v1367
      %v1435 = vunpack.c.l.b16 %v1368
      %v1436 = vunpack.c.l.b16 %v1369
      %v1437 = vunpack.c.l.b16 %v1370
      %v1438 = vunpack.c.l.b16 %v1371
      %v1439 = vunpack.c.l.b16 %v1372
      %v1440 = vunpack.c.l.b16 %v1373
      %v1441 = vunpack.c.l.b16 %v1374
      %v1442 = vunpack.c.l.b16 %v1375
      %v1443 = vunpack.c.l.b16 %v1376
      %v1444 = vunpack.c.l.b16 %v1377
      %v1445 = vunpack.c.l.b16 %v1378
      %v1446 = vunpack.c.l.b16 %v1379
      %v1447 = vunpack.c.l.b16 %v1380
      %v1448 = vunpack.c.l.b16 %v1381
      %v1449 = vunpack.c.l.b16 %v1382
      %v1450 = vpack.c.b16 %v1435, %v1434
      %v1451 = vpack.c.b16 %v1437, %v1436
      %v1452 = vpack.c.b16 %v1439, %v1438
      %v1453 = vpack.c.b16 %v1441, %v1440
      %v1454 = vpack.c.b16 %v1443, %v1442
      %v1455 = vpack.c.b16 %v1445, %v1444
      %v1456 = vpack.c.b16 %v1447, %v1446
      %v1457 = vpack.c.b16 %v1449, %v1448
      %v1482 = vunpack.c.l.b16 %v1402
      %v1483 = vunpack.c.l.b16 %v1403
      %v1484 = vunpack.c.l.b16 %v1404
      %v1485 = vunpack.c.l.b16 %v1405
      %v1486 = vunpack.c.l.b16 %v1406
      %v1487 = vunpack.c.l.b16 %v1407
      %v1488 = vunpack.c.l.b16 %v1408
      %v1489 = vunpack.c.l.b16 %v1409
      %v1490 = vunpack.c.l.b16 %v1410
      %v1491 = vunpack.c.l.b16 %v1411
      %v1492 = vunpack.c.l.b16 %v1412
      %v1493 = vunpack.c.l.b16 %v1413
      %v1494 = vunpack.c.l.b16 %v1414
      %v1495 = vunpack.c.l.b16 %v1415
      %v1496 = vunpack.c.l.b16 %v1416
      %v1497 = vunpack.c.l.b16 %v1417
      %v1498 = vpack.c.b16 %v1483, %v1482
      %v1499 = vpack.c.b16 %v1485, %v1484
      %v1500 = vpack.c.b16 %v1487, %v1486
      %v1501 = vpack.c.b16 %v1489, %v1488
      %v1502 = vpack.c.b16 %v1491, %v1490
      %v1503 = vpack.c.b16 %v1493, %v1492
      %v1504 = vpack.c.b16 %v1495, %v1494
      %v1505 = vpack.c.b16 %v1497, %v1496
      %1514 = vmatprep.subr.bf16.mxu0 0
      %1515 = vmatpush1.bf16.msra.mxu0 %v1498
      %1516 = vmatprep.subr.bf16.mxu0 0
      %1517 = vmatpush1.bf16.msra.mxu0 %v1499
      %1518 = vmatprep.subr.bf16.mxu0 0
      %1519 = vmatpush1.bf16.msra.mxu0 %v1500
      %1520 = vmatprep.subr.bf16.mxu0 0
      %1521 = vmatpush1.bf16.msra.mxu0 %v1501
      %1522 = vmatprep.subr.bf16.mxu0 0
      %1523 = vmatpush1.bf16.msra.mxu0 %v1502
      %1524 = vmatprep.subr.bf16.mxu0 0
      %1525 = vmatpush1.bf16.msra.mxu0 %v1503
      %1526 = vmatprep.subr.bf16.mxu0 0
      %1527 = vmatpush1.bf16.msra.mxu0 %v1504
      %1528 = vmatprep.subr.bf16.mxu0 0
      %1529 = vmatpush1.bf16.msra.mxu0 %v1505
      %1530 = vmatprep.subr.bf16.mxu0 0
      %1531 = vmatpush1.bf16.msra.mxu0 0
      %1532 = vmatprep.subr.bf16.mxu0 0
      %1533 = vmatpush1.bf16.msra.mxu0 0
      %1534 = vmatprep.subr.bf16.mxu0 0
      %1535 = vmatpush1.bf16.msra.mxu0 0
      %1536 = vmatprep.subr.bf16.mxu0 0
      %1537 = vmatpush1.bf16.msra.mxu0 0
      %1538 = vmatprep.subr.bf16.mxu0 0
      %1539 = vmatpush1.bf16.msra.mxu0 0
      %1540 = vmatprep.subr.bf16.mxu0 0
      %1541 = vmatpush1.bf16.msra.mxu0 0
      %1542 = vmatprep.subr.bf16.mxu0 0
      %1543 = vmatpush1.bf16.msra.mxu0 0
      %1544 = vmatprep.subr.bf16.mxu0 0
      %1545 = vmatpush1.bf16.msra.mxu0 0
      %1546 = vmatprep.mubr.bf16.mxu0 0
      %1547 = vmatmul.mubr.bf16.gmra.mrb[0].mxu0 %v1450
      %v1548 = vpop.f32.mrb[0].mxu0
      %v1549 = vadd.f32 0.0, %v1548
      %v1550 = vpop.f32.mrb[0].mxu0
      %v1551 = vpop.f32.mrb[0].mxu0
      %v1552 = vadd.f32 0.0, %v1551
      %v1553 = vpop.f32.mrb[0].mxu0
      %1554 = vmatprep.mubr.bf16.mxu0 0
      %1555 = vmatmul.mubr.bf16.gmra.mrb[0].mxu0 %v1451
      %v1556 = vpop.f32.mrb[0].mxu0
      %v1557 = vadd.f32 0.0, %v1556
      %v1558 = vpop.f32.mrb[0].mxu0
      %v1559 = vpop.f32.mrb[0].mxu0
      %v1560 = vadd.f32 0.0, %v1559
      %v1561 = vpop.f32.mrb[0].mxu0
      %1562 = vmatprep.mubr.bf16.mxu0 0
      %1563 = vmatmul.mubr.bf16.gmra.mrb[0].mxu0 %v1452
      %v1564 = vpop.f32.mrb[0].mxu0
      %v1565 = vadd.f32 0.0, %v1564
      %v1566 = vpop.f32.mrb[0].mxu0
      %v1567 = vpop.f32.mrb[0].mxu0
      %v1568 = vadd.f32 0.0, %v1567
      %v1569 = vpop.f32.mrb[0].mxu0
      %1570 = vmatprep.mubr.bf16.mxu0 0
      %1571 = vmatmul.mubr.bf16.gmra.mrb[0].mxu0 %v1453
      %v1572 = vpop.f32.mrb[0].mxu0
      %v1573 = vadd.f32 0.0, %v1572
      %v1574 = vpop.f32.mrb[0].mxu0
      %v1575 = vpop.f32.mrb[0].mxu0
      %v1576 = vadd.f32 0.0, %v1575
      %v1577 = vpop.f32.mrb[0].mxu0
      %1578 = vmatprep.mubr.bf16.mxu0 0
      %1579 = vmatmul.mubr.bf16.gmra.mrb[0].mxu0 %v1454
      %v1580 = vpop.f32.mrb[0].mxu0
      %v1581 = vadd.f32 0.0, %v1580
      %v1582 = vpop.f32.mrb[0].mxu0
      %v1583 = vpop.f32.mrb[0].mxu0
      %v1584 = vadd.f32 0.0, %v1583
      %v1585 = vpop.f32.mrb[0].mxu0
      %1586 = vmatprep.mubr.bf16.mxu0 0
      %1587 = vmatmul.mubr.bf16.gmra.mrb[0].mxu0 %v1455
      %v1588 = vpop.f32.mrb[0].mxu0
      %v1589 = vadd.f32 0.0, %v1588
      %v1590 = vpop.f32.mrb[0].mxu0
      %v1591 = vpop.f32.mrb[0].mxu0
      %v1592 = vadd.f32 0.0, %v1591
      %v1593 = vpop.f32.mrb[0].mxu0
      %1594 = vmatprep.mubr.bf16.mxu0 0
      %1595 = vmatmul.mubr.bf16.gmra.mrb[0].mxu0 %v1456
      %v1596 = vpop.f32.mrb[0].mxu0
      %v1597 = vadd.f32 0.0, %v1596
      %v1598 = vpop.f32.mrb[0].mxu0
      %v1599 = vpop.f32.mrb[0].mxu0
      %v1600 = vadd.f32 0.0, %v1599
      %v1601 = vpop.f32.mrb[0].mxu0
      %1602 = vmatprep.mubr.bf16.mxu0 0
      %1603 = vmatmul.mubr.bf16.gmra.mrb[0].mxu0 %v1457
      %v1604 = vpop.f32.mrb[0].mxu0
      %v1605 = vadd.f32 0.0, %v1604
      %v1606 = vpop.f32.mrb[0].mxu0
      %v1607 = vpop.f32.mrb[0].mxu0
      %v1608 = vadd.f32 0.0, %v1607
      %v1609 = vpop.f32.mrb[0].mxu0
      %1610 = vdwg.mxu0
      %v1611 = vadd.f32 %v1385, %v1549
      %v1612 = vadd.f32 %v1386, %v1552
      %v1613 = vadd.f32 %v1387, %v1557
      %v1614 = vadd.f32 %v1388, %v1560
      %v1615 = vadd.f32 %v1389, %v1565
      %v1616 = vadd.f32 %v1390, %v1568
      %v1617 = vadd.f32 %v1391, %v1573
      %v1618 = vadd.f32 %v1392, %v1576
      %v1619 = vadd.f32 %v1393, %v1581
      %v1620 = vadd.f32 %v1394, %v1584
      %v1621 = vadd.f32 %v1395, %v1589
      %v1622 = vadd.f32 %v1396, %v1592
      %v1623 = vadd.f32 %v1397, %v1597
      %v1624 = vadd.f32 %v1398, %v1600
      %v1625 = vadd.f32 %v1399, %v1605
      %v1626 = vadd.f32 %v1400, %v1608
      %1627 = vst [vmem:[#allocation2] sm:$0xff] %v1611
      %1628 = vst [vmem:[#allocation2 + $0x8] sm:$0xff] %v1612
      %1629 = vst [vmem:[#allocation2 + $0x10] sm:$0xff] %v1613
      %1630 = vst [vmem:[#allocation2 + $0x18] sm:$0xff] %v1614
      %1631 = vst [vmem:[#allocation2 + $0x20] sm:$0xff] %v1615
      %1632 = vst [vmem:[#allocation2 + $0x28] sm:$0xff] %v1616
      %1633 = vst [vmem:[#allocation2 + $0x30] sm:$0xff] %v1617
      %1634 = vst [vmem:[#allocation2 + $0x38] sm:$0xff] %v1618
      %1635 = vst [vmem:[#allocation2 + $0x40] sm:$0xff] %v1619
      %1636 = vst [vmem:[#allocation2 + $0x48] sm:$0xff] %v1620
      %1637 = vst [vmem:[#allocation2 + $0x50] sm:$0xff] %v1621
      %1638 = vst [vmem:[#allocation2 + $0x58] sm:$0xff] %v1622
      %1639 = vst [vmem:[#allocation2 + $0x60] sm:$0xff] %v1623
      %1640 = vst [vmem:[#allocation2 + $0x68] sm:$0xff] %v1624
      %1641 = vst [vmem:[#allocation2 + $0x70] sm:$0xff] %v1625
      %1642 = vst [vmem:[#allocation2 + $0x78] sm:$0xff] %v1626
      %v1643 = vld [vmem:[#allocation2] sm:$0xff]
      %v1644 = vld [vmem:[#allocation2 + $0x8] sm:$0xff]
      %v1645 = vld [vmem:[#allocation2 + $0x10] sm:$0xff]
      %v1646 = vld [vmem:[#allocation2 + $0x18] sm:$0xff]
      %v1647 = vld [vmem:[#allocation2 + $0x20] sm:$0xff]
      %v1648 = vld [vmem:[#allocation2 + $0x28] sm:$0xff]
      %v1649 = vld [vmem:[#allocation2 + $0x30] sm:$0xff]
      %v1650 = vld [vmem:[#allocation2 + $0x38] sm:$0xff]
      %v1651 = vld [vmem:[#allocation2 + $0x40] sm:$0xff]
      %v1652 = vld [vmem:[#allocation2 + $0x48] sm:$0xff]
      %v1653 = vld [vmem:[#allocation2 + $0x50] sm:$0xff]
      %v1654 = vld [vmem:[#allocation2 + $0x58] sm:$0xff]
      %v1655 = vld [vmem:[#allocation2 + $0x60] sm:$0xff]
      %v1656 = vld [vmem:[#allocation2 + $0x68] sm:$0xff]
      %v1657 = vld [vmem:[#allocation2 + $0x70] sm:$0xff]
      %v1658 = vld [vmem:[#allocation2 + $0x78] sm:$0xff]
      %s1659 = scalar_lea.vmem %s4, 448
      %v1660 = vld [vmem:[%s1659] sm:$0xf]
      %v1661 = vld [vmem:[%s1659 + $0x4] sm:$0xf]
      %v1662 = vld [vmem:[%s1659 + $0x8] sm:$0xf]
      %v1663 = vld [vmem:[%s1659 + $0xc] sm:$0xf]
      %v1664 = vld [vmem:[%s1659 + $0x10] sm:$0xf]
      %v1665 = vld [vmem:[%s1659 + $0x14] sm:$0xf]
      %v1666 = vld [vmem:[%s1659 + $0x18] sm:$0xf]
      %v1667 = vld [vmem:[%s1659 + $0x1c] sm:$0xf]
      %v1668 = vld [vmem:[%s1659 + $0x20] sm:$0xf]
      %v1669 = vld [vmem:[%s1659 + $0x24] sm:$0xf]
      %v1670 = vld [vmem:[%s1659 + $0x28] sm:$0xf]
      %v1671 = vld [vmem:[%s1659 + $0x2c] sm:$0xf]
      %v1672 = vld [vmem:[%s1659 + $0x30] sm:$0xf]
      %v1673 = vld [vmem:[%s1659 + $0x34] sm:$0xf]
      %v1674 = vld [vmem:[%s1659 + $0x38] sm:$0xf]
      %v1675 = vld [vmem:[%s1659 + $0x3c] sm:$0xf]
      %v1678 = vunpack.c.l.b16 %v1383
      %v1679 = vunpack.c.l.b16 %v1384
      %v1680 = vpack.c.b16 %v1679, %v1678
      %v1698 = vunpack.c.l.b16 %v1660
      %v1699 = vunpack.c.l.b16 %v1661
      %v1700 = vunpack.c.l.b16 %v1662
      %v1701 = vunpack.c.l.b16 %v1663
      %v1702 = vunpack.c.l.b16 %v1664
      %v1703 = vunpack.c.l.b16 %v1665
      %v1704 = vunpack.c.l.b16 %v1666
      %v1705 = vunpack.c.l.b16 %v1667
      %v1706 = vunpack.c.l.b16 %v1668
      %v1707 = vunpack.c.l.b16 %v1669
      %v1708 = vunpack.c.l.b16 %v1670
      %v1709 = vunpack.c.l.b16 %v1671
      %v1710 = vunpack.c.l.b16 %v1672
      %v1711 = vunpack.c.l.b16 %v1673
      %v1712 = vunpack.c.l.b16 %v1674
      %v1713 = vunpack.c.l.b16 %v1675
      %v1714 = vpack.c.b16 %v1699, %v1698
      %v1715 = vpack.c.b16 %v1701, %v1700
      %v1716 = vpack.c.b16 %v1703, %v1702
      %v1717 = vpack.c.b16 %v1705, %v1704
      %v1718 = vpack.c.b16 %v1707, %v1706
      %v1719 = vpack.c.b16 %v1709, %v1708
      %v1720 = vpack.c.b16 %v1711, %v1710
      %v1721 = vpack.c.b16 %v1713, %v1712
      %1730 = vmatprep.subr.bf16.mxu0 0
      %1731 = vmatpush1.bf16.msra.mxu0 %v1714
      %1732 = vmatprep.subr.bf16.mxu0 0
      %1733 = vmatpush1.bf16.msra.mxu0 %v1715
      %1734 = vmatprep.subr.bf16.mxu0 0
      %1735 = vmatpush1.bf16.msra.mxu0 %v1716
      %1736 = vmatprep.subr.bf16.mxu0 0
      %1737 = vmatpush1.bf16.msra.mxu0 %v1717
      %1738 = vmatprep.subr.bf16.mxu0 0
      %1739 = vmatpush1.bf16.msra.mxu0 %v1718
      %1740 = vmatprep.subr.bf16.mxu0 0
      %1741 = vmatpush1.bf16.msra.mxu0 %v1719
      %1742 = vmatprep.subr.bf16.mxu0 0
      %1743 = vmatpush1.bf16.msra.mxu0 %v1720
      %1744 = vmatprep.subr.bf16.mxu0 0
      %1745 = vmatpush1.bf16.msra.mxu0 %v1721
      %1746 = vmatprep.subr.bf16.mxu0 0
      %1747 = vmatpush1.bf16.msra.mxu0 0
      %1748 = vmatprep.subr.bf16.mxu0 0
      %1749 = vmatpush1.bf16.msra.mxu0 0
      %1750 = vmatprep.subr.bf16.mxu0 0
      %1751 = vmatpush1.bf16.msra.mxu0 0
      %1752 = vmatprep.subr.bf16.mxu0 0
      %1753 = vmatpush1.bf16.msra.mxu0 0
      %1754 = vmatprep.subr.bf16.mxu0 0
      %1755 = vmatpush1.bf16.msra.mxu0 0
      %1756 = vmatprep.subr.bf16.mxu0 0
      %1757 = vmatpush1.bf16.msra.mxu0 0
      %1758 = vmatprep.subr.bf16.mxu0 0
      %1759 = vmatpush1.bf16.msra.mxu0 0
      %1760 = vmatprep.subr.bf16.mxu0 0
      %1761 = vmatpush1.bf16.msra.mxu0 0
      %1762 = vmatprep.mubr.bf16.mxu0 0
      %1763 = vmatmul.mubr.bf16.gmra.mrb[0].mxu0 %v1451
      %v1764 = vpop.f32.mrb[0].mxu0
      %v1765 = vadd.f32 0.0, %v1764
      %v1766 = vpop.f32.mrb[0].mxu0
      %v1767 = vpop.f32.mrb[0].mxu0
      %v1768 = vadd.f32 0.0, %v1767
      %v1769 = vpop.f32.mrb[0].mxu0
      %1770 = vmatprep.mubr.bf16.mxu0 0
      %1771 = vmatmul.mubr.bf16.gmra.mrb[0].mxu0 %v1452
      %v1772 = vpop.f32.mrb[0].mxu0
      %v1773 = vadd.f32 0.0, %v1772
      %v1774 = vpop.f32.mrb[0].mxu0
      %v1775 = vpop.f32.mrb[0].mxu0
      %v1776 = vadd.f32 0.0, %v1775
      %v1777 = vpop.f32.mrb[0].mxu0
      %1778 = vmatprep.mubr.bf16.mxu0 0
      %1779 = vmatmul.mubr.bf16.gmra.mrb[0].mxu0 %v1453
      %v1780 = vpop.f32.mrb[0].mxu0
      %v1781 = vadd.f32 0.0, %v1780
      %v1782 = vpop.f32.mrb[0].mxu0
      %v1783 = vpop.f32.mrb[0].mxu0
      %v1784 = vadd.f32 0.0, %v1783
      %v1785 = vpop.f32.mrb[0].mxu0
      %1786 = vmatprep.mubr.bf16.mxu0 0
      %1787 = vmatmul.mubr.bf16.gmra.mrb[0].mxu0 %v1454
      %v1788 = vpop.f32.mrb[0].mxu0
      %v1789 = vadd.f32 0.0, %v1788
      %v1790 = vpop.f32.mrb[0].mxu0
      %v1791 = vpop.f32.mrb[0].mxu0
      %v1792 = vadd.f32 0.0, %v1791
      %v1793 = vpop.f32.mrb[0].mxu0
      %1794 = vmatprep.mubr.bf16.mxu0 0
      %1795 = vmatmul.mubr.bf16.gmra.mrb[0].mxu0 %v1455
      %v1796 = vpop.f32.mrb[0].mxu0
      %v1797 = vadd.f32 0.0, %v1796
      %v1798 = vpop.f32.mrb[0].mxu0
      %v1799 = vpop.f32.mrb[0].mxu0
      %v1800 = vadd.f32 0.0, %v1799
      %v1801 = vpop.f32.mrb[0].mxu0
      %1802 = vmatprep.mubr.bf16.mxu0 0
      %1803 = vmatmul.mubr.bf16.gmra.mrb[0].mxu0 %v1456
      %v1804 = vpop.f32.mrb[0].mxu0
      %v1805 = vadd.f32 0.0, %v1804
      %v1806 = vpop.f32.mrb[0].mxu0
      %v1807 = vpop.f32.mrb[0].mxu0
      %v1808 = vadd.f32 0.0, %v1807
      %v1809 = vpop.f32.mrb[0].mxu0
      %1810 = vmatprep.mubr.bf16.mxu0 0
      %1811 = vmatmul.mubr.bf16.gmra.mrb[0].mxu0 %v1457
      %v1812 = vpop.f32.mrb[0].mxu0
      %v1813 = vadd.f32 0.0, %v1812
      %v1814 = vpop.f32.mrb[0].mxu0
      %v1815 = vpop.f32.mrb[0].mxu0
      %v1816 = vadd.f32 0.0, %v1815
      %v1817 = vpop.f32.mrb[0].mxu0
      %1818 = vmatprep.mubr.bf16.mxu0 0
      %1819 = vmatmul.mubr.bf16.gmra.mrb[0].mxu0 %v1680
      %v1820 = vpop.f32.mrb[0].mxu0
      %v1821 = vadd.f32 0.0, %v1820
      %v1822 = vpop.f32.mrb[0].mxu0
      %v1823 = vpop.f32.mrb[0].mxu0
      %v1824 = vadd.f32 0.0, %v1823
      %v1825 = vpop.f32.mrb[0].mxu0
      %1826 = vdwg.mxu0
      %v1827 = vadd.f32 %v1643, %v1765
      %v1828 = vadd.f32 %v1644, %v1768
      %v1829 = vadd.f32 %v1645, %v1773
      %v1830 = vadd.f32 %v1646, %v1776
      %v1831 = vadd.f32 %v1647, %v1781
      %v1832 = vadd.f32 %v1648, %v1784
      %v1833 = vadd.f32 %v1649, %v1789
      %v1834 = vadd.f32 %v1650, %v1792
      %v1835 = vadd.f32 %v1651, %v1797
      %v1836 = vadd.f32 %v1652, %v1800
      %v1837 = vadd.f32 %v1653, %v1805
      %v1838 = vadd.f32 %v1654, %v1808
      %v1839 = vadd.f32 %v1655, %v1813
      %v1840 = vadd.f32 %v1656, %v1816
      %v1841 = vadd.f32 %v1657, %v1821
      %v1842 = vadd.f32 %v1658, %v1824
      %1843 = vst [vmem:[#allocation2] sm:$0xff] %v1827
      %1844 = vst [vmem:[#allocation2 + $0x8] sm:$0xff] %v1828
      %1845 = vst [vmem:[#allocation2 + $0x10] sm:$0xff] %v1829
      %1846 = vst [vmem:[#allocation2 + $0x18] sm:$0xff] %v1830
      %1847 = vst [vmem:[#allocation2 + $0x20] sm:$0xff] %v1831
      %1848 = vst [vmem:[#allocation2 + $0x28] sm:$0xff] %v1832
      %1849 = vst [vmem:[#allocation2 + $0x30] sm:$0xff] %v1833
      %1850 = vst [vmem:[#allocation2 + $0x38] sm:$0xff] %v1834
      %1851 = vst [vmem:[#allocation2 + $0x40] sm:$0xff] %v1835
      %1852 = vst [vmem:[#allocation2 + $0x48] sm:$0xff] %v1836
      %1853 = vst [vmem:[#allocation2 + $0x50] sm:$0xff] %v1837
      %1854 = vst [vmem:[#allocation2 + $0x58] sm:$0xff] %v1838
      %1855 = vst [vmem:[#allocation2 + $0x60] sm:$0xff] %v1839
      %1856 = vst [vmem:[#allocation2 + $0x68] sm:$0xff] %v1840
      %1857 = vst [vmem:[#allocation2 + $0x70] sm:$0xff] %v1841
      %1858 = vst [vmem:[#allocation2 + $0x78] sm:$0xff] %v1842
      %s1859 = smul.addr %s353, 4
      %s1860 = scalar_lea.vmem %s319, %s1859
      %v1861 = vld [vmem:[%s1860] sm:$0xf]
      %v1862 = vld [vmem:[%s1860 + $0x4] sm:$0xf]
      %v1863 = vld [vmem:[%s1860 + $0x8] sm:$0xf]
      %v1864 = vld [vmem:[%s1860 + $0xc] sm:$0xf]
      %v1865 = vld [vmem:[%s1860 + $0x10] sm:$0xf]
      %v1866 = vld [vmem:[%s1860 + $0x14] sm:$0xf]
      %v1867 = vld [vmem:[%s1860 + $0x18] sm:$0xf]
      %v1868 = vld [vmem:[%s1860 + $0x1c] sm:$0xf]
      %v1869 = vld [vmem:[%s1860 + $0x20] sm:$0xf]
      %v1870 = vld [vmem:[%s1860 + $0x24] sm:$0xf]
      %v1871 = vld [vmem:[%s1860 + $0x28] sm:$0xf]
      %v1872 = vld [vmem:[%s1860 + $0x2c] sm:$0xf]
      %v1873 = vld [vmem:[%s1860 + $0x30] sm:$0xf]
      %v1874 = vld [vmem:[%s1860 + $0x34] sm:$0xf]
      %v1875 = vld [vmem:[%s1860 + $0x38] sm:$0xf]
      %v1876 = vld [vmem:[%s1860 + $0x3c] sm:$0xf]
      %v1877 = vld [vmem:[%s1860 + $0x40] sm:$0x1]
      %v1878 = vld [vmem:[#allocation2] sm:$0xff]
      %v1879 = vld [vmem:[#allocation2 + $0x8] sm:$0xff]
      %v1880 = vld [vmem:[#allocation2 + $0x10] sm:$0xff]
      %v1881 = vld [vmem:[#allocation2 + $0x18] sm:$0xff]
      %v1882 = vld [vmem:[#allocation2 + $0x20] sm:$0xff]
      %v1883 = vld [vmem:[#allocation2 + $0x28] sm:$0xff]
      %v1884 = vld [vmem:[#allocation2 + $0x30] sm:$0xff]
      %v1885 = vld [vmem:[#allocation2 + $0x38] sm:$0xff]
      %v1886 = vld [vmem:[#allocation2 + $0x40] sm:$0xff]
      %v1887 = vld [vmem:[#allocation2 + $0x48] sm:$0xff]
      %v1888 = vld [vmem:[#allocation2 + $0x50] sm:$0xff]
      %v1889 = vld [vmem:[#allocation2 + $0x58] sm:$0xff]
      %v1890 = vld [vmem:[#allocation2 + $0x60] sm:$0xff]
      %v1891 = vld [vmem:[#allocation2 + $0x68] sm:$0xff]
      %v1892 = vld [vmem:[#allocation2 + $0x70] sm:$0xff]
      %v1893 = vld [vmem:[#allocation2 + $0x78] sm:$0xff]
      %s1894 = scalar_lea.vmem %s4, 192
      %v1895 = vld [vmem:[%s1894] sm:$0xf]
      %v1896 = vld [vmem:[%s1894 + $0x4] sm:$0xf]
      %v1897 = vld [vmem:[%s1894 + $0x8] sm:$0xf]
      %v1898 = vld [vmem:[%s1894 + $0xc] sm:$0xf]
      %v1899 = vld [vmem:[%s1894 + $0x10] sm:$0xf]
      %v1900 = vld [vmem:[%s1894 + $0x14] sm:$0xf]
      %v1901 = vld [vmem:[%s1894 + $0x18] sm:$0xf]
      %v1902 = vld [vmem:[%s1894 + $0x1c] sm:$0xf]
      %v1903 = vld [vmem:[%s1894 + $0x20] sm:$0xf]
      %v1904 = vld [vmem:[%s1894 + $0x24] sm:$0xf]
      %v1905 = vld [vmem:[%s1894 + $0x28] sm:$0xf]
      %v1906 = vld [vmem:[%s1894 + $0x2c] sm:$0xf]
      %v1907 = vld [vmem:[%s1894 + $0x30] sm:$0xf]
      %v1908 = vld [vmem:[%s1894 + $0x34] sm:$0xf]
      %v1909 = vld [vmem:[%s1894 + $0x38] sm:$0xf]
      %v1910 = vld [vmem:[%s1894 + $0x3c] sm:$0xf]
      %v1927 = vunpack.c.l.b16 %v1861
      %v1928 = vunpack.c.l.b16 %v1862
      %v1929 = vunpack.c.l.b16 %v1863
      %v1930 = vunpack.c.l.b16 %v1864
      %v1931 = vunpack.c.l.b16 %v1865
      %v1932 = vunpack.c.l.b16 %v1866
      %v1933 = vunpack.c.l.b16 %v1867
      %v1934 = vunpack.c.l.b16 %v1868
      %v1935 = vunpack.c.l.b16 %v1869
      %v1936 = vunpack.c.l.b16 %v1870
      %v1937 = vunpack.c.l.b16 %v1871
      %v1938 = vunpack.c.l.b16 %v1872
      %v1939 = vunpack.c.l.b16 %v1873
      %v1940 = vunpack.c.l.b16 %v1874
      %v1941 = vunpack.c.l.b16 %v1875
      %v1942 = vunpack.c.l.b16 %v1876
      %v1943 = vpack.c.b16 %v1928, %v1927
      %v1944 = vpack.c.b16 %v1930, %v1929
      %v1945 = vpack.c.b16 %v1932, %v1931
      %v1946 = vpack.c.b16 %v1934, %v1933
      %v1947 = vpack.c.b16 %v1936, %v1935
      %v1948 = vpack.c.b16 %v1938, %v1937
      %v1949 = vpack.c.b16 %v1940, %v1939
      %v1950 = vpack.c.b16 %v1942, %v1941
      %v1975 = vunpack.c.l.b16 %v1895
      %v1976 = vunpack.c.l.b16 %v1896
      %v1977 = vunpack.c.l.b16 %v1897
      %v1978 = vunpack.c.l.b16 %v1898
      %v1979 = vunpack.c.l.b16 %v1899
      %v1980 = vunpack.c.l.b16 %v1900
      %v1981 = vunpack.c.l.b16 %v1901
      %v1982 = vunpack.c.l.b16 %v1902
      %v1983 = vunpack.c.l.b16 %v1903
      %v1984 = vunpack.c.l.b16 %v1904
      %v1985 = vunpack.c.l.b16 %v1905
      %v1986 = vunpack.c.l.b16 %v1906
      %v1987 = vunpack.c.l.b16 %v1907
      %v1988 = vunpack.c.l.b16 %v1908
      %v1989 = vunpack.c.l.b16 %v1909
      %v1990 = vunpack.c.l.b16 %v1910
      %v1991 = vpack.c.b16 %v1976, %v1975
      %v1992 = vpack.c.b16 %v1978, %v1977
      %v1993 = vpack.c.b16 %v1980, %v1979
      %v1994 = vpack.c.b16 %v1982, %v1981
      %v1995 = vpack.c.b16 %v1984, %v1983
      %v1996 = vpack.c.b16 %v1986, %v1985
      %v1997 = vpack.c.b16 %v1988, %v1987
      %v1998 = vpack.c.b16 %v1990, %v1989
      %2007 = vmatprep.subr.bf16.mxu0 0
      %2008 = vmatpush1.bf16.msra.mxu0 %v1991
      %2009 = vmatprep.subr.bf16.mxu0 0
      %2010 = vmatpush1.bf16.msra.mxu0 %v1992
      %2011 = vmatprep.subr.bf16.mxu0 0
      %2012 = vmatpush1.bf16.msra.mxu0 %v1993
      %2013 = vmatprep.subr.bf16.mxu0 0
      %2014 = vmatpush1.bf16.msra.mxu0 %v1994
      %2015 = vmatprep.subr.bf16.mxu0 0
      %2016 = vmatpush1.bf16.msra.mxu0 %v1995
      %2017 = vmatprep.subr.bf16.mxu0 0
      %2018 = vmatpush1.bf16.msra.mxu0 %v1996
      %2019 = vmatprep.subr.bf16.mxu0 0
      %2020 = vmatpush1.bf16.msra.mxu0 %v1997
      %2021 = vmatprep.subr.bf16.mxu0 0
      %2022 = vmatpush1.bf16.msra.mxu0 %v1998
      %2023 = vmatprep.subr.bf16.mxu0 0
      %2024 = vmatpush1.bf16.msra.mxu0 0
      %2025 = vmatprep.subr.bf16.mxu0 0
      %2026 = vmatpush1.bf16.msra.mxu0 0
      %2027 = vmatprep.subr.bf16.mxu0 0
      %2028 = vmatpush1.bf16.msra.mxu0 0
      %2029 = vmatprep.subr.bf16.mxu0 0
      %2030 = vmatpush1.bf16.msra.mxu0 0
      %2031 = vmatprep.subr.bf16.mxu0 0
      %2032 = vmatpush1.bf16.msra.mxu0 0
      %2033 = vmatprep.subr.bf16.mxu0 0
      %2034 = vmatpush1.bf16.msra.mxu0 0
      %2035 = vmatprep.subr.bf16.mxu0 0
      %2036 = vmatpush1.bf16.msra.mxu0 0
      %2037 = vmatprep.subr.bf16.mxu0 0
      %2038 = vmatpush1.bf16.msra.mxu0 0
      %2039 = vmatprep.mubr.bf16.mxu0 0
      %2040 = vmatmul.mubr.bf16.gmra.mrb[0].mxu0 %v1943
      %v2041 = vpop.f32.mrb[0].mxu0
      %v2042 = vadd.f32 0.0, %v2041
      %v2043 = vpop.f32.mrb[0].mxu0
      %v2044 = vpop.f32.mrb[0].mxu0
      %v2045 = vadd.f32 0.0, %v2044
      %v2046 = vpop.f32.mrb[0].mxu0
      %2047 = vmatprep.mubr.bf16.mxu0 0
      %2048 = vmatmul.mubr.bf16.gmra.mrb[0].mxu0 %v1944
      %v2049 = vpop.f32.mrb[0].mxu0
      %v2050 = vadd.f32 0.0, %v2049
      %v2051 = vpop.f32.mrb[0].mxu0
      %v2052 = vpop.f32.mrb[0].mxu0
      %v2053 = vadd.f32 0.0, %v2052
      %v2054 = vpop.f32.mrb[0].mxu0
      %2055 = vmatprep.mubr.bf16.mxu0 0
      %2056 = vmatmul.mubr.bf16.gmra.mrb[0].mxu0 %v1945
      %v2057 = vpop.f32.mrb[0].mxu0
      %v2058 = vadd.f32 0.0, %v2057
      %v2059 = vpop.f32.mrb[0].mxu0
      %v2060 = vpop.f32.mrb[0].mxu0
      %v2061 = vadd.f32 0.0, %v2060
      %v2062 = vpop.f32.mrb[0].mxu0
      %2063 = vmatprep.mubr.bf16.mxu0 0
      %2064 = vmatmul.mubr.bf16.gmra.mrb[0].mxu0 %v1946
      %v2065 = vpop.f32.mrb[0].mxu0
      %v2066 = vadd.f32 0.0, %v2065
      %v2067 = vpop.f32.mrb[0].mxu0
      %v2068 = vpop.f32.mrb[0].mxu0
      %v2069 = vadd.f32 0.0, %v2068
      %v2070 = vpop.f32.mrb[0].mxu0
      %2071 = vmatprep.mubr.bf16.mxu0 0
      %2072 = vmatmul.mubr.bf16.gmra.mrb[0].mxu0 %v1947
      %v2073 = vpop.f32.mrb[0].mxu0
      %v2074 = vadd.f32 0.0, %v2073
      %v2075 = vpop.f32.mrb[0].mxu0
      %v2076 = vpop.f32.mrb[0].mxu0
      %v2077 = vadd.f32 0.0, %v2076
      %v2078 = vpop.f32.mrb[0].mxu0
      %2079 = vmatprep.mubr.bf16.mxu0 0
      %2080 = vmatmul.mubr.bf16.gmra.mrb[0].mxu0 %v1948
      %v2081 = vpop.f32.mrb[0].mxu0
      %v2082 = vadd.f32 0.0, %v2081
      %v2083 = vpop.f32.mrb[0].mxu0
      %v2084 = vpop.f32.mrb[0].mxu0
      %v2085 = vadd.f32 0.0, %v2084
      %v2086 = vpop.f32.mrb[0].mxu0
      %2087 = vmatprep.mubr.bf16.mxu0 0
      %2088 = vmatmul.mubr.bf16.gmra.mrb[0].mxu0 %v1949
      %v2089 = vpop.f32.mrb[0].mxu0
      %v2090 = vadd.f32 0.0, %v2089
      %v2091 = vpop.f32.mrb[0].mxu0
      %v2092 = vpop.f32.mrb[0].mxu0
      %v2093 = vadd.f32 0.0, %v2092
      %v2094 = vpop.f32.mrb[0].mxu0
      %2095 = vmatprep.mubr.bf16.mxu0 0
      %2096 = vmatmul.mubr.bf16.gmra.mrb[0].mxu0 %v1950
      %v2097 = vpop.f32.mrb[0].mxu0
      %v2098 = vadd.f32 0.0, %v2097
      %v2099 = vpop.f32.mrb[0].mxu0
      %v2100 = vpop.f32.mrb[0].mxu0
      %v2101 = vadd.f32 0.0, %v2100
      %v2102 = vpop.f32.mrb[0].mxu0
      %2103 = vdwg.mxu0
      %v2104 = vadd.f32 %v1878, %v2042
      %v2105 = vadd.f32 %v1879, %v2045
      %v2106 = vadd.f32 %v1880, %v2050
      %v2107 = vadd.f32 %v1881, %v2053
      %v2108 = vadd.f32 %v1882, %v2058
      %v2109 = vadd.f32 %v1883, %v2061
      %v2110 = vadd.f32 %v1884, %v2066
      %v2111 = vadd.f32 %v1885, %v2069
      %v2112 = vadd.f32 %v1886, %v2074
      %v2113 = vadd.f32 %v1887, %v2077
      %v2114 = vadd.f32 %v1888, %v2082
      %v2115 = vadd.f32 %v1889, %v2085
      %v2116 = vadd.f32 %v1890, %v2090
      %v2117 = vadd.f32 %v1891, %v2093
      %v2118 = vadd.f32 %v1892, %v2098
      %v2119 = vadd.f32 %v1893, %v2101
      %2120 = vst [vmem:[#allocation2] sm:$0xff] %v2104
      %2121 = vst [vmem:[#allocation2 + $0x8] sm:$0xff] %v2105
      %2122 = vst [vmem:[#allocation2 + $0x10] sm:$0xff] %v2106
      %2123 = vst [vmem:[#allocation2 + $0x18] sm:$0xff] %v2107
      %2124 = vst [vmem:[#allocation2 + $0x20] sm:$0xff] %v2108
      %2125 = vst [vmem:[#allocation2 + $0x28] sm:$0xff] %v2109
      %2126 = vst [vmem:[#allocation2 + $0x30] sm:$0xff] %v2110
      %2127 = vst [vmem:[#allocation2 + $0x38] sm:$0xff] %v2111
      %2128 = vst [vmem:[#allocation2 + $0x40] sm:$0xff] %v2112
      %2129 = vst [vmem:[#allocation2 + $0x48] sm:$0xff] %v2113
      %2130 = vst [vmem:[#allocation2 + $0x50] sm:$0xff] %v2114
      %2131 = vst [vmem:[#allocation2 + $0x58] sm:$0xff] %v2115
      %2132 = vst [vmem:[#allocation2 + $0x60] sm:$0xff] %v2116
      %2133 = vst [vmem:[#allocation2 + $0x68] sm:$0xff] %v2117
      %2134 = vst [vmem:[#allocation2 + $0x70] sm:$0xff] %v2118
      %2135 = vst [vmem:[#allocation2 + $0x78] sm:$0xff] %v2119
      %v2136 = vld [vmem:[#allocation2] sm:$0xff]
      %v2137 = vld [vmem:[#allocation2 + $0x8] sm:$0xff]
      %v2138 = vld [vmem:[#allocation2 + $0x10] sm:$0xff]
      %v2139 = vld [vmem:[#allocation2 + $0x18] sm:$0xff]
      %v2140 = vld [vmem:[#allocation2 + $0x20] sm:$0xff]
      %v2141 = vld [vmem:[#allocation2 + $0x28] sm:$0xff]
      %v2142 = vld [vmem:[#allocation2 + $0x30] sm:$0xff]
      %v2143 = vld [vmem:[#allocation2 + $0x38] sm:$0xff]
      %v2144 = vld [vmem:[#allocation2 + $0x40] sm:$0xff]
      %v2145 = vld [vmem:[#allocation2 + $0x48] sm:$0xff]
      %v2146 = vld [vmem:[#allocation2 + $0x50] sm:$0xff]
      %v2147 = vld [vmem:[#allocation2 + $0x58] sm:$0xff]
      %v2148 = vld [vmem:[#allocation2 + $0x60] sm:$0xff]
      %v2149 = vld [vmem:[#allocation2 + $0x68] sm:$0xff]
      %v2150 = vld [vmem:[#allocation2 + $0x70] sm:$0xff]
      %v2151 = vld [vmem:[#allocation2 + $0x78] sm:$0xff]
      %s2152 = scalar_lea.vmem %s4, 320
      %v2153 = vld [vmem:[%s2152] sm:$0xf]
      %v2154 = vld [vmem:[%s2152 + $0x4] sm:$0xf]
      %v2155 = vld [vmem:[%s2152 + $0x8] sm:$0xf]
      %v2156 = vld [vmem:[%s2152 + $0xc] sm:$0xf]
      %v2157 = vld [vmem:[%s2152 + $0x10] sm:$0xf]
      %v2158 = vld [vmem:[%s2152 + $0x14] sm:$0xf]
      %v2159 = vld [vmem:[%s2152 + $0x18] sm:$0xf]
      %v2160 = vld [vmem:[%s2152 + $0x1c] sm:$0xf]
      %v2161 = vld [vmem:[%s2152 + $0x20] sm:$0xf]
      %v2162 = vld [vmem:[%s2152 + $0x24] sm:$0xf]
      %v2163 = vld [vmem:[%s2152 + $0x28] sm:$0xf]
      %v2164 = vld [vmem:[%s2152 + $0x2c] sm:$0xf]
      %v2165 = vld [vmem:[%s2152 + $0x30] sm:$0xf]
      %v2166 = vld [vmem:[%s2152 + $0x34] sm:$0xf]
      %v2167 = vld [vmem:[%s2152 + $0x38] sm:$0xf]
      %v2168 = vld [vmem:[%s2152 + $0x3c] sm:$0xf]
      %v2170 = vunpack.c.l.b16 %v1877
      %v2171 = vpack.c.b16 %v2170, %v2170
      %v2173 = vshrl.u32 %v1943, 16
      %v2175 = vshll.u32 %v1943, 16
      %v2177 = vrot.slane %v2175, 1
      %v2178 = vor.u32 %v2173, %v2177
      %v2180 = vshll.u32 %v1944, 16
      %v2182 = vrot.slane %v2180, 1
      %v2183 = vsel %vm883, %v2178, %v2182
      %v2184 = vshrl.u32 %v1944, 16
      %v2186 = vor.u32 %v2184, %v2182
      %v2188 = vshll.u32 %v1945, 16
      %v2190 = vrot.slane %v2188, 1
      %v2191 = vsel %vm883, %v2186, %v2190
      %v2192 = vshrl.u32 %v1945, 16
      %v2194 = vor.u32 %v2192, %v2190
      %v2196 = vshll.u32 %v1946, 16
      %v2198 = vrot.slane %v2196, 1
      %v2199 = vsel %vm883, %v2194, %v2198
      %v2200 = vshrl.u32 %v1946, 16
      %v2202 = vor.u32 %v2200, %v2198
      %v2204 = vshll.u32 %v1947, 16
      %v2206 = vrot.slane %v2204, 1
      %v2207 = vsel %vm883, %v2202, %v2206
      %v2208 = vshrl.u32 %v1947, 16
      %v2210 = vor.u32 %v2208, %v2206
      %v2212 = vshll.u32 %v1948, 16
      %v2214 = vrot.slane %v2212, 1
      %v2215 = vsel %vm883, %v2210, %v2214
      %v2216 = vshrl.u32 %v1948, 16
      %v2218 = vor.u32 %v2216, %v2214
      %v2220 = vshll.u32 %v1949, 16
      %v2222 = vrot.slane %v2220, 1
      %v2223 = vsel %vm883, %v2218, %v2222
      %v2224 = vshrl.u32 %v1949, 16
      %v2226 = vor.u32 %v2224, %v2222
      %v2228 = vshll.u32 %v1950, 16
      %v2230 = vrot.slane %v2228, 1
      %v2231 = vsel %vm883, %v2226, %v2230
      %v2232 = vshrl.u32 %v1950, 16
      %v2234 = vor.u32 %v2232, %v2230
      %v2236 = vshll.u32 %v2171, 16
      %v2238 = vrot.slane %v2236, 1
      %v2239 = vsel %vm883, %v2234, %v2238
      %v2264 = vunpack.c.l.b16 %v2153
      %v2265 = vunpack.c.l.b16 %v2154
      %v2266 = vunpack.c.l.b16 %v2155
      %v2267 = vunpack.c.l.b16 %v2156
      %v2268 = vunpack.c.l.b16 %v2157
      %v2269 = vunpack.c.l.b16 %v2158
      %v2270 = vunpack.c.l.b16 %v2159
      %v2271 = vunpack.c.l.b16 %v2160
      %v2272 = vunpack.c.l.b16 %v2161
      %v2273 = vunpack.c.l.b16 %v2162
      %v2274 = vunpack.c.l.b16 %v2163
      %v2275 = vunpack.c.l.b16 %v2164
      %v2276 = vunpack.c.l.b16 %v2165
      %v2277 = vunpack.c.l.b16 %v2166
      %v2278 = vunpack.c.l.b16 %v2167
      %v2279 = vunpack.c.l.b16 %v2168
      %v2280 = vpack.c.b16 %v2265, %v2264
      %v2281 = vpack.c.b16 %v2267, %v2266
      %v2282 = vpack.c.b16 %v2269, %v2268
      %v2283 = vpack.c.b16 %v2271, %v2270
      %v2284 = vpack.c.b16 %v2273, %v2272
      %v2285 = vpack.c.b16 %v2275, %v2274
      %v2286 = vpack.c.b16 %v2277, %v2276
      %v2287 = vpack.c.b16 %v2279, %v2278
      %2296 = vmatprep.subr.bf16.mxu0 0
      %2297 = vmatpush1.bf16.msra.mxu0 %v2280
      %2298 = vmatprep.subr.bf16.mxu0 0
      %2299 = vmatpush1.bf16.msra.mxu0 %v2281
      %2300 = vmatprep.subr.bf16.mxu0 0
      %2301 = vmatpush1.bf16.msra.mxu0 %v2282
      %2302 = vmatprep.subr.bf16.mxu0 0
      %2303 = vmatpush1.bf16.msra.mxu0 %v2283
      %2304 = vmatprep.subr.bf16.mxu0 0
      %2305 = vmatpush1.bf16.msra.mxu0 %v2284
      %2306 = vmatprep.subr.bf16.mxu0 0
      %2307 = vmatpush1.bf16.msra.mxu0 %v2285
      %2308 = vmatprep.subr.bf16.mxu0 0
      %2309 = vmatpush1.bf16.msra.mxu0 %v2286
      %2310 = vmatprep.subr.bf16.mxu0 0
      %2311 = vmatpush1.bf16.msra.mxu0 %v2287
      %2312 = vmatprep.subr.bf16.mxu0 0
      %2313 = vmatpush1.bf16.msra.mxu0 0
      %2314 = vmatprep.subr.bf16.mxu0 0
      %2315 = vmatpush1.bf16.msra.mxu0 0
      %2316 = vmatprep.subr.bf16.mxu0 0
      %2317 = vmatpush1.bf16.msra.mxu0 0
      %2318 = vmatprep.subr.bf16.mxu0 0
      %2319 = vmatpush1.bf16.msra.mxu0 0
      %2320 = vmatprep.subr.bf16.mxu0 0
      %2321 = vmatpush1.bf16.msra.mxu0 0
      %2322 = vmatprep.subr.bf16.mxu0 0
      %2323 = vmatpush1.bf16.msra.mxu0 0
      %2324 = vmatprep.subr.bf16.mxu0 0
      %2325 = vmatpush1.bf16.msra.mxu0 0
      %2326 = vmatprep.subr.bf16.mxu0 0
      %2327 = vmatpush1.bf16.msra.mxu0 0
      %2328 = vmatprep.mubr.bf16.mxu0 0
      %2329 = vmatmul.mubr.bf16.gmra.mrb[0].mxu0 %v2183
      %v2330 = vpop.f32.mrb[0].mxu0
      %v2331 = vadd.f32 0.0, %v2330
      %v2332 = vpop.f32.mrb[0].mxu0
      %v2333 = vpop.f32.mrb[0].mxu0
      %v2334 = vadd.f32 0.0, %v2333
      %v2335 = vpop.f32.mrb[0].mxu0
      %2336 = vmatprep.mubr.bf16.mxu0 0
      %2337 = vmatmul.mubr.bf16.gmra.mrb[0].mxu0 %v2191
      %v2338 = vpop.f32.mrb[0].mxu0
      %v2339 = vadd.f32 0.0, %v2338
      %v2340 = vpop.f32.mrb[0].mxu0
      %v2341 = vpop.f32.mrb[0].mxu0
      %v2342 = vadd.f32 0.0, %v2341
      %v2343 = vpop.f32.mrb[0].mxu0
      %2344 = vmatprep.mubr.bf16.mxu0 0
      %2345 = vmatmul.mubr.bf16.gmra.mrb[0].mxu0 %v2199
      %v2346 = vpop.f32.mrb[0].mxu0
      %v2347 = vadd.f32 0.0, %v2346
      %v2348 = vpop.f32.mrb[0].mxu0
      %v2349 = vpop.f32.mrb[0].mxu0
      %v2350 = vadd.f32 0.0, %v2349
      %v2351 = vpop.f32.mrb[0].mxu0
      %2352 = vmatprep.mubr.bf16.mxu0 0
      %2353 = vmatmul.mubr.bf16.gmra.mrb[0].mxu0 %v2207
      %v2354 = vpop.f32.mrb[0].mxu0
      %v2355 = vadd.f32 0.0, %v2354
      %v2356 = vpop.f32.mrb[0].mxu0
      %v2357 = vpop.f32.mrb[0].mxu0
      %v2358 = vadd.f32 0.0, %v2357
      %v2359 = vpop.f32.mrb[0].mxu0
      %2360 = vmatprep.mubr.bf16.mxu0 0
      %2361 = vmatmul.mubr.bf16.gmra.mrb[0].mxu0 %v2215
      %v2362 = vpop.f32.mrb[0].mxu0
      %v2363 = vadd.f32 0.0, %v2362
      %v2364 = vpop.f32.mrb[0].mxu0
      %v2365 = vpop.f32.mrb[0].mxu0
      %v2366 = vadd.f32 0.0, %v2365
      %v2367 = vpop.f32.mrb[0].mxu0
      %2368 = vmatprep.mubr.bf16.mxu0 0
      %2369 = vmatmul.mubr.bf16.gmra.mrb[0].mxu0 %v2223
      %v2370 = vpop.f32.mrb[0].mxu0
      %v2371 = vadd.f32 0.0, %v2370
      %v2372 = vpop.f32.mrb[0].mxu0
      %v2373 = vpop.f32.mrb[0].mxu0
      %v2374 = vadd.f32 0.0, %v2373
      %v2375 = vpop.f32.mrb[0].mxu0
      %2376 = vmatprep.mubr.bf16.mxu0 0
      %2377 = vmatmul.mubr.bf16.gmra.mrb[0].mxu0 %v2231
      %v2378 = vpop.f32.mrb[0].mxu0
      %v2379 = vadd.f32 0.0, %v2378
      %v2380 = vpop.f32.mrb[0].mxu0
      %v2381 = vpop.f32.mrb[0].mxu0
      %v2382 = vadd.f32 0.0, %v2381
      %v2383 = vpop.f32.mrb[0].mxu0
      %2384 = vmatprep.mubr.bf16.mxu0 0
      %2385 = vmatmul.mubr.bf16.gmra.mrb[0].mxu0 %v2239
      %v2386 = vpop.f32.mrb[0].mxu0
      %v2387 = vadd.f32 0.0, %v2386
      %v2388 = vpop.f32.mrb[0].mxu0
      %v2389 = vpop.f32.mrb[0].mxu0
      %v2390 = vadd.f32 0.0, %v2389
      %v2391 = vpop.f32.mrb[0].mxu0
      %2392 = vdwg.mxu0
      %v2393 = vadd.f32 %v2136, %v2331
      %v2394 = vadd.f32 %v2137, %v2334
      %v2395 = vadd.f32 %v2138, %v2339
      %v2396 = vadd.f32 %v2139, %v2342
      %v2397 = vadd.f32 %v2140, %v2347
      %v2398 = vadd.f32 %v2141, %v2350
      %v2399 = vadd.f32 %v2142, %v2355
      %v2400 = vadd.f32 %v2143, %v2358
      %v2401 = vadd.f32 %v2144, %v2363
      %v2402 = vadd.f32 %v2145, %v2366
      %v2403 = vadd.f32 %v2146, %v2371
      %v2404 = vadd.f32 %v2147, %v2374
      %v2405 = vadd.f32 %v2148, %v2379
      %v2406 = vadd.f32 %v2149, %v2382
      %v2407 = vadd.f32 %v2150, %v2387
      %v2408 = vadd.f32 %v2151, %v2390
      %2409 = vst [vmem:[#allocation2] sm:$0xff] %v2393
      %2410 = vst [vmem:[#allocation2 + $0x8] sm:$0xff] %v2394
      %2411 = vst [vmem:[#allocation2 + $0x10] sm:$0xff] %v2395
      %2412 = vst [vmem:[#allocation2 + $0x18] sm:$0xff] %v2396
      %2413 = vst [vmem:[#allocation2 + $0x20] sm:$0xff] %v2397
      %2414 = vst [vmem:[#allocation2 + $0x28] sm:$0xff] %v2398
      %2415 = vst [vmem:[#allocation2 + $0x30] sm:$0xff] %v2399
      %2416 = vst [vmem:[#allocation2 + $0x38] sm:$0xff] %v2400
      %2417 = vst [vmem:[#allocation2 + $0x40] sm:$0xff] %v2401
      %2418 = vst [vmem:[#allocation2 + $0x48] sm:$0xff] %v2402
      %2419 = vst [vmem:[#allocation2 + $0x50] sm:$0xff] %v2403
      %2420 = vst [vmem:[#allocation2 + $0x58] sm:$0xff] %v2404
      %2421 = vst [vmem:[#allocation2 + $0x60] sm:$0xff] %v2405
      %2422 = vst [vmem:[#allocation2 + $0x68] sm:$0xff] %v2406
      %2423 = vst [vmem:[#allocation2 + $0x70] sm:$0xff] %v2407
      %2424 = vst [vmem:[#allocation2 + $0x78] sm:$0xff] %v2408
      %s2425 = smul.addr %s353, 4
      %s2426 = scalar_lea.vmem %s324, %s2425
      %v2427 = vld [vmem:[%s2426] sm:$0xf]
      %v2428 = vld [vmem:[%s2426 + $0x4] sm:$0xf]
      %v2429 = vld [vmem:[%s2426 + $0x8] sm:$0xf]
      %v2430 = vld [vmem:[%s2426 + $0xc] sm:$0xf]
      %v2431 = vld [vmem:[%s2426 + $0x10] sm:$0xf]
      %v2432 = vld [vmem:[%s2426 + $0x14] sm:$0xf]
      %v2433 = vld [vmem:[%s2426 + $0x18] sm:$0xf]
      %v2434 = vld [vmem:[%s2426 + $0x1c] sm:$0xf]
      %v2435 = vld [vmem:[%s2426 + $0x20] sm:$0xf]
      %v2436 = vld [vmem:[%s2426 + $0x24] sm:$0xf]
      %v2437 = vld [vmem:[%s2426 + $0x28] sm:$0xf]
      %v2438 = vld [vmem:[%s2426 + $0x2c] sm:$0xf]
      %v2439 = vld [vmem:[%s2426 + $0x30] sm:$0xf]
      %v2440 = vld [vmem:[%s2426 + $0x34] sm:$0xf]
      %v2441 = vld [vmem:[%s2426 + $0x38] sm:$0xf]
      %v2442 = vld [vmem:[%s2426 + $0x3c] sm:$0xf]
      %v2443 = vld [vmem:[#allocation2] sm:$0xff]
      %v2444 = vld [vmem:[#allocation2 + $0x8] sm:$0xff]
      %v2445 = vld [vmem:[#allocation2 + $0x10] sm:$0xff]
      %v2446 = vld [vmem:[#allocation2 + $0x18] sm:$0xff]
      %v2447 = vld [vmem:[#allocation2 + $0x20] sm:$0xff]
      %v2448 = vld [vmem:[#allocation2 + $0x28] sm:$0xff]
      %v2449 = vld [vmem:[#allocation2 + $0x30] sm:$0xff]
      %v2450 = vld [vmem:[#allocation2 + $0x38] sm:$0xff]
      %v2451 = vld [vmem:[#allocation2 + $0x40] sm:$0xff]
      %v2452 = vld [vmem:[#allocation2 + $0x48] sm:$0xff]
      %v2453 = vld [vmem:[#allocation2 + $0x50] sm:$0xff]
      %v2454 = vld [vmem:[#allocation2 + $0x58] sm:$0xff]
      %v2455 = vld [vmem:[#allocation2 + $0x60] sm:$0xff]
      %v2456 = vld [vmem:[#allocation2 + $0x68] sm:$0xff]
      %v2457 = vld [vmem:[#allocation2 + $0x70] sm:$0xff]
      %v2458 = vld [vmem:[#allocation2 + $0x78] sm:$0xff]
      %s2459 = scalar_lea.vmem %s4, 256
      %v2460 = vld [vmem:[%s2459] sm:$0xf]
      %v2461 = vld [vmem:[%s2459 + $0x4] sm:$0xf]
      %v2462 = vld [vmem:[%s2459 + $0x8] sm:$0xf]
      %v2463 = vld [vmem:[%s2459 + $0xc] sm:$0xf]
      %v2464 = vld [vmem:[%s2459 + $0x10] sm:$0xf]
      %v2465 = vld [vmem:[%s2459 + $0x14] sm:$0xf]
      %v2466 = vld [vmem:[%s2459 + $0x18] sm:$0xf]
      %v2467 = vld [vmem:[%s2459 + $0x1c] sm:$0xf]
      %v2468 = vld [vmem:[%s2459 + $0x20] sm:$0xf]
      %v2469 = vld [vmem:[%s2459 + $0x24] sm:$0xf]
      %v2470 = vld [vmem:[%s2459 + $0x28] sm:$0xf]
      %v2471 = vld [vmem:[%s2459 + $0x2c] sm:$0xf]
      %v2472 = vld [vmem:[%s2459 + $0x30] sm:$0xf]
      %v2473 = vld [vmem:[%s2459 + $0x34] sm:$0xf]
      %v2474 = vld [vmem:[%s2459 + $0x38] sm:$0xf]
      %v2475 = vld [vmem:[%s2459 + $0x3c] sm:$0xf]
      %v2492 = vunpack.c.l.b16 %v2427
      %v2493 = vunpack.c.l.b16 %v2428
      %v2494 = vunpack.c.l.b16 %v2429
      %v2495 = vunpack.c.l.b16 %v2430
      %v2496 = vunpack.c.l.b16 %v2431
      %v2497 = vunpack.c.l.b16 %v2432
      %v2498 = vunpack.c.l.b16 %v2433
      %v2499 = vunpack.c.l.b16 %v2434
      %v2500 = vunpack.c.l.b16 %v2435
      %v2501 = vunpack.c.l.b16 %v2436
      %v2502 = vunpack.c.l.b16 %v2437
      %v2503 = vunpack.c.l.b16 %v2438
      %v2504 = vunpack.c.l.b16 %v2439
      %v2505 = vunpack.c.l.b16 %v2440
      %v2506 = vunpack.c.l.b16 %v2441
      %v2507 = vunpack.c.l.b16 %v2442
      %v2508 = vpack.c.b16 %v2493, %v2492
      %v2509 = vpack.c.b16 %v2495, %v2494
      %v2510 = vpack.c.b16 %v2497, %v2496
      %v2511 = vpack.c.b16 %v2499, %v2498
      %v2512 = vpack.c.b16 %v2501, %v2500
      %v2513 = vpack.c.b16 %v2503, %v2502
      %v2514 = vpack.c.b16 %v2505, %v2504
      %v2515 = vpack.c.b16 %v2507, %v2506
      %v2540 = vunpack.c.l.b16 %v2460
      %v2541 = vunpack.c.l.b16 %v2461
      %v2542 = vunpack.c.l.b16 %v2462
      %v2543 = vunpack.c.l.b16 %v2463
      %v2544 = vunpack.c.l.b16 %v2464
      %v2545 = vunpack.c.l.b16 %v2465
      %v2546 = vunpack.c.l.b16 %v2466
      %v2547 = vunpack.c.l.b16 %v2467
      %v2548 = vunpack.c.l.b16 %v2468
      %v2549 = vunpack.c.l.b16 %v2469
      %v2550 = vunpack.c.l.b16 %v2470
      %v2551 = vunpack.c.l.b16 %v2471
      %v2552 = vunpack.c.l.b16 %v2472
      %v2553 = vunpack.c.l.b16 %v2473
      %v2554 = vunpack.c.l.b16 %v2474
      %v2555 = vunpack.c.l.b16 %v2475
      %v2556 = vpack.c.b16 %v2541, %v2540
      %v2557 = vpack.c.b16 %v2543, %v2542
      %v2558 = vpack.c.b16 %v2545, %v2544
      %v2559 = vpack.c.b16 %v2547, %v2546
      %v2560 = vpack.c.b16 %v2549, %v2548
      %v2561 = vpack.c.b16 %v2551, %v2550
      %v2562 = vpack.c.b16 %v2553, %v2552
      %v2563 = vpack.c.b16 %v2555, %v2554
      %2572 = vmatprep.subr.bf16.mxu0 0
      %2573 = vmatpush1.bf16.msra.mxu0 %v2556
      %2574 = vmatprep.subr.bf16.mxu0 0
      %2575 = vmatpush1.bf16.msra.mxu0 %v2557
      %2576 = vmatprep.subr.bf16.mxu0 0
      %2577 = vmatpush1.bf16.msra.mxu0 %v2558
      %2578 = vmatprep.subr.bf16.mxu0 0
      %2579 = vmatpush1.bf16.msra.mxu0 %v2559
      %2580 = vmatprep.subr.bf16.mxu0 0
      %2581 = vmatpush1.bf16.msra.mxu0 %v2560
      %2582 = vmatprep.subr.bf16.mxu0 0
      %2583 = vmatpush1.bf16.msra.mxu0 %v2561
      %2584 = vmatprep.subr.bf16.mxu0 0
      %2585 = vmatpush1.bf16.msra.mxu0 %v2562
      %2586 = vmatprep.subr.bf16.mxu0 0
      %2587 = vmatpush1.bf16.msra.mxu0 %v2563
      %2588 = vmatprep.subr.bf16.mxu0 0
      %2589 = vmatpush1.bf16.msra.mxu0 0
      %2590 = vmatprep.subr.bf16.mxu0 0
      %2591 = vmatpush1.bf16.msra.mxu0 0
      %2592 = vmatprep.subr.bf16.mxu0 0
      %2593 = vmatpush1.bf16.msra.mxu0 0
      %2594 = vmatprep.subr.bf16.mxu0 0
      %2595 = vmatpush1.bf16.msra.mxu0 0
      %2596 = vmatprep.subr.bf16.mxu0 0
      %2597 = vmatpush1.bf16.msra.mxu0 0
      %2598 = vmatprep.subr.bf16.mxu0 0
      %2599 = vmatpush1.bf16.msra.mxu0 0
      %2600 = vmatprep.subr.bf16.mxu0 0
      %2601 = vmatpush1.bf16.msra.mxu0 0
      %2602 = vmatprep.subr.bf16.mxu0 0
      %2603 = vmatpush1.bf16.msra.mxu0 0
      %2604 = vmatprep.mubr.bf16.mxu0 0
      %2605 = vmatmul.mubr.bf16.gmra.mrb[0].mxu0 %v2508
      %v2606 = vpop.f32.mrb[0].mxu0
      %v2607 = vadd.f32 0.0, %v2606
      %v2608 = vpop.f32.mrb[0].mxu0
      %v2609 = vpop.f32.mrb[0].mxu0
      %v2610 = vadd.f32 0.0, %v2609
      %v2611 = vpop.f32.mrb[0].mxu0
      %2612 = vmatprep.mubr.bf16.mxu0 0
      %2613 = vmatmul.mubr.bf16.gmra.mrb[0].mxu0 %v2509
      %v2614 = vpop.f32.mrb[0].mxu0
      %v2615 = vadd.f32 0.0, %v2614
      %v2616 = vpop.f32.mrb[0].mxu0
      %v2617 = vpop.f32.mrb[0].mxu0
      %v2618 = vadd.f32 0.0, %v2617
      %v2619 = vpop.f32.mrb[0].mxu0
      %2620 = vmatprep.mubr.bf16.mxu0 0
      %2621 = vmatmul.mubr.bf16.gmra.mrb[0].mxu0 %v2510
      %v2622 = vpop.f32.mrb[0].mxu0
      %v2623 = vadd.f32 0.0, %v2622
      %v2624 = vpop.f32.mrb[0].mxu0
      %v2625 = vpop.f32.mrb[0].mxu0
      %v2626 = vadd.f32 0.0, %v2625
      %v2627 = vpop.f32.mrb[0].mxu0
      %2628 = vmatprep.mubr.bf16.mxu0 0
      %2629 = vmatmul.mubr.bf16.gmra.mrb[0].mxu0 %v2511
      %v2630 = vpop.f32.mrb[0].mxu0
      %v2631 = vadd.f32 0.0, %v2630
      %v2632 = vpop.f32.mrb[0].mxu0
      %v2633 = vpop.f32.mrb[0].mxu0
      %v2634 = vadd.f32 0.0, %v2633
      %v2635 = vpop.f32.mrb[0].mxu0
      %2636 = vmatprep.mubr.bf16.mxu0 0
      %2637 = vmatmul.mubr.bf16.gmra.mrb[0].mxu0 %v2512
      %v2638 = vpop.f32.mrb[0].mxu0
      %v2639 = vadd.f32 0.0, %v2638
      %v2640 = vpop.f32.mrb[0].mxu0
      %v2641 = vpop.f32.mrb[0].mxu0
      %v2642 = vadd.f32 0.0, %v2641
      %v2643 = vpop.f32.mrb[0].mxu0
      %2644 = vmatprep.mubr.bf16.mxu0 0
      %2645 = vmatmul.mubr.bf16.gmra.mrb[0].mxu0 %v2513
      %v2646 = vpop.f32.mrb[0].mxu0
      %v2647 = vadd.f32 0.0, %v2646
      %v2648 = vpop.f32.mrb[0].mxu0
      %v2649 = vpop.f32.mrb[0].mxu0
      %v2650 = vadd.f32 0.0, %v2649
      %v2651 = vpop.f32.mrb[0].mxu0
      %2652 = vmatprep.mubr.bf16.mxu0 0
      %2653 = vmatmul.mubr.bf16.gmra.mrb[0].mxu0 %v2514
      %v2654 = vpop.f32.mrb[0].mxu0
      %v2655 = vadd.f32 0.0, %v2654
      %v2656 = vpop.f32.mrb[0].mxu0
      %v2657 = vpop.f32.mrb[0].mxu0
      %v2658 = vadd.f32 0.0, %v2657
      %v2659 = vpop.f32.mrb[0].mxu0
      %2660 = vmatprep.mubr.bf16.mxu0 0
      %2661 = vmatmul.mubr.bf16.gmra.mrb[0].mxu0 %v2515
      %v2662 = vpop.f32.mrb[0].mxu0
      %v2663 = vadd.f32 0.0, %v2662
      %v2664 = vpop.f32.mrb[0].mxu0
      %v2665 = vpop.f32.mrb[0].mxu0
      %v2666 = vadd.f32 0.0, %v2665
      %v2667 = vpop.f32.mrb[0].mxu0
      %2668 = vdwg.mxu0
      %v2669 = vadd.f32 %v2443, %v2607
      %v2670 = vadd.f32 %v2444, %v2610
      %v2671 = vadd.f32 %v2445, %v2615
      %v2672 = vadd.f32 %v2446, %v2618
      %v2673 = vadd.f32 %v2447, %v2623
      %v2674 = vadd.f32 %v2448, %v2626
      %v2675 = vadd.f32 %v2449, %v2631
      %v2676 = vadd.f32 %v2450, %v2634
      %v2677 = vadd.f32 %v2451, %v2639
      %v2678 = vadd.f32 %v2452, %v2642
      %v2679 = vadd.f32 %v2453, %v2647
      %v2680 = vadd.f32 %v2454, %v2650
      %v2681 = vadd.f32 %v2455, %v2655
      %v2682 = vadd.f32 %v2456, %v2658
      %v2683 = vadd.f32 %v2457, %v2663
      %v2684 = vadd.f32 %v2458, %v2666
      %2685 = vst [vmem:[#allocation2] sm:$0xff] %v2669
      %2686 = vst [vmem:[#allocation2 + $0x8] sm:$0xff] %v2670
      %2687 = vst [vmem:[#allocation2 + $0x10] sm:$0xff] %v2671
      %2688 = vst [vmem:[#allocation2 + $0x18] sm:$0xff] %v2672
      %2689 = vst [vmem:[#allocation2 + $0x20] sm:$0xff] %v2673
      %2690 = vst [vmem:[#allocation2 + $0x28] sm:$0xff] %v2674
      %2691 = vst [vmem:[#allocation2 + $0x30] sm:$0xff] %v2675
      %2692 = vst [vmem:[#allocation2 + $0x38] sm:$0xff] %v2676
      %2693 = vst [vmem:[#allocation2 + $0x40] sm:$0xff] %v2677
      %2694 = vst [vmem:[#allocation2 + $0x48] sm:$0xff] %v2678
      %2695 = vst [vmem:[#allocation2 + $0x50] sm:$0xff] %v2679
      %2696 = vst [vmem:[#allocation2 + $0x58] sm:$0xff] %v2680
      %2697 = vst [vmem:[#allocation2 + $0x60] sm:$0xff] %v2681
      %2698 = vst [vmem:[#allocation2 + $0x68] sm:$0xff] %v2682
      %2699 = vst [vmem:[#allocation2 + $0x70] sm:$0xff] %v2683
      %2700 = vst [vmem:[#allocation2 + $0x78] sm:$0xff] %v2684
      %v2701 = vld [vmem:[#allocation2] sm:$0xff]
      %v2702 = vld [vmem:[#allocation2 + $0x10] sm:$0xff]
      %v2703 = vld [vmem:[#allocation2 + $0x20] sm:$0xff]
      %v2704 = vld [vmem:[#allocation2 + $0x30] sm:$0xff]
      %v2705 = vld [vmem:[#allocation2 + $0x40] sm:$0xff]
      %v2706 = vld [vmem:[#allocation2 + $0x50] sm:$0xff]
      %v2707 = vld [vmem:[#allocation2 + $0x60] sm:$0xff]
      %v2708 = vld [vmem:[#allocation2 + $0x70] sm:$0xff]
      %v2709 = vld [vmem:[%s5] sm:$0x1]
      %v2711 = vlaneseq
      %v2712 = vshrl.u32 %v2711, 7
      %v2713 = vsub.s32 0, %v2712
      %v2714 = vrot.slane %v2709, %v2713
      %v2716 = vadd.f32 %v2701, %v2714
      %v2717 = vadd.f32 %v2702, %v2714
      %v2718 = vadd.f32 %v2703, %v2714
      %v2719 = vadd.f32 %v2704, %v2714
      %v2720 = vadd.f32 %v2705, %v2714
      %v2721 = vadd.f32 %v2706, %v2714
      %v2722 = vadd.f32 %v2707, %v2714
      %v2723 = vadd.f32 %v2708, %v2714
      %v2724 = vmax.f32 %v2716, 0.0
      %v2725 = vmax.f32 %v2717, 0.0
      %v2726 = vmax.f32 %v2718, 0.0
      %v2727 = vmax.f32 %v2719, 0.0
      %v2728 = vmax.f32 %v2720, 0.0
      %v2729 = vmax.f32 %v2721, 0.0
      %v2730 = vmax.f32 %v2722, 0.0
      %v2731 = vmax.f32 %v2723, 0.0
      %v2732 = vpack.c.bf16 %v2724, %v2724
      %v2733 = vpack.c.bf16 %v2725, %v2725
      %v2734 = vpack.c.bf16 %v2726, %v2726
      %v2735 = vpack.c.bf16 %v2727, %v2727
      %v2736 = vpack.c.bf16 %v2728, %v2728
      %v2737 = vpack.c.bf16 %v2729, %v2729
      %v2738 = vpack.c.bf16 %v2730, %v2730
      %v2739 = vpack.c.bf16 %v2731, %v2731
      %2740 = vst [vmem:[%s333] sm:$0xf] %v2732
      %2741 = vst [vmem:[%s333 + $0x4] sm:$0xf] %v2733
      %2742 = vst [vmem:[%s333 + $0x8] sm:$0xf] %v2734
      %2743 = vst [vmem:[%s333 + $0xc] sm:$0xf] %v2735
      %2744 = vst [vmem:[%s333 + $0x10] sm:$0xf] %v2736
      %2745 = vst [vmem:[%s333 + $0x14] sm:$0xf] %v2737
      %2746 = vst [vmem:[%s333 + $0x18] sm:$0xf] %v2738
      %2747 = vst [vmem:[%s333 + $0x1c] sm:$0xf] %v2739
      %s2748 = smul.u32 8, %s22
      %p2749 = scmp.lt.s32.totalorder %s21, 1
      %s2750 = scalar_select %p2749, %s21, 1
      %p2751 = scmp.lt.s32.totalorder %s2748, 7
      %s2752 = scalar_select %p2751, %s2748, 7
      %s2753 = smul.addr %s2750, 8
      %s2754 = sadd.s32 %s2752, %s2753
      %s2755 = smul.addr %s2754, 4
      %s2756 = scalar_lea.vmem %s6, %s2755
      // Predicated region
      $region45: #{_lambda_.4} parent=43 // pred_check
        %p2757 = pneg %p195
      $region46: #{_lambda_.4} parent=43 // pred_check_branch
        %2759 = sbr.rel (%p2757) target = $region48
      $region47: #{_lambda_.4} parent=43 // pred_region
        %s2760 = smul.u32 8, %s22
      $region48: #{_lambda_.4} parent=43 // pred_fallthru
        _
    $region44: #{_lambda_.4} parent=5 // pred_fallthru
      _
    %p2761 = scmp.le.s32.totalorder 2, %s12
    // Predicated region
    $region49: #{_lambda_.4} parent=5 // pred_check
      %p2762 = pneg %p2761
    $region50: #{_lambda_.4} parent=5 // pred_check_branch
      %2764 = sbr.rel (%p2762) target = $region52
    $region51: #{_lambda_.4} parent=5 // pred_region
      %s2765 = ssub.s32 %s12, 2
      // Predicated region
      $region53: #{_lambda_.4} parent=51 // pred_check
        %p2766 = pneg %p201
      $region54: #{_lambda_.4} parent=51 // pred_check_branch
        %2768 = sbr.rel (%p2766) target = $region56
      $region55: #{_lambda_.4} parent=51 // pred_region
        %s2769 = smul.u32 8, %s24
        %p2770 = scmp.lt.s32.totalorder %s23, 1
        %s2771 = scalar_select %p2770, %s23, 1
        %p2772 = scmp.lt.s32.totalorder %s2769, 7
        %s2773 = scalar_select %p2772, %s2769, 7
        %s2774 = smul.addr %s2771, 8
        %s2775 = sadd.s32 %s2773, %s2774
        %s2776 = smul.addr %s2775, 4
        %s2777 = scalar_lea.vmem %s6, %s2776
      $region56: #{_lambda_.4} parent=51 // pred_fallthru
        _
    $region52: #{_lambda_.4} parent=5 // pred_fallthru
      _
  $region6: #{_lambda_.4} parent=0 // loop_footer
    %s16 = sadd.s32 1, %s12
  $region7: #{_lambda_.4} parent=0 // loop_footer_branch
    %11 = sbr.rel target = $region3
  $region8: #{_lambda_.4} parent=0 // loop_exit
    _

// kernel: _lambda_.5
$region0: #{_lambda_.5}
  #allocation0 [shape = 'u32[]', space=smem, size = 0x4, offset = 0x4, fixed_abs, tag = 'smem constant byte address 0x4 - core index']
  #allocation1 [shape = 'u32[144,128]{1,0:T(1,128)}', space=vmem, size = 0x12000, scoped, tag = 'internal scratch']
  #allocation2 [shape = 'f32[128,128]{1,0:T(8,128)}', space=vmem, size = 0x10000, scoped, tag = 'scratch operand']
  %s0 = inlined_call_operand.vmem [shape: bf16[128,128], index: 0, kind: input, shape index: {}]
  %s1 = inlined_call_operand.vmem [shape: bf16[128,128], index: 1, kind: input, shape index: {}]
  %s2 = inlined_call_operand.vmem [shape: bf16[128,128], index: 2, kind: input, shape index: {}]
  %s3 = inlined_call_operand.vmem [shape: bf16[128,128], index: 3, kind: input, shape index: {}]
  %s4 = inlined_call_operand.vmem [shape: f32[1,128], index: 4, kind: input, shape index: {}]
  %s5 = inlined_call_operand.vmem [shape: f32[128,128], index: 5, kind: output, shape index: {}]
  %s6 = sld [smem:[#allocation0]]
  $region30: #{_lambda_.5} parent=0
    _
  %s8 = ssub.s32 1, %s6
  %s9 = scalar_select 0, %s8, %s6
  // Predicated region
  $region2: #{_lambda_.5} parent=0 // pred_check
    _
  $region3: #{_lambda_.5} parent=0 // pred_check_branch
    %11 = sbr.rel (0) target = $region5
  $region4: #{_lambda_.5} parent=0 // pred_region
    _
  $region5: #{_lambda_.5} parent=0 // pred_fallthru
    _
  // Predicated region
  $region6: #{_lambda_.5} parent=0 // pred_check
    _
  $region7: #{_lambda_.5} parent=0 // pred_check_branch
    %13 = sbr.rel (0) target = $region9
  $region8: #{_lambda_.5} parent=0 // pred_region
    _
  $region9: #{_lambda_.5} parent=0 // pred_fallthru
    _
  // Predicated region
  $region10: #{_lambda_.5} parent=0 // pred_check
    _
  $region11: #{_lambda_.5} parent=0 // pred_check_branch
    %15 = sbr.rel (0) target = $region13
  $region12: #{_lambda_.5} parent=0 // pred_region
    _
  $region13: #{_lambda_.5} parent=0 // pred_fallthru
    _
  // Predicated region
  $region14: #{_lambda_.5} parent=0 // pred_check
    _
  $region15: #{_lambda_.5} parent=0 // pred_check_branch
    %17 = sbr.rel (0) target = $region17
  $region16: #{_lambda_.5} parent=0 // pred_region
    _
  $region17: #{_lambda_.5} parent=0 // pred_fallthru
    _
  // Predicated region
  $region18: #{_lambda_.5} parent=0 // pred_check
    _
  $region19: #{_lambda_.5} parent=0 // pred_check_branch
    %19 = sbr.rel (0) target = $region21
  $region20: #{_lambda_.5} parent=0 // pred_region
    _
  $region21: #{_lambda_.5} parent=0 // pred_fallthru
    _
  %v21 = vld [vmem:[%s0] sm:$0xf]
  %v22 = vld [vmem:[%s0 + $0x4] sm:$0xf]
  %v23 = vld [vmem:[%s0 + $0x8] sm:$0xf]
  %v24 = vld [vmem:[%s0 + $0xc] sm:$0xf]
  %v25 = vld [vmem:[%s0 + $0x10] sm:$0xf]
  %v26 = vld [vmem:[%s0 + $0x14] sm:$0xf]
  %v27 = vld [vmem:[%s0 + $0x18] sm:$0xf]
  %v28 = vld [vmem:[%s0 + $0x1c] sm:$0xf]
  %v29 = vld [vmem:[%s0 + $0x20] sm:$0xf]
  %v30 = vld [vmem:[%s0 + $0x24] sm:$0xf]
  %v31 = vld [vmem:[%s0 + $0x28] sm:$0xf]
  %v32 = vld [vmem:[%s0 + $0x2c] sm:$0xf]
  %v33 = vld [vmem:[%s0 + $0x30] sm:$0xf]
  %v34 = vld [vmem:[%s0 + $0x34] sm:$0xf]
  %v35 = vld [vmem:[%s0 + $0x38] sm:$0xf]
  %v36 = vld [vmem:[%s0 + $0x3c] sm:$0xf]
  %v37 = vld [vmem:[%s2] sm:$0xf]
  %v38 = vld [vmem:[%s2 + $0x4] sm:$0xf]
  %v39 = vld [vmem:[%s2 + $0x8] sm:$0xf]
  %v40 = vld [vmem:[%s2 + $0xc] sm:$0xf]
  %v41 = vld [vmem:[%s2 + $0x10] sm:$0xf]
  %v42 = vld [vmem:[%s2 + $0x14] sm:$0xf]
  %v43 = vld [vmem:[%s2 + $0x18] sm:$0xf]
  %v44 = vld [vmem:[%s2 + $0x1c] sm:$0xf]
  %v45 = vld [vmem:[%s2 + $0x20] sm:$0xf]
  %v46 = vld [vmem:[%s2 + $0x24] sm:$0xf]
  %v47 = vld [vmem:[%s2 + $0x28] sm:$0xf]
  %v48 = vld [vmem:[%s2 + $0x2c] sm:$0xf]
  %v49 = vld [vmem:[%s2 + $0x30] sm:$0xf]
  %v50 = vld [vmem:[%s2 + $0x34] sm:$0xf]
  %v51 = vld [vmem:[%s2 + $0x38] sm:$0xf]
  %v52 = vld [vmem:[%s2 + $0x3c] sm:$0xf]
  %v69 = vunpack.c.l.b16 %v21
  %v70 = vunpack.c.l.b16 %v22
  %v71 = vunpack.c.l.b16 %v23
  %v72 = vunpack.c.l.b16 %v24
  %v73 = vunpack.c.l.b16 %v25
  %v74 = vunpack.c.l.b16 %v26
  %v75 = vunpack.c.l.b16 %v27
  %v76 = vunpack.c.l.b16 %v28
  %v77 = vunpack.c.l.b16 %v29
  %v78 = vunpack.c.l.b16 %v30
  %v79 = vunpack.c.l.b16 %v31
  %v80 = vunpack.c.l.b16 %v32
  %v81 = vunpack.c.l.b16 %v33
  %v82 = vunpack.c.l.b16 %v34
  %v83 = vunpack.c.l.b16 %v35
  %v84 = vunpack.c.l.b16 %v36
  %v85 = vpack.c.b16 %v70, %v69
  %v86 = vpack.c.b16 %v72, %v71
  %v87 = vpack.c.b16 %v74, %v73
  %v88 = vpack.c.b16 %v76, %v75
  %v89 = vpack.c.b16 %v78, %v77
  %v90 = vpack.c.b16 %v80, %v79
  %v91 = vpack.c.b16 %v82, %v81
  %v92 = vpack.c.b16 %v84, %v83
  %v117 = vunpack.c.l.b16 %v37
  %v118 = vunpack.c.l.b16 %v38
  %v119 = vunpack.c.l.b16 %v39
  %v120 = vunpack.c.l.b16 %v40
  %v121 = vunpack.c.l.b16 %v41
  %v122 = vunpack.c.l.b16 %v42
  %v123 = vunpack.c.l.b16 %v43
  %v124 = vunpack.c.l.b16 %v44
  %v125 = vunpack.c.l.b16 %v45
  %v126 = vunpack.c.l.b16 %v46
  %v127 = vunpack.c.l.b16 %v47
  %v128 = vunpack.c.l.b16 %v48
  %v129 = vunpack.c.l.b16 %v49
  %v130 = vunpack.c.l.b16 %v50
  %v131 = vunpack.c.l.b16 %v51
  %v132 = vunpack.c.l.b16 %v52
  %v133 = vpack.c.b16 %v118, %v117
  %v134 = vpack.c.b16 %v120, %v119
  %v135 = vpack.c.b16 %v122, %v121
  %v136 = vpack.c.b16 %v124, %v123
  %v137 = vpack.c.b16 %v126, %v125
  %v138 = vpack.c.b16 %v128, %v127
  %v139 = vpack.c.b16 %v130, %v129
  %v140 = vpack.c.b16 %v132, %v131
  %149 = vmatprep.subr.bf16.mxu0 0
  %150 = vmatpush1.bf16.msra.mxu0 %v133
  %151 = vmatprep.subr.bf16.mxu0 0
  %152 = vmatpush1.bf16.msra.mxu0 %v134
  %153 = vmatprep.subr.bf16.mxu0 0
  %154 = vmatpush1.bf16.msra.mxu0 %v135
  %155 = vmatprep.subr.bf16.mxu0 0
  %156 = vmatpush1.bf16.msra.mxu0 %v136
  %157 = vmatprep.subr.bf16.mxu0 0
  %158 = vmatpush1.bf16.msra.mxu0 %v137
  %159 = vmatprep.subr.bf16.mxu0 0
  %160 = vmatpush1.bf16.msra.mxu0 %v138
  %161 = vmatprep.subr.bf16.mxu0 0
  %162 = vmatpush1.bf16.msra.mxu0 %v139
  %163 = vmatprep.subr.bf16.mxu0 0
  %164 = vmatpush1.bf16.msra.mxu0 %v140
  %165 = vmatprep.subr.bf16.mxu0 0
  %166 = vmatpush1.bf16.msra.mxu0 0
  %167 = vmatprep.subr.bf16.mxu0 0
  %168 = vmatpush1.bf16.msra.mxu0 0
  %169 = vmatprep.subr.bf16.mxu0 0
  %170 = vmatpush1.bf16.msra.mxu0 0
  %171 = vmatprep.subr.bf16.mxu0 0
  %172 = vmatpush1.bf16.msra.mxu0 0
  %173 = vmatprep.subr.bf16.mxu0 0
  %174 = vmatpush1.bf16.msra.mxu0 0
  %175 = vmatprep.subr.bf16.mxu0 0
  %176 = vmatpush1.bf16.msra.mxu0 0
  %177 = vmatprep.subr.bf16.mxu0 0
  %178 = vmatpush1.bf16.msra.mxu0 0
  %179 = vmatprep.subr.bf16.mxu0 0
  %180 = vmatpush1.bf16.msra.mxu0 0
  %181 = vmatprep.mubr.bf16.mxu0 0
  %182 = vmatmul.mubr.bf16.gmra.mrb[0].mxu0 %v85
  %v183 = vpop.f32.mrb[0].mxu0
  %v184 = vadd.f32 0.0, %v183
  %v185 = vpop.f32.mrb[0].mxu0
  %v186 = vpop.f32.mrb[0].mxu0
  %v187 = vadd.f32 0.0, %v186
  %v188 = vpop.f32.mrb[0].mxu0
  %189 = vmatprep.mubr.bf16.mxu0 0
  %190 = vmatmul.mubr.bf16.gmra.mrb[0].mxu0 %v86
  %v191 = vpop.f32.mrb[0].mxu0
  %v192 = vadd.f32 0.0, %v191
  %v193 = vpop.f32.mrb[0].mxu0
  %v194 = vpop.f32.mrb[0].mxu0
  %v195 = vadd.f32 0.0, %v194
  %v196 = vpop.f32.mrb[0].mxu0
  %197 = vmatprep.mubr.bf16.mxu0 0
  %198 = vmatmul.mubr.bf16.gmra.mrb[0].mxu0 %v87
  %v199 = vpop.f32.mrb[0].mxu0
  %v200 = vadd.f32 0.0, %v199
  %v201 = vpop.f32.mrb[0].mxu0
  %v202 = vpop.f32.mrb[0].mxu0
  %v203 = vadd.f32 0.0, %v202
  %v204 = vpop.f32.mrb[0].mxu0
  %205 = vmatprep.mubr.bf16.mxu0 0
  %206 = vmatmul.mubr.bf16.gmra.mrb[0].mxu0 %v88
  %v207 = vpop.f32.mrb[0].mxu0
  %v208 = vadd.f32 0.0, %v207
  %v209 = vpop.f32.mrb[0].mxu0
  %v210 = vpop.f32.mrb[0].mxu0
  %v211 = vadd.f32 0.0, %v210
  %v212 = vpop.f32.mrb[0].mxu0
  %213 = vmatprep.mubr.bf16.mxu0 0
  %214 = vmatmul.mubr.bf16.gmra.mrb[0].mxu0 %v89
  %v215 = vpop.f32.mrb[0].mxu0
  %v216 = vadd.f32 0.0, %v215
  %v217 = vpop.f32.mrb[0].mxu0
  %v218 = vpop.f32.mrb[0].mxu0
  %v219 = vadd.f32 0.0, %v218
  %v220 = vpop.f32.mrb[0].mxu0
  %221 = vmatprep.mubr.bf16.mxu0 0
  %222 = vmatmul.mubr.bf16.gmra.mrb[0].mxu0 %v90
  %v223 = vpop.f32.mrb[0].mxu0
  %v224 = vadd.f32 0.0, %v223
  %v225 = vpop.f32.mrb[0].mxu0
  %v226 = vpop.f32.mrb[0].mxu0
  %v227 = vadd.f32 0.0, %v226
  %v228 = vpop.f32.mrb[0].mxu0
  %229 = vmatprep.mubr.bf16.mxu0 0
  %230 = vmatmul.mubr.bf16.gmra.mrb[0].mxu0 %v91
  %v231 = vpop.f32.mrb[0].mxu0
  %v232 = vadd.f32 0.0, %v231
  %v233 = vpop.f32.mrb[0].mxu0
  %v234 = vpop.f32.mrb[0].mxu0
  %v235 = vadd.f32 0.0, %v234
  %v236 = vpop.f32.mrb[0].mxu0
  %237 = vmatprep.mubr.bf16.mxu0 0
  %238 = vmatmul.mubr.bf16.gmra.mrb[0].mxu0 %v92
  %v239 = vpop.f32.mrb[0].mxu0
  %v240 = vadd.f32 0.0, %v239
  %v241 = vpop.f32.mrb[0].mxu0
  %v242 = vpop.f32.mrb[0].mxu0
  %v243 = vadd.f32 0.0, %v242
  %v244 = vpop.f32.mrb[0].mxu0
  %245 = vdwg.mxu0
  %246 = vst [vmem:[#allocation2] sm:$0xff] %v184
  %247 = vst [vmem:[#allocation2 + $0x8] sm:$0xff] %v187
  %248 = vst [vmem:[#allocation2 + $0x10] sm:$0xff] %v192
  %249 = vst [vmem:[#allocation2 + $0x18] sm:$0xff] %v195
  %250 = vst [vmem:[#allocation2 + $0x20] sm:$0xff] %v200
  %251 = vst [vmem:[#allocation2 + $0x28] sm:$0xff] %v203
  %252 = vst [vmem:[#allocation2 + $0x30] sm:$0xff] %v208
  %253 = vst [vmem:[#allocation2 + $0x38] sm:$0xff] %v211
  %254 = vst [vmem:[#allocation2 + $0x40] sm:$0xff] %v216
  %255 = vst [vmem:[#allocation2 + $0x48] sm:$0xff] %v219
  %256 = vst [vmem:[#allocation2 + $0x50] sm:$0xff] %v224
  %257 = vst [vmem:[#allocation2 + $0x58] sm:$0xff] %v227
  %258 = vst [vmem:[#allocation2 + $0x60] sm:$0xff] %v232
  %259 = vst [vmem:[#allocation2 + $0x68] sm:$0xff] %v235
  %260 = vst [vmem:[#allocation2 + $0x70] sm:$0xff] %v240
  %261 = vst [vmem:[#allocation2 + $0x78] sm:$0xff] %v243
  %v262 = vld [vmem:[#allocation2] sm:$0xff]
  %v263 = vld [vmem:[#allocation2 + $0x8] sm:$0xff]
  %v264 = vld [vmem:[#allocation2 + $0x10] sm:$0xff]
  %v265 = vld [vmem:[#allocation2 + $0x18] sm:$0xff]
  %v266 = vld [vmem:[#allocation2 + $0x20] sm:$0xff]
  %v267 = vld [vmem:[#allocation2 + $0x28] sm:$0xff]
  %v268 = vld [vmem:[#allocation2 + $0x30] sm:$0xff]
  %v269 = vld [vmem:[#allocation2 + $0x38] sm:$0xff]
  %v270 = vld [vmem:[#allocation2 + $0x40] sm:$0xff]
  %v271 = vld [vmem:[#allocation2 + $0x48] sm:$0xff]
  %v272 = vld [vmem:[#allocation2 + $0x50] sm:$0xff]
  %v273 = vld [vmem:[#allocation2 + $0x58] sm:$0xff]
  %v274 = vld [vmem:[#allocation2 + $0x60] sm:$0xff]
  %v275 = vld [vmem:[#allocation2 + $0x68] sm:$0xff]
  %v276 = vld [vmem:[#allocation2 + $0x70] sm:$0xff]
  %v277 = vld [vmem:[#allocation2 + $0x78] sm:$0xff]
  %v278 = vld [vmem:[%s1] sm:$0xf]
  %v279 = vld [vmem:[%s1 + $0x4] sm:$0xf]
  %v280 = vld [vmem:[%s1 + $0x8] sm:$0xf]
  %v281 = vld [vmem:[%s1 + $0xc] sm:$0xf]
  %v282 = vld [vmem:[%s1 + $0x10] sm:$0xf]
  %v283 = vld [vmem:[%s1 + $0x14] sm:$0xf]
  %v284 = vld [vmem:[%s1 + $0x18] sm:$0xf]
  %v285 = vld [vmem:[%s1 + $0x1c] sm:$0xf]
  %v286 = vld [vmem:[%s1 + $0x20] sm:$0xf]
  %v287 = vld [vmem:[%s1 + $0x24] sm:$0xf]
  %v288 = vld [vmem:[%s1 + $0x28] sm:$0xf]
  %v289 = vld [vmem:[%s1 + $0x2c] sm:$0xf]
  %v290 = vld [vmem:[%s1 + $0x30] sm:$0xf]
  %v291 = vld [vmem:[%s1 + $0x34] sm:$0xf]
  %v292 = vld [vmem:[%s1 + $0x38] sm:$0xf]
  %v293 = vld [vmem:[%s1 + $0x3c] sm:$0xf]
  %v294 = vld [vmem:[%s3] sm:$0xf]
  %v295 = vld [vmem:[%s3 + $0x4] sm:$0xf]
  %v296 = vld [vmem:[%s3 + $0x8] sm:$0xf]
  %v297 = vld [vmem:[%s3 + $0xc] sm:$0xf]
  %v298 = vld [vmem:[%s3 + $0x10] sm:$0xf]
  %v299 = vld [vmem:[%s3 + $0x14] sm:$0xf]
  %v300 = vld [vmem:[%s3 + $0x18] sm:$0xf]
  %v301 = vld [vmem:[%s3 + $0x1c] sm:$0xf]
  %v302 = vld [vmem:[%s3 + $0x20] sm:$0xf]
  %v303 = vld [vmem:[%s3 + $0x24] sm:$0xf]
  %v304 = vld [vmem:[%s3 + $0x28] sm:$0xf]
  %v305 = vld [vmem:[%s3 + $0x2c] sm:$0xf]
  %v306 = vld [vmem:[%s3 + $0x30] sm:$0xf]
  %v307 = vld [vmem:[%s3 + $0x34] sm:$0xf]
  %v308 = vld [vmem:[%s3 + $0x38] sm:$0xf]
  %v309 = vld [vmem:[%s3 + $0x3c] sm:$0xf]
  %v326 = vunpack.c.l.b16 %v278
  %v327 = vunpack.c.l.b16 %v279
  %v328 = vunpack.c.l.b16 %v280
  %v329 = vunpack.c.l.b16 %v281
  %v330 = vunpack.c.l.b16 %v282
  %v331 = vunpack.c.l.b16 %v283
  %v332 = vunpack.c.l.b16 %v284
  %v333 = vunpack.c.l.b16 %v285
  %v334 = vunpack.c.l.b16 %v286
  %v335 = vunpack.c.l.b16 %v287
  %v336 = vunpack.c.l.b16 %v288
  %v337 = vunpack.c.l.b16 %v289
  %v338 = vunpack.c.l.b16 %v290
  %v339 = vunpack.c.l.b16 %v291
  %v340 = vunpack.c.l.b16 %v292
  %v341 = vunpack.c.l.b16 %v293
  %v342 = vpack.c.b16 %v327, %v326
  %v343 = vpack.c.b16 %v329, %v328
  %v344 = vpack.c.b16 %v331, %v330
  %v345 = vpack.c.b16 %v333, %v332
  %v346 = vpack.c.b16 %v335, %v334
  %v347 = vpack.c.b16 %v337, %v336
  %v348 = vpack.c.b16 %v339, %v338
  %v349 = vpack.c.b16 %v341, %v340
  %v374 = vunpack.c.l.b16 %v294
  %v375 = vunpack.c.l.b16 %v295
  %v376 = vunpack.c.l.b16 %v296
  %v377 = vunpack.c.l.b16 %v297
  %v378 = vunpack.c.l.b16 %v298
  %v379 = vunpack.c.l.b16 %v299
  %v380 = vunpack.c.l.b16 %v300
  %v381 = vunpack.c.l.b16 %v301
  %v382 = vunpack.c.l.b16 %v302
  %v383 = vunpack.c.l.b16 %v303
  %v384 = vunpack.c.l.b16 %v304
  %v385 = vunpack.c.l.b16 %v305
  %v386 = vunpack.c.l.b16 %v306
  %v387 = vunpack.c.l.b16 %v307
  %v388 = vunpack.c.l.b16 %v308
  %v389 = vunpack.c.l.b16 %v309
  %v390 = vpack.c.b16 %v375, %v374
  %v391 = vpack.c.b16 %v377, %v376
  %v392 = vpack.c.b16 %v379, %v378
  %v393 = vpack.c.b16 %v381, %v380
  %v394 = vpack.c.b16 %v383, %v382
  %v395 = vpack.c.b16 %v385, %v384
  %v396 = vpack.c.b16 %v387, %v386
  %v397 = vpack.c.b16 %v389, %v388
  %406 = vmatprep.subr.bf16.mxu0 0
  %407 = vmatpush1.bf16.msra.mxu0 %v390
  %408 = vmatprep.subr.bf16.mxu0 0
  %409 = vmatpush1.bf16.msra.mxu0 %v391
  %410 = vmatprep.subr.bf16.mxu0 0
  %411 = vmatpush1.bf16.msra.mxu0 %v392
  %412 = vmatprep.subr.bf16.mxu0 0
  %413 = vmatpush1.bf16.msra.mxu0 %v393
  %414 = vmatprep.subr.bf16.mxu0 0
  %415 = vmatpush1.bf16.msra.mxu0 %v394
  %416 = vmatprep.subr.bf16.mxu0 0
  %417 = vmatpush1.bf16.msra.mxu0 %v395
  %418 = vmatprep.subr.bf16.mxu0 0
  %419 = vmatpush1.bf16.msra.mxu0 %v396
  %420 = vmatprep.subr.bf16.mxu0 0
  %421 = vmatpush1.bf16.msra.mxu0 %v397
  %422 = vmatprep.subr.bf16.mxu0 0
  %423 = vmatpush1.bf16.msra.mxu0 0
  %424 = vmatprep.subr.bf16.mxu0 0
  %425 = vmatpush1.bf16.msra.mxu0 0
  %426 = vmatprep.subr.bf16.mxu0 0
  %427 = vmatpush1.bf16.msra.mxu0 0
  %428 = vmatprep.subr.bf16.mxu0 0
  %429 = vmatpush1.bf16.msra.mxu0 0
  %430 = vmatprep.subr.bf16.mxu0 0
  %431 = vmatpush1.bf16.msra.mxu0 0
  %432 = vmatprep.subr.bf16.mxu0 0
  %433 = vmatpush1.bf16.msra.mxu0 0
  %434 = vmatprep.subr.bf16.mxu0 0
  %435 = vmatpush1.bf16.msra.mxu0 0
  %436 = vmatprep.subr.bf16.mxu0 0
  %437 = vmatpush1.bf16.msra.mxu0 0
  %438 = vmatprep.mubr.bf16.mxu0 0
  %439 = vmatmul.mubr.bf16.gmra.mrb[0].mxu0 %v342
  %v440 = vpop.f32.mrb[0].mxu0
  %v441 = vadd.f32 0.0, %v440
  %v442 = vpop.f32.mrb[0].mxu0
  %v443 = vpop.f32.mrb[0].mxu0
  %v444 = vadd.f32 0.0, %v443
  %v445 = vpop.f32.mrb[0].mxu0
  %446 = vmatprep.mubr.bf16.mxu0 0
  %447 = vmatmul.mubr.bf16.gmra.mrb[0].mxu0 %v343
  %v448 = vpop.f32.mrb[0].mxu0
  %v449 = vadd.f32 0.0, %v448
  %v450 = vpop.f32.mrb[0].mxu0
  %v451 = vpop.f32.mrb[0].mxu0
  %v452 = vadd.f32 0.0, %v451
  %v453 = vpop.f32.mrb[0].mxu0
  %454 = vmatprep.mubr.bf16.mxu0 0
  %455 = vmatmul.mubr.bf16.gmra.mrb[0].mxu0 %v344
  %v456 = vpop.f32.mrb[0].mxu0
  %v457 = vadd.f32 0.0, %v456
  %v458 = vpop.f32.mrb[0].mxu0
  %v459 = vpop.f32.mrb[0].mxu0
  %v460 = vadd.f32 0.0, %v459
  %v461 = vpop.f32.mrb[0].mxu0
  %462 = vmatprep.mubr.bf16.mxu0 0
  %463 = vmatmul.mubr.bf16.gmra.mrb[0].mxu0 %v345
  %v464 = vpop.f32.mrb[0].mxu0
  %v465 = vadd.f32 0.0, %v464
  %v466 = vpop.f32.mrb[0].mxu0
  %v467 = vpop.f32.mrb[0].mxu0
  %v468 = vadd.f32 0.0, %v467
  %v469 = vpop.f32.mrb[0].mxu0
  %470 = vmatprep.mubr.bf16.mxu0 0
  %471 = vmatmul.mubr.bf16.gmra.mrb[0].mxu0 %v346
  %v472 = vpop.f32.mrb[0].mxu0
  %v473 = vadd.f32 0.0, %v472
  %v474 = vpop.f32.mrb[0].mxu0
  %v475 = vpop.f32.mrb[0].mxu0
  %v476 = vadd.f32 0.0, %v475
  %v477 = vpop.f32.mrb[0].mxu0
  %478 = vmatprep.mubr.bf16.mxu0 0
  %479 = vmatmul.mubr.bf16.gmra.mrb[0].mxu0 %v347
  %v480 = vpop.f32.mrb[0].mxu0
  %v481 = vadd.f32 0.0, %v480
  %v482 = vpop.f32.mrb[0].mxu0
  %v483 = vpop.f32.mrb[0].mxu0
  %v484 = vadd.f32 0.0, %v483
  %v485 = vpop.f32.mrb[0].mxu0
  %486 = vmatprep.mubr.bf16.mxu0 0
  %487 = vmatmul.mubr.bf16.gmra.mrb[0].mxu0 %v348
  %v488 = vpop.f32.mrb[0].mxu0
  %v489 = vadd.f32 0.0, %v488
  %v490 = vpop.f32.mrb[0].mxu0
  %v491 = vpop.f32.mrb[0].mxu0
  %v492 = vadd.f32 0.0, %v491
  %v493 = vpop.f32.mrb[0].mxu0
  %494 = vmatprep.mubr.bf16.mxu0 0
  %495 = vmatmul.mubr.bf16.gmra.mrb[0].mxu0 %v349
  %v496 = vpop.f32.mrb[0].mxu0
  %v497 = vadd.f32 0.0, %v496
  %v498 = vpop.f32.mrb[0].mxu0
  %v499 = vpop.f32.mrb[0].mxu0
  %v500 = vadd.f32 0.0, %v499
  %v501 = vpop.f32.mrb[0].mxu0
  %502 = vdwg.mxu0
  %v503 = vadd.f32 %v262, %v441
  %v504 = vadd.f32 %v263, %v444
  %v505 = vadd.f32 %v264, %v449
  %v506 = vadd.f32 %v265, %v452
  %v507 = vadd.f32 %v266, %v457
  %v508 = vadd.f32 %v267, %v460
  %v509 = vadd.f32 %v268, %v465
  %v510 = vadd.f32 %v269, %v468
  %v511 = vadd.f32 %v270, %v473
  %v512 = vadd.f32 %v271, %v476
  %v513 = vadd.f32 %v272, %v481
  %v514 = vadd.f32 %v273, %v484
  %v515 = vadd.f32 %v274, %v489
  %v516 = vadd.f32 %v275, %v492
  %v517 = vadd.f32 %v276, %v497
  %v518 = vadd.f32 %v277, %v500
  %519 = vst [vmem:[#allocation2] sm:$0xff] %v503
  %520 = vst [vmem:[#allocation2 + $0x8] sm:$0xff] %v504
  %521 = vst [vmem:[#allocation2 + $0x10] sm:$0xff] %v505
  %522 = vst [vmem:[#allocation2 + $0x18] sm:$0xff] %v506
  %523 = vst [vmem:[#allocation2 + $0x20] sm:$0xff] %v507
  %524 = vst [vmem:[#allocation2 + $0x28] sm:$0xff] %v508
  %525 = vst [vmem:[#allocation2 + $0x30] sm:$0xff] %v509
  %526 = vst [vmem:[#allocation2 + $0x38] sm:$0xff] %v510
  %527 = vst [vmem:[#allocation2 + $0x40] sm:$0xff] %v511
  %528 = vst [vmem:[#allocation2 + $0x48] sm:$0xff] %v512
  %529 = vst [vmem:[#allocation2 + $0x50] sm:$0xff] %v513
  %530 = vst [vmem:[#allocation2 + $0x58] sm:$0xff] %v514
  %531 = vst [vmem:[#allocation2 + $0x60] sm:$0xff] %v515
  %532 = vst [vmem:[#allocation2 + $0x68] sm:$0xff] %v516
  %533 = vst [vmem:[#allocation2 + $0x70] sm:$0xff] %v517
  %534 = vst [vmem:[#allocation2 + $0x78] sm:$0xff] %v518
  %v535 = vld [vmem:[#allocation2] sm:$0xff]
  %v536 = vld [vmem:[#allocation2 + $0x8] sm:$0xff]
  %v537 = vld [vmem:[#allocation2 + $0x10] sm:$0xff]
  %v538 = vld [vmem:[#allocation2 + $0x18] sm:$0xff]
  %v539 = vld [vmem:[#allocation2 + $0x20] sm:$0xff]
  %v540 = vld [vmem:[#allocation2 + $0x28] sm:$0xff]
  %v541 = vld [vmem:[#allocation2 + $0x30] sm:$0xff]
  %v542 = vld [vmem:[#allocation2 + $0x38] sm:$0xff]
  %v543 = vld [vmem:[#allocation2 + $0x40] sm:$0xff]
  %v544 = vld [vmem:[#allocation2 + $0x48] sm:$0xff]
  %v545 = vld [vmem:[#allocation2 + $0x50] sm:$0xff]
  %v546 = vld [vmem:[#allocation2 + $0x58] sm:$0xff]
  %v547 = vld [vmem:[#allocation2 + $0x60] sm:$0xff]
  %v548 = vld [vmem:[#allocation2 + $0x68] sm:$0xff]
  %v549 = vld [vmem:[#allocation2 + $0x70] sm:$0xff]
  %v550 = vld [vmem:[#allocation2 + $0x78] sm:$0xff]
  %v551 = vld [vmem:[%s4] sm:$0x1]
  %v553 = vlaneseq
  %v554 = vshrl.u32 %v553, 7
  %v555 = vsub.s32 0, %v554
  %v556 = vrot.slane %v551, %v555
  %v558 = vadd.f32 %v535, %v556
  %v559 = vadd.f32 %v536, %v556
  %v560 = vadd.f32 %v537, %v556
  %v561 = vadd.f32 %v538, %v556
  %v562 = vadd.f32 %v539, %v556
  %v563 = vadd.f32 %v540, %v556
  %v564 = vadd.f32 %v541, %v556
  %v565 = vadd.f32 %v542, %v556
  %v566 = vadd.f32 %v543, %v556
  %v567 = vadd.f32 %v544, %v556
  %v568 = vadd.f32 %v545, %v556
  %v569 = vadd.f32 %v546, %v556
  %v570 = vadd.f32 %v547, %v556
  %v571 = vadd.f32 %v548, %v556
  %v572 = vadd.f32 %v549, %v556
  %v573 = vadd.f32 %v550, %v556
  %v574 = vmax.f32 %v558, 0.0
  %v575 = vmax.f32 %v559, 0.0
  %v576 = vmax.f32 %v560, 0.0
  %v577 = vmax.f32 %v561, 0.0
  %v578 = vmax.f32 %v562, 0.0
  %v579 = vmax.f32 %v563, 0.0
  %v580 = vmax.f32 %v564, 0.0
  %v581 = vmax.f32 %v565, 0.0
  %v582 = vmax.f32 %v566, 0.0
  %v583 = vmax.f32 %v567, 0.0
  %v584 = vmax.f32 %v568, 0.0
  %v585 = vmax.f32 %v569, 0.0
  %v586 = vmax.f32 %v570, 0.0
  %v587 = vmax.f32 %v571, 0.0
  %v588 = vmax.f32 %v572, 0.0
  %v589 = vmax.f32 %v573, 0.0
  %590 = vst [vmem:[%s5] sm:$0xff] %v574
  %591 = vst [vmem:[%s5 + $0x8] sm:$0xff] %v575
  %592 = vst [vmem:[%s5 + $0x10] sm:$0xff] %v576
  %593 = vst [vmem:[%s5 + $0x18] sm:$0xff] %v577
  %594 = vst [vmem:[%s5 + $0x20] sm:$0xff] %v578
  %595 = vst [vmem:[%s5 + $0x28] sm:$0xff] %v579
  %596 = vst [vmem:[%s5 + $0x30] sm:$0xff] %v580
  %597 = vst [vmem:[%s5 + $0x38] sm:$0xff] %v581
  %598 = vst [vmem:[%s5 + $0x40] sm:$0xff] %v582
  %599 = vst [vmem:[%s5 + $0x48] sm:$0xff] %v583
  %600 = vst [vmem:[%s5 + $0x50] sm:$0xff] %v584
  %601 = vst [vmem:[%s5 + $0x58] sm:$0xff] %v585
  %602 = vst [vmem:[%s5 + $0x60] sm:$0xff] %v586
  %603 = vst [vmem:[%s5 + $0x68] sm:$0xff] %v587
  %604 = vst [vmem:[%s5 + $0x70] sm:$0xff] %v588
  %605 = vst [vmem:[%s5 + $0x78] sm:$0xff] %v589
  // Predicated region
  $region22: #{_lambda_.5} parent=0 // pred_check
    _
  $region23: #{_lambda_.5} parent=0 // pred_check_branch
    %607 = sbr.rel (0) target = $region25
  $region24: #{_lambda_.5} parent=0 // pred_region
    _
  $region25: #{_lambda_.5} parent=0 // pred_fallthru
    _
  // Predicated region
  $region26: #{_lambda_.5} parent=0 // pred_check
    _
  $region27: #{_lambda_.5} parent=0 // pred_check_branch
    %609 = sbr.rel (0) target = $region29
  $region28: #{_lambda_.5} parent=0 // pred_region
    _
  $region29: #{_lambda_.5} parent=0 // pred_fallthru
    _

</llo_original>
